<compile_context>
chip_gen: v7x
topology: tpu7x:2x2x1
jax: 0.10.0
libtpu: 0.0.40
codegen_flags: <defaults>
</compile_context>

<pallas_src>
import functools

import jax
import jax.numpy as jnp
from jax.experimental import pallas as pl
from jax.experimental.pallas import tpu as pltpu


def _round_up(n, m):
    return (n + m - 1) // m * m


def vq_embed_kernel(x_ref, w_in_ref, b_in_ref, cbt_ref, c_sq_ref, lane_ref,
                    cbw_ref, b_out_ref, qf_ref, idx_ref, loss_ref, *, rows_total):
    """One row tile: project_in -> NN codebook search -> fused gather+project_out."""
    i = pl.program_id(0)
    rows = x_ref.shape[0]                       # row_tile (static)
    k_pad = cbt_ref.shape[1]

    # ---- project_in: z = x @ W_in + b_in (MXU, f32 accumulate) ----
    z = jnp.dot(x_ref[...].astype(w_in_ref.dtype), w_in_ref[...],
                preferred_element_type=jnp.float32) + b_in_ref[...]      # (R, Dc) f32

    # ---- nearest neighbour: argmin_k ||z - c_k||^2 ----
    # score = -2 z.c + ||c||^2 ; the row-constant ||z||^2 is dropped from the (R,K)
    # arithmetic (cannot change the argmin) and re-added after the reduction.
    # cbt_ref is pre-scaled by -2 in the wrapper (exact) and stored in the distance
    # matmul dtype (bf16 by default -> native-speed MXU path); accumulation is f32.
    score = jnp.dot(z.astype(cbt_ref.dtype), cbt_ref[...],
                    preferred_element_type=jnp.float32) + c_sq_ref[...]  # (R, K)
    min_s = jnp.min(score, axis=-1, keepdims=True)                       # (R, 1)

    # first-match argmin (torch semantics); lane iota is a resident (1,K) f32 input
    # (f32 iota exact for K < 2^24, asserted in the wrapper).
    lane = lane_ref[...]                                                 # (1, K)
    idx_f = jnp.min(jnp.where(score <= min_s, lane, jnp.float32(k_pad)),
                    axis=-1, keepdims=True)                              # (R, 1)

    # ---- per-row commitment loss = ||z - c*||^2 = ||z||^2 + min_s ----
    # Clamped at 0: the expanded form can go slightly negative from cancellation
    # (especially with bf16 dots). Out-of-range / padded rows are masked to 0.
    z_sq = jnp.sum(z * z, axis=-1, keepdims=True)
    min_d = jnp.maximum(z_sq + min_s, 0.0)
    row_id = i * rows + jax.lax.broadcasted_iota(jnp.int32, (rows, 1), 0)
    per_row = jnp.where(row_id < rows_total, min_d, 0.0)                 # (R, 1)

    # ---- fused gather + project_out: qf = onehot @ (codebook @ W_out) + b_out ----
    # Saves one MXU pass and the (R, Dc) q temporary; codebook / W_out never resident.
    # (For Df >> Dc with huge K an unfused variant would reduce MXU flops — TODO(synk).)
    onehot = (lane == idx_f).astype(cbw_ref.dtype)                       # (R, K)
    qf = jnp.dot(onehot, cbw_ref[...],
                 preferred_element_type=jnp.float32) + b_out_ref[...]    # (R, Df)

    qf_ref[...] = qf.astype(qf_ref.dtype)
    idx_ref[...] = idx_f.astype(jnp.int32).reshape(idx_ref.shape)        # lane-dense
    loss_ref[...] = per_row.reshape(loss_ref.shape)                      # lane-dense


def vq_embed_forward(x, w_in, b_in, codebook, w_out, b_out, *,
                     row_tile=None, dist_dtype=jnp.bfloat16,
                     matmul_dtype=None, out_dtype=None):
    """x: (B, T, feature_dim). Returns (q_features (B,T,Df), indices (B,T) i32, vq_loss ())."""
    B, T, Df = x.shape
    K, Dc = codebook.shape
    N = B * T
    f32 = jnp.float32

    dist_dtype = jnp.dtype(dist_dtype)
    mm_dtype = jnp.dtype(matmul_dtype) if matmul_dtype is not None else jnp.dtype(x.dtype)
    out_dtype = jnp.dtype(out_dtype) if out_dtype is not None else jnp.dtype(x.dtype)

    Dc_p = _round_up(Dc, 128)
    K_p = _round_up(K, 128)
    assert K_p < (1 << 24), "f32 lane-iota argmin requires codebook_size < 2^24"

    # Feature dim already lane-aligned -> stream x / emit qf directly (no padded HBM
    # copy of x, no post-slice copy of qf). Otherwise pad feature columns once.
    df_aligned = (Df % 128 == 0)
    Df_io = Df if df_aligned else _round_up(Df, 128)
    if df_aligned:
        x_in = x.reshape(N, Df)                      # free reshape, streamed as-is
    else:
        x_in = jnp.zeros((N, Df_io), x.dtype).at[:, :Df].set(x.reshape(N, Df))

    # ---- grid-invariant operands: padded / transposed / cast ONCE in the wrapper ----
    cb_f = codebook.astype(f32)
    w_in_p = jnp.zeros((Df_io, Dc_p), mm_dtype).at[:Df, :Dc].set(w_in.astype(mm_dtype))
    b_in_p = jnp.zeros((1, Dc_p), f32).at[0, :Dc].set(b_in.astype(f32))
    # codebook^T pre-scaled by -2 (exact power-of-two) in the distance-matmul dtype.
    cbt_m2 = jnp.zeros((Dc_p, K_p), dist_dtype).at[:Dc, :K].set(
        (-2.0 * cb_f.T).astype(dist_dtype))
    # padded codes carry a huge ||c||^2 -> can never win the argmin.
    c_sq = jnp.full((1, K_p), 1e30, f32).at[0, :K].set(jnp.sum(cb_f * cb_f, axis=-1))
    lane = jax.lax.broadcasted_iota(f32, (1, K_p), 1)
    # fused gather+project_out table: cbW = codebook @ W_out (f32, then matmul dtype).
    cbw = jnp.zeros((K_p, Df_io), mm_dtype).at[:K, :Df].set(
        jnp.dot(cb_f, w_out.astype(f32), precision="highest").astype(mm_dtype))
    b_out_p = jnp.zeros((1, Df_io), f32).at[0, :Df].set(b_out.astype(f32))

    # ---- VMEM-aware row-tile selection + limit (per-generation capacity) ----
    try:
        vmem_cap = int(pltpu.get_tpu_info().vmem_capacity_bytes)
    except Exception:                               # conservative fallback (v7x per-core)
        vmem_cap = 64 * 2 ** 20
    budget = int(0.78 * vmem_cap)                   # headroom for Mosaic scratch / sems

    xb, ob, mb, db = (jnp.dtype(x.dtype).itemsize, out_dtype.itemsize,
                      mm_dtype.itemsize, dist_dtype.itemsize)

    def vmem_est(rt):
        streamed = 2 * rt * Df_io * (xb + ob) + 4 * rt * 8        # x, qf, idx, loss
        resident = ((Df_io * Dc_p + K_p * Df_io) * mb + Dc_p * K_p * db
                    + (Dc_p + 2 * K_p + Df_io) * 4)               # single-buffered
        interm = rt * (5 * K_p + 3 * Dc_p + 2 * Df_io) * 4        # live f32 temporaries
        return streamed + resident + interm

    if row_tile is None:
        # Largest tile that fits VMEM (auto-shrinks as K_p grows); big tiles amortize
        # the ~0.35us/step overhead and keep idx/loss stores full (8,128) tiles.
        row_tile = 128
        for cand in (1024, 512, 256):
            if vmem_est(cand) <= budget:
                row_tile = cand
                break
    assert row_tile % 128 == 0, "row_tile must be a multiple of 128"
    # v7x megacore: keep >= 2 steps on the 'parallel' row axis so both TCs get work.
    while row_tile > 128 and pl.cdiv(N, row_tile) < 2:
        row_tile //= 2

    G = pl.cdiv(N, row_tile)
    S = row_tile // 128
    vmem_limit = int(min(budget, max(2 * vmem_est(row_tile), 32 * 2 ** 20)))

    kernel = functools.partial(vq_embed_kernel, rows_total=N)

    def make_in_specs(single_buffer):
        def resident(shape):
            idx_map = lambda i: (0,) * len(shape)
            buffered = getattr(pl, "Buffered", None)
            if single_buffer and buffered is not None:
                try:    # never-refetched weights: one VMEM copy instead of two
                    return pl.BlockSpec(shape, idx_map, pipeline_mode=buffered(1))
                except (TypeError, ValueError):
                    pass
            return pl.BlockSpec(shape, idx_map)
        return [
            pl.BlockSpec((row_tile, Df_io), lambda i: (i, 0)),    # x rows (streamed)
            resident((Df_io, Dc_p)),                              # W_in
            resident((1, Dc_p)),                                  # b_in
            resident((Dc_p, K_p)),                                # -2 * codebook^T
            resident((1, K_p)),                                   # ||c||^2
            resident((1, K_p)),                                   # lane iota
            resident((K_p, Df_io)),                               # codebook @ W_out
            resident((1, Df_io)),                                 # b_out
        ]

    out_shapes = (jax.ShapeDtypeStruct((N, Df_io), out_dtype),
                  jax.ShapeDtypeStruct((G, S, 128), jnp.int32),
                  jax.ShapeDtypeStruct((G, S, 128), jnp.float32))
    out_specs = [
        pl.BlockSpec((row_tile, Df_io), lambda i: (i, 0)),        # q_features (lane-dense)
        pl.BlockSpec((1, S, 128), lambda i: (i, 0, 0)),           # indices (lane-dense)
        pl.BlockSpec((1, S, 128), lambda i: (i, 0, 0)),           # per-row loss
    ]

    def run(in_specs):
        return pl.pallas_call(
            kernel,
            out_shape=out_shapes,
            grid_spec=pltpu.PrefetchScalarGridSpec(
                num_scalar_prefetch=0, grid=(G,),
                in_specs=in_specs, out_specs=out_specs),
            compiler_params=pltpu.CompilerParams(
                dimension_semantics=("parallel",),   # no cross-step state: megacore-safe
                vmem_limit_bytes=vmem_limit),
        )(x_in, w_in_p, b_in_p, cbt_m2, c_sq, lane, cbw, b_out_p)

    try:
        qf, idx, loss_rows = run(make_in_specs(single_buffer=True))
    except Exception:
        # Older JAX/Mosaic without single-buffer pipeline_mode support: default
        # double-buffering of resident weights only costs extra VMEM, not correctness.
        qf, idx, loss_rows = run(make_in_specs(single_buffer=False))

    q_features = (qf if df_aligned else qf[:, :Df]).reshape(B, T, Df)
    indices = idx.reshape(G * row_tile)[:N].reshape(B, T)
    vq_loss = jnp.sum(loss_rows) / jnp.float32(N * Dc)   # mean ||q - z||^2 over real rows
    return q_features, indices, vq_loss


def _reference(x, w_in, b_in, codebook, w_out, b_out):
    B, T, Df = x.shape
    z = jnp.dot(x.reshape(-1, Df), w_in, precision="highest") + b_in
    diff = z[:, None, :] - codebook[None, :, :]
    dist = jnp.sum(diff * diff, axis=-1)
    idx = jnp.argmin(dist, axis=-1)
    q = codebook[idx]
    loss = jnp.mean((q - z) ** 2)
    qf = jnp.dot(q, w_out, precision="highest") + b_out
    return qf.reshape(B, T, Df), idx.reshape(B, T), loss, dist


if __name__ == "__main__":
    key = jax.random.PRNGKey(0)

    # ---- Test A: exact (f32 distance) path, unaligned dims: exercises column padding
    #      (Df 32 / Dc 16 -> 128, K 100 -> 128) and the ragged last row tile. ----
    B, T = 2, 200
    feature_dim, codebook_dim, codebook_size = 32, 16, 100
    kx, kwi, kbi, kcb, kwo, kbo, key = jax.random.split(key, 7)
    x = jax.random.normal(kx, (B, T, feature_dim), jnp.float32)
    w_in = jax.random.normal(kwi, (feature_dim, codebook_dim), jnp.float32) * 0.1
    b_in = jax.random.normal(kbi, (codebook_dim,), jnp.float32) * 0.1
    codebook = jax.random.normal(kcb, (codebook_size, codebook_dim), jnp.float32)
    w_out = jax.random.normal(kwo, (codebook_dim, feature_dim), jnp.float32) * 0.1
    b_out = jax.random.normal(kbo, (feature_dim,), jnp.float32) * 0.1

    q_features, indices, vq_loss = vq_embed_forward(
        x, w_in, b_in, codebook, w_out, b_out, dist_dtype=jnp.float32)
    jax.block_until_ready((q_features, indices, vq_loss))

    qf_ref, idx_ref, loss_ref, dist_ref = _reference(x, w_in, b_in, codebook, w_out, b_out)
    assert q_features.shape == (B, T, feature_dim)
    assert indices.shape == (B, T) and indices.dtype == jnp.int32
    idx_flat = indices.reshape(-1)
    assert jnp.all((idx_flat >= 0) & (idx_flat < codebook_size)), "indices out of range"
    d_choice = jnp.take_along_axis(dist_ref, idx_flat[:, None], axis=1)[:, 0]
    d_min = jnp.min(dist_ref, axis=-1)
    assert jnp.all(d_choice - d_min <= 1e-3 * (1.0 + d_min)), "indices not nearest codes"
    assert jnp.mean((idx_flat == idx_ref.reshape(-1)).astype(jnp.float32)) > 0.98, \
        "indices mismatch"
    qf_check = (jnp.dot(codebook[idx_flat], w_out, precision="highest")
                + b_out).reshape(B, T, feature_dim)
    assert jnp.allclose(q_features, qf_check, atol=5e-4), "q_features mismatch"
    assert jnp.allclose(vq_loss, loss_ref, atol=1e-3, rtol=1e-3), "vq_loss mismatch"

    # ---- Test B: default (bf16 distance matmul) path, lane-aligned feature dim:
    #      exercises the zero-copy x stream / direct qf emit and the ragged last tile. ----
    B2, T2 = 2, 150
    Df2, Dc2, K2 = 128, 64, 200
    kx, kwi, kbi, kcb, kwo, kbo, key = jax.random.split(key, 7)
    x2 = jax.random.normal(kx, (B2, T2, Df2), jnp.float32)
    w_in2 = jax.random.normal(kwi, (Df2, Dc2), jnp.float32) * 0.1
    b_in2 = jax.random.normal(kbi, (Dc2,), jnp.float32) * 0.1
    codebook2 = jax.random.normal(kcb, (K2, Dc2), jnp.float32)
    w_out2 = jax.random.normal(kwo, (Dc2, Df2), jnp.float32) * 0.1
    b_out2 = jax.random.normal(kbo, (Df2,), jnp.float32) * 0.1

    qf_b, idx_b, loss_b = vq_embed_forward(x2, w_in2, b_in2, codebook2, w_out2, b_out2)
    jax.block_until_ready((qf_b, idx_b, loss_b))

    qf_ref2, idx_ref2, loss_ref2, dist_ref2 = _reference(
        x2, w_in2, b_in2, codebook2, w_out2, b_out2)
    assert qf_b.shape == (B2, T2, Df2) and idx_b.shape == (B2, T2)
    idx_bf = idx_b.reshape(-1)
    assert jnp.all((idx_bf >= 0) & (idx_bf < K2)), "indices out of range (bf16 path)"
    d_choice2 = jnp.take_along_axis(dist_ref2, idx_bf[:, None], axis=1)[:, 0]
    d_min2 = jnp.min(dist_ref2, axis=-1)
    # bf16 distance dots may flip true near-ties; chosen codes must still be near-nearest.
    assert jnp.all(d_choice2 - d_min2 <= 2e-2 * (1.0 + d_min2)), "bf16 path: bad codes"
    qf_check2 = (jnp.dot(codebook2[idx_bf], w_out2, precision="highest")
                 + b_out2).reshape(B2, T2, Df2)
    assert jnp.allclose(qf_b, qf_check2, atol=1e-3), "q_features mismatch (bf16 path)"
    assert jnp.all(jnp.isfinite(qf_b))
    assert jnp.abs(loss_b - loss_ref2) <= 0.05 * jnp.abs(loss_ref2) + 1e-3, \
        "vq_loss mismatch (bf16 path)"

    print("KERNEL_OK")
</pallas_src>

<mosaic_0001>
module attributes {stable_mosaic.version = 11 : i64} {
  func.func @vq_embed_kernel(%arg0: i32, %arg1: memref<256x128xf32, #tpu.memory_space<vmem>>, %arg2: memref<128x128xf32, #tpu.memory_space<vmem>>, %arg3: memref<1x128xf32, #tpu.memory_space<vmem>>, %arg4: memref<128x128xf32, #tpu.memory_space<vmem>>, %arg5: memref<1x128xf32, #tpu.memory_space<vmem>>, %arg6: memref<1x128xf32, #tpu.memory_space<vmem>>, %arg7: memref<128x128xf32, #tpu.memory_space<vmem>>, %arg8: memref<1x128xf32, #tpu.memory_space<vmem>>, %arg9: memref<256x128xf32, #tpu.memory_space<vmem>>, %arg10: memref<1x2x128xi32, #tpu.memory_space<vmem>>, %arg11: memref<1x2x128xf32, #tpu.memory_space<vmem>>) attributes {dimension_semantics = [#tpu.dimension_semantics<parallel>], iteration_bounds = array<i64: 2>, scalar_prefetch = 0 : i64, scratch_operands = 0 : i64, tpu.core_type = #tpu.core_type<tc>, window_params = [{transform_indices = @transform_0, window_bounds = array<i64: 256, 128>}, {pipeline_mode = #tpu.pipeline_mode<synchronous>, transform_indices = @transform_1, window_bounds = array<i64: 128, 128>}, {pipeline_mode = #tpu.pipeline_mode<synchronous>, transform_indices = @transform_2, window_bounds = array<i64: 1, 128>}, {pipeline_mode = #tpu.pipeline_mode<synchronous>, transform_indices = @transform_3, window_bounds = array<i64: 128, 128>}, {pipeline_mode = #tpu.pipeline_mode<synchronous>, transform_indices = @transform_4, window_bounds = array<i64: 1, 128>}, {pipeline_mode = #tpu.pipeline_mode<synchronous>, transform_indices = @transform_5, window_bounds = array<i64: 1, 128>}, {pipeline_mode = #tpu.pipeline_mode<synchronous>, transform_indices = @transform_6, window_bounds = array<i64: 128, 128>}, {pipeline_mode = #tpu.pipeline_mode<synchronous>, transform_indices = @transform_7, window_bounds = array<i64: 1, 128>}, {transform_indices = @transform_8, window_bounds = array<i64: 256, 128>}, {transform_indices = @transform_9, window_bounds = array<i64: 1, 2, 128>}, {transform_indices = @transform_10, window_bounds = array<i64: 1, 2, 128>}]} {
    %c0 = arith.constant 0 : index
    %c0_0 = arith.constant 0 : index
    %0 = vector.load %arg1[%c0, %c0_0] : memref<256x128xf32, #tpu.memory_space<vmem>>, vector<256x128xf32>
    %c0_1 = arith.constant 0 : index
    %c0_2 = arith.constant 0 : index
    %1 = vector.load %arg2[%c0_1, %c0_2] : memref<128x128xf32, #tpu.memory_space<vmem>>, vector<128x128xf32>
    %cst = arith.constant dense<0.000000e+00> : vector<256x128xf32>
    %2 = tpu.matmul %0, %1, %cst {dimension_numbers = #tpu.dot_dimension_numbers<[1], [0], [0], [1], [0, 0, 1, 1], [], []>} : vector<256x128xf32>, vector<128x128xf32>, vector<256x128xf32> -> vector<256x128xf32>
    %c0_3 = arith.constant 0 : index
    %c0_4 = arith.constant 0 : index
    %3 = vector.load %arg3[%c0_3, %c0_4] : memref<1x128xf32, #tpu.memory_space<vmem>>, vector<1x128xf32>
    %4 = vector.broadcast %3 : vector<1x128xf32> to vector<256x128xf32>
    %5 = arith.addf %2, %4 : vector<256x128xf32>
    %c0_5 = arith.constant 0 : index
    %c0_6 = arith.constant 0 : index
    %6 = vector.load %arg4[%c0_5, %c0_6] : memref<128x128xf32, #tpu.memory_space<vmem>>, vector<128x128xf32>
    %cst_7 = arith.constant dense<0.000000e+00> : vector<256x128xf32>
    %7 = tpu.matmul %5, %6, %cst_7 {dimension_numbers = #tpu.dot_dimension_numbers<[1], [0], [0], [1], [0, 0, 1, 1], [], []>} : vector<256x128xf32>, vector<128x128xf32>, vector<256x128xf32> -> vector<256x128xf32>
    %c0_8 = arith.constant 0 : index
    %c0_9 = arith.constant 0 : index
    %8 = vector.load %arg5[%c0_8, %c0_9] : memref<1x128xf32, #tpu.memory_space<vmem>>, vector<1x128xf32>
    %9 = vector.broadcast %8 : vector<1x128xf32> to vector<256x128xf32>
    %10 = arith.addf %7, %9 : vector<256x128xf32>
    %cst_10 = arith.constant dense<0x7F800000> : vector<256xf32>
    %11 = vector.multi_reduction <minimumf>, %10, %cst_10 [1] : vector<256x128xf32> to vector<256xf32>
    %12 = vector.shape_cast %11 : vector<256xf32> to vector<256x1xf32>
    %c0_11 = arith.constant 0 : index
    %c0_12 = arith.constant 0 : index
    %13 = vector.load %arg6[%c0_11, %c0_12] : memref<1x128xf32, #tpu.memory_space<vmem>>, vector<1x128xf32>
    %14 = vector.broadcast %12 : vector<256x1xf32> to vector<256x128xf32>
    %15 = arith.cmpf ole, %10, %14 : vector<256x128xf32>
    %cst_13 = arith.constant 1.280000e+02 : f32
    %16 = vector.shape_cast %13 : vector<1x128xf32> to vector<1x128xf32>
    %17 = vector.broadcast %16 : vector<1x128xf32> to vector<256x128xf32>
    %18 = vector.broadcast %cst_13 : f32 to vector<256x128xf32>
    %19 = arith.select %15, %17, %18 : vector<256x128xi1>, vector<256x128xf32>
    %cst_14 = arith.constant dense<0x7F800000> : vector<256xf32>
    %20 = vector.multi_reduction <minimumf>, %19, %cst_14 [1] : vector<256x128xf32> to vector<256xf32>
    %21 = vector.shape_cast %20 : vector<256xf32> to vector<256x1xf32>
    %22 = arith.mulf %5, %5 : vector<256x128xf32>
    %cst_15 = arith.constant dense<0.000000e+00> : vector<256xf32>
    %23 = vector.multi_reduction <add>, %22, %cst_15 [1] : vector<256x128xf32> to vector<256xf32>
    %24 = vector.shape_cast %23 : vector<256xf32> to vector<256x1xf32>
    %25 = arith.addf %24, %12 : vector<256x1xf32>
    %cst_16 = arith.constant 0.000000e+00 : f32
    %26 = vector.broadcast %cst_16 : f32 to vector<256x1xf32>
    %27 = arith.maximumf %25, %26 : vector<256x1xf32>
    %c256_i32 = arith.constant 256 : i32
    %28 = arith.muli %arg0, %c256_i32 : i32
    %29 = tpu.iota {dimensions = array<i32: 0>} : vector<256x1xi32>
    %30 = vector.broadcast %28 : i32 to vector<256x1xi32>
    %31 = arith.addi %30, %29 : vector<256x1xi32>
    %c400_i32 = arith.constant 400 : i32
    %32 = vector.broadcast %c400_i32 : i32 to vector<256x1xi32>
    %33 = arith.cmpi slt, %31, %32 : vector<256x1xi32>
    %cst_17 = arith.constant 0.000000e+00 : f32
    %34 = vector.broadcast %cst_17 : f32 to vector<256x1xf32>
    %35 = arith.select %33, %27, %34 : vector<256x1xi1>, vector<256x1xf32>
    %36 = vector.broadcast %13 : vector<1x128xf32> to vector<256x128xf32>
    %37 = vector.broadcast %21 : vector<256x1xf32> to vector<256x128xf32>
    %38 = arith.cmpf oeq, %36, %37 : vector<256x128xf32>
    %39 = arith.extui %38 : vector<256x128xi1> to vector<256x128xi32>
    %40 = arith.sitofp %39 : vector<256x128xi32> to vector<256x128xf32>
    %c0_18 = arith.constant 0 : index
    %c0_19 = arith.constant 0 : index
    %41 = vector.load %arg7[%c0_18, %c0_19] : memref<128x128xf32, #tpu.memory_space<vmem>>, vector<128x128xf32>
    %cst_20 = arith.constant dense<0.000000e+00> : vector<256x128xf32>
    %42 = tpu.matmul %40, %41, %cst_20 {dimension_numbers = #tpu.dot_dimension_numbers<[1], [0], [0], [1], [0, 0, 1, 1], [], []>} : vector<256x128xf32>, vector<128x128xf32>, vector<256x128xf32> -> vector<256x128xf32>
    %c0_21 = arith.constant 0 : index
    %c0_22 = arith.constant 0 : index
    %43 = vector.load %arg8[%c0_21, %c0_22] : memref<1x128xf32, #tpu.memory_space<vmem>>, vector<1x128xf32>
    %44 = vector.broadcast %43 : vector<1x128xf32> to vector<256x128xf32>
    %45 = arith.addf %42, %44 : vector<256x128xf32>
    %c0_23 = arith.constant 0 : index
    %c0_24 = arith.constant 0 : index
    %46 = vector.load %arg9[%c0_23, %c0_24] : memref<256x128xf32, #tpu.memory_space<vmem>>, vector<256x128xf32>
    tpu.vector_store %arg9[%c0_23, %c0_24], %45 {strides = array<i32>} : memref<256x128xf32, #tpu.memory_space<vmem>>, vector<256x128xf32>,
    %47 = arith.fptosi %21 : vector<256x1xf32> to vector<256x1xi32>
    %48 = vector.shape_cast %47 : vector<256x1xi32> to vector<1x2x128xi32>
    %c0_25 = arith.constant 0 : index
    %c0_26 = arith.constant 0 : index
    %c0_27 = arith.constant 0 : index
    %49 = vector.load %arg10[%c0_25, %c0_26, %c0_27] : memref<1x2x128xi32, #tpu.memory_space<vmem>>, vector<1x2x128xi32>
    tpu.vector_store %arg10[%c0_25, %c0_26, %c0_27], %48 {strides = array<i32>} : memref<1x2x128xi32, #tpu.memory_space<vmem>>, vector<1x2x128xi32>,
    %50 = vector.shape_cast %35 : vector<256x1xf32> to vector<1x2x128xf32>
    %c0_28 = arith.constant 0 : index
    %c0_29 = arith.constant 0 : index
    %c0_30 = arith.constant 0 : index
    %51 = vector.load %arg11[%c0_28, %c0_29, %c0_30] : memref<1x2x128xf32, #tpu.memory_space<vmem>>, vector<1x2x128xf32>
    tpu.vector_store %arg11[%c0_28, %c0_29, %c0_30], %50 {strides = array<i32>} : memref<1x2x128xf32, #tpu.memory_space<vmem>>, vector<1x2x128xf32>,
    return
  }
  func.func @transform_0(%arg0: i32) -> (i32, i32) {
    %c0_i32 = arith.constant 0 : i32
    %c0_i32_0 = arith.constant 0 : i32
    return %arg0, %c0_i32 : i32, i32
  }
  func.func @transform_1(%arg0: i32) -> (i32, i32) {
    %c0_i32 = arith.constant 0 : i32
    %c0_i32_0 = arith.constant 0 : i32
    %c0_i32_1 = arith.constant 0 : i32
    return %c0_i32, %c0_i32_0 : i32, i32
  }
  func.func @transform_2(%arg0: i32) -> (i32, i32) {
    %c0_i32 = arith.constant 0 : i32
    %c0_i32_0 = arith.constant 0 : i32
    %c0_i32_1 = arith.constant 0 : i32
    return %c0_i32, %c0_i32_0 : i32, i32
  }
  func.func @transform_3(%arg0: i32) -> (i32, i32) {
    %c0_i32 = arith.constant 0 : i32
    %c0_i32_0 = arith.constant 0 : i32
    %c0_i32_1 = arith.constant 0 : i32
    return %c0_i32, %c0_i32_0 : i32, i32
  }
  func.func @transform_4(%arg0: i32) -> (i32, i32) {
    %c0_i32 = arith.constant 0 : i32
    %c0_i32_0 = arith.constant 0 : i32
    %c0_i32_1 = arith.constant 0 : i32
    return %c0_i32, %c0_i32_0 : i32, i32
  }
  func.func @transform_5(%arg0: i32) -> (i32, i32) {
    %c0_i32 = arith.constant 0 : i32
    %c0_i32_0 = arith.constant 0 : i32
    %c0_i32_1 = arith.constant 0 : i32
    return %c0_i32, %c0_i32_0 : i32, i32
  }
  func.func @transform_6(%arg0: i32) -> (i32, i32) {
    %c0_i32 = arith.constant 0 : i32
    %c0_i32_0 = arith.constant 0 : i32
    %c0_i32_1 = arith.constant 0 : i32
    return %c0_i32, %c0_i32_0 : i32, i32
  }
  func.func @transform_7(%arg0: i32) -> (i32, i32) {
    %c0_i32 = arith.constant 0 : i32
    %c0_i32_0 = arith.constant 0 : i32
    %c0_i32_1 = arith.constant 0 : i32
    return %c0_i32, %c0_i32_0 : i32, i32
  }
  func.func @transform_8(%arg0: i32) -> (i32, i32) {
    %c0_i32 = arith.constant 0 : i32
    %c0_i32_0 = arith.constant 0 : i32
    return %arg0, %c0_i32 : i32, i32
  }
  func.func @transform_9(%arg0: i32) -> (i32, i32, i32) {
    %c0_i32 = arith.constant 0 : i32
    %c0_i32_0 = arith.constant 0 : i32
    %c0_i32_1 = arith.constant 0 : i32
    return %arg0, %c0_i32, %c0_i32_0 : i32, i32, i32
  }
  func.func @transform_10(%arg0: i32) -> (i32, i32, i32) {
    %c0_i32 = arith.constant 0 : i32
    %c0_i32_0 = arith.constant 0 : i32
    %c0_i32_1 = arith.constant 0 : i32
    return %arg0, %c0_i32, %c0_i32_0 : i32, i32, i32
  }
}

module attributes {stable_mosaic.version = 11 : i64} {
  func.func @vq_embed_kernel(%arg0: i32, %arg1: memref<256x128xf32, #tpu.memory_space<vmem>>, %arg2: memref<128x128xf32, #tpu.memory_space<vmem>>, %arg3: memref<1x128xf32, #tpu.memory_space<vmem>>, %arg4: memref<128x128xf32, #tpu.memory_space<vmem>>, %arg5: memref<1x128xf32, #tpu.memory_space<vmem>>, %arg6: memref<1x128xf32, #tpu.memory_space<vmem>>, %arg7: memref<128x128xf32, #tpu.memory_space<vmem>>, %arg8: memref<1x128xf32, #tpu.memory_space<vmem>>, %arg9: memref<256x128xf32, #tpu.memory_space<vmem>>, %arg10: memref<1x2x128xi32, #tpu.memory_space<vmem>>, %arg11: memref<1x2x128xf32, #tpu.memory_space<vmem>>) attributes {dimension_semantics = [#tpu.dimension_semantics<parallel>], iteration_bounds = array<i64: 2>, scalar_prefetch = 0 : i64, scratch_operands = 0 : i64, tpu.core_type = #tpu.core_type<tc>, window_params = [{transform_indices = @transform_0, window_bounds = array<i64: 256, 128>}, {pipeline_mode = #tpu.pipeline_mode<synchronous>, transform_indices = @transform_1, window_bounds = array<i64: 128, 128>}, {pipeline_mode = #tpu.pipeline_mode<synchronous>, transform_indices = @transform_2, window_bounds = array<i64: 1, 128>}, {pipeline_mode = #tpu.pipeline_mode<synchronous>, transform_indices = @transform_3, window_bounds = array<i64: 128, 128>}, {pipeline_mode = #tpu.pipeline_mode<synchronous>, transform_indices = @transform_4, window_bounds = array<i64: 1, 128>}, {pipeline_mode = #tpu.pipeline_mode<synchronous>, transform_indices = @transform_5, window_bounds = array<i64: 1, 128>}, {pipeline_mode = #tpu.pipeline_mode<synchronous>, transform_indices = @transform_6, window_bounds = array<i64: 128, 128>}, {pipeline_mode = #tpu.pipeline_mode<synchronous>, transform_indices = @transform_7, window_bounds = array<i64: 1, 128>}, {transform_indices = @transform_8, window_bounds = array<i64: 256, 128>}, {transform_indices = @transform_9, window_bounds = array<i64: 1, 2, 128>}, {transform_indices = @transform_10, window_bounds = array<i64: 1, 2, 128>}]} {
    %c0 = arith.constant 0 : index
    %c0_0 = arith.constant 0 : index
    %0 = vector.load %arg1[%c0, %c0_0] : memref<256x128xf32, #tpu.memory_space<vmem>>, vector<256x128xf32>
    %c0_1 = arith.constant 0 : index
    %c0_2 = arith.constant 0 : index
    %1 = vector.load %arg2[%c0_1, %c0_2] : memref<128x128xf32, #tpu.memory_space<vmem>>, vector<128x128xf32>
    %cst = arith.constant dense<0.000000e+00> : vector<256x128xf32>
    %2 = tpu.matmul %0, %1, %cst {dimension_numbers = #tpu.dot_dimension_numbers<[1], [0], [0], [1], [0, 0, 1, 1], [], []>} : vector<256x128xf32>, vector<128x128xf32>, vector<256x128xf32> -> vector<256x128xf32>
    %c0_3 = arith.constant 0 : index
    %c0_4 = arith.constant 0 : index
    %3 = vector.load %arg3[%c0_3, %c0_4] : memref<1x128xf32, #tpu.memory_space<vmem>>, vector<1x128xf32>
    %4 = vector.broadcast %3 : vector<1x128xf32> to vector<256x128xf32>
    %5 = arith.addf %2, %4 : vector<256x128xf32>
    %c0_5 = arith.constant 0 : index
    %c0_6 = arith.constant 0 : index
    %6 = vector.load %arg4[%c0_5, %c0_6] : memref<128x128xf32, #tpu.memory_space<vmem>>, vector<128x128xf32>
    %cst_7 = arith.constant dense<0.000000e+00> : vector<256x128xf32>
    %7 = tpu.matmul %5, %6, %cst_7 {dimension_numbers = #tpu.dot_dimension_numbers<[1], [0], [0], [1], [0, 0, 1, 1], [], []>} : vector<256x128xf32>, vector<128x128xf32>, vector<256x128xf32> -> vector<256x128xf32>
    %c0_8 = arith.constant 0 : index
    %c0_9 = arith.constant 0 : index
    %8 = vector.load %arg5[%c0_8, %c0_9] : memref<1x128xf32, #tpu.memory_space<vmem>>, vector<1x128xf32>
    %9 = vector.broadcast %8 : vector<1x128xf32> to vector<256x128xf32>
    %10 = arith.addf %7, %9 : vector<256x128xf32>
    %cst_10 = arith.constant dense<0x7F800000> : vector<256xf32>
    %11 = vector.multi_reduction <minimumf>, %10, %cst_10 [1] : vector<256x128xf32> to vector<256xf32>
    %12 = vector.shape_cast %11 : vector<256xf32> to vector<256x1xf32>
    %c0_11 = arith.constant 0 : index
    %c0_12 = arith.constant 0 : index
    %13 = vector.load %arg6[%c0_11, %c0_12] : memref<1x128xf32, #tpu.memory_space<vmem>>, vector<1x128xf32>
    %14 = vector.broadcast %12 : vector<256x1xf32> to vector<256x128xf32>
    %15 = arith.cmpf ole, %10, %14 : vector<256x128xf32>
    %cst_13 = arith.constant 1.280000e+02 : f32
    %16 = vector.shape_cast %13 : vector<1x128xf32> to vector<1x128xf32>
    %17 = vector.broadcast %16 : vector<1x128xf32> to vector<256x128xf32>
    %18 = vector.broadcast %cst_13 : f32 to vector<256x128xf32>
    %19 = arith.select %15, %17, %18 : vector<256x128xi1>, vector<256x128xf32>
    %cst_14 = arith.constant dense<0x7F800000> : vector<256xf32>
    %20 = vector.multi_reduction <minimumf>, %19, %cst_14 [1] : vector<256x128xf32> to vector<256xf32>
    %21 = vector.shape_cast %20 : vector<256xf32> to vector<256x1xf32>
    %22 = arith.mulf %5, %5 : vector<256x128xf32>
    %cst_15 = arith.constant dense<0.000000e+00> : vector<256xf32>
    %23 = vector.multi_reduction <add>, %22, %cst_15 [1] : vector<256x128xf32> to vector<256xf32>
    %24 = vector.shape_cast %23 : vector<256xf32> to vector<256x1xf32>
    %25 = arith.addf %24, %12 : vector<256x1xf32>
    %cst_16 = arith.constant 0.000000e+00 : f32
    %26 = vector.broadcast %cst_16 : f32 to vector<256x1xf32>
    %27 = arith.maximumf %25, %26 : vector<256x1xf32>
    %c256_i32 = arith.constant 256 : i32
    %28 = arith.muli %arg0, %c256_i32 : i32
    %29 = tpu.iota {dimensions = array<i32: 0>} : vector<256x1xi32>
    %30 = vector.broadcast %28 : i32 to vector<256x1xi32>
    %31 = arith.addi %30, %29 : vector<256x1xi32>
    %c400_i32 = arith.constant 400 : i32
    %32 = vector.broadcast %c400_i32 : i32 to vector<256x1xi32>
    %33 = arith.cmpi slt, %31, %32 : vector<256x1xi32>
    %cst_17 = arith.constant 0.000000e+00 : f32
    %34 = vector.broadcast %cst_17 : f32 to vector<256x1xf32>
    %35 = arith.select %33, %27, %34 : vector<256x1xi1>, vector<256x1xf32>
    %36 = vector.broadcast %13 : vector<1x128xf32> to vector<256x128xf32>
    %37 = vector.broadcast %21 : vector<256x1xf32> to vector<256x128xf32>
    %38 = arith.cmpf oeq, %36, %37 : vector<256x128xf32>
    %39 = arith.extui %38 : vector<256x128xi1> to vector<256x128xi32>
    %40 = arith.sitofp %39 : vector<256x128xi32> to vector<256x128xf32>
    %c0_18 = arith.constant 0 : index
    %c0_19 = arith.constant 0 : index
    %41 = vector.load %arg7[%c0_18, %c0_19] : memref<128x128xf32, #tpu.memory_space<vmem>>, vector<128x128xf32>
    %cst_20 = arith.constant dense<0.000000e+00> : vector<256x128xf32>
    %42 = tpu.matmul %40, %41, %cst_20 {dimension_numbers = #tpu.dot_dimension_numbers<[1], [0], [0], [1], [0, 0, 1, 1], [], []>} : vector<256x128xf32>, vector<128x128xf32>, vector<256x128xf32> -> vector<256x128xf32>
    %c0_21 = arith.constant 0 : index
    %c0_22 = arith.constant 0 : index
    %43 = vector.load %arg8[%c0_21, %c0_22] : memref<1x128xf32, #tpu.memory_space<vmem>>, vector<1x128xf32>
    %44 = vector.broadcast %43 : vector<1x128xf32> to vector<256x128xf32>
    %45 = arith.addf %42, %44 : vector<256x128xf32>
    %c0_23 = arith.constant 0 : index
    %c0_24 = arith.constant 0 : index
    %46 = vector.load %arg9[%c0_23, %c0_24] : memref<256x128xf32, #tpu.memory_space<vmem>>, vector<256x128xf32>
    tpu.vector_store %arg9[%c0_23, %c0_24], %45 {strides = array<i32>} : memref<256x128xf32, #tpu.memory_space<vmem>>, vector<256x128xf32>,
    %47 = arith.fptosi %21 : vector<256x1xf32> to vector<256x1xi32>
    %48 = vector.shape_cast %47 : vector<256x1xi32> to vector<1x2x128xi32>
    %c0_25 = arith.constant 0 : index
    %c0_26 = arith.constant 0 : index
    %c0_27 = arith.constant 0 : index
    %49 = vector.load %arg10[%c0_25, %c0_26, %c0_27] : memref<1x2x128xi32, #tpu.memory_space<vmem>>, vector<1x2x128xi32>
    tpu.vector_store %arg10[%c0_25, %c0_26, %c0_27], %48 {strides = array<i32>} : memref<1x2x128xi32, #tpu.memory_space<vmem>>, vector<1x2x128xi32>,
    %50 = vector.shape_cast %35 : vector<256x1xf32> to vector<1x2x128xf32>
    %c0_28 = arith.constant 0 : index
    %c0_29 = arith.constant 0 : index
    %c0_30 = arith.constant 0 : index
    %51 = vector.load %arg11[%c0_28, %c0_29, %c0_30] : memref<1x2x128xf32, #tpu.memory_space<vmem>>, vector<1x2x128xf32>
    tpu.vector_store %arg11[%c0_28, %c0_29, %c0_30], %50 {strides = array<i32>} : memref<1x2x128xf32, #tpu.memory_space<vmem>>, vector<1x2x128xf32>,
    return
  }
  func.func @transform_0(%arg0: i32) -> (i32, i32) {
    %c0_i32 = arith.constant 0 : i32
    %c0_i32_0 = arith.constant 0 : i32
    return %arg0, %c0_i32 : i32, i32
  }
  func.func @transform_1(%arg0: i32) -> (i32, i32) {
    %c0_i32 = arith.constant 0 : i32
    %c0_i32_0 = arith.constant 0 : i32
    %c0_i32_1 = arith.constant 0 : i32
    return %c0_i32, %c0_i32_0 : i32, i32
  }
  func.func @transform_2(%arg0: i32) -> (i32, i32) {
    %c0_i32 = arith.constant 0 : i32
    %c0_i32_0 = arith.constant 0 : i32
    %c0_i32_1 = arith.constant 0 : i32
    return %c0_i32, %c0_i32_0 : i32, i32
  }
  func.func @transform_3(%arg0: i32) -> (i32, i32) {
    %c0_i32 = arith.constant 0 : i32
    %c0_i32_0 = arith.constant 0 : i32
    %c0_i32_1 = arith.constant 0 : i32
    return %c0_i32, %c0_i32_0 : i32, i32
  }
  func.func @transform_4(%arg0: i32) -> (i32, i32) {
    %c0_i32 = arith.constant 0 : i32
    %c0_i32_0 = arith.constant 0 : i32
    %c0_i32_1 = arith.constant 0 : i32
    return %c0_i32, %c0_i32_0 : i32, i32
  }
  func.func @transform_5(%arg0: i32) -> (i32, i32) {
    %c0_i32 = arith.constant 0 : i32
    %c0_i32_0 = arith.constant 0 : i32
    %c0_i32_1 = arith.constant 0 : i32
    return %c0_i32, %c0_i32_0 : i32, i32
  }
  func.func @transform_6(%arg0: i32) -> (i32, i32) {
    %c0_i32 = arith.constant 0 : i32
    %c0_i32_0 = arith.constant 0 : i32
    %c0_i32_1 = arith.constant 0 : i32
    return %c0_i32, %c0_i32_0 : i32, i32
  }
  func.func @transform_7(%arg0: i32) -> (i32, i32) {
    %c0_i32 = arith.constant 0 : i32
    %c0_i32_0 = arith.constant 0 : i32
    %c0_i32_1 = arith.constant 0 : i32
    return %c0_i32, %c0_i32_0 : i32, i32
  }
  func.func @transform_8(%arg0: i32) -> (i32, i32) {
    %c0_i32 = arith.constant 0 : i32
    %c0_i32_0 = arith.constant 0 : i32
    return %arg0, %c0_i32 : i32, i32
  }
  func.func @transform_9(%arg0: i32) -> (i32, i32, i32) {
    %c0_i32 = arith.constant 0 : i32
    %c0_i32_0 = arith.constant 0 : i32
    %c0_i32_1 = arith.constant 0 : i32
    return %arg0, %c0_i32, %c0_i32_0 : i32, i32, i32
  }
  func.func @transform_10(%arg0: i32) -> (i32, i32, i32) {
    %c0_i32 = arith.constant 0 : i32
    %c0_i32_0 = arith.constant 0 : i32
    %c0_i32_1 = arith.constant 0 : i32
    return %arg0, %c0_i32, %c0_i32_0 : i32, i32, i32
  }
}

</mosaic_0001>

<llo_original>
// kernel: tpu_custom_call.1
$region0: #{tpu_custom_call.1}
  #allocation0 [shape = 'u32[]', space=smem, size = 0x4, offset = 0x4, fixed_abs, tag = 'smem constant byte address 0x4 - core index']
  #allocation1 [shape = 'u32[144,128]{1,0:T(1,128)}', space=vmem, size = 0x12000, scoped, tag = 'internal scratch']
  %s0 = inlined_call_operand.hbm [shape: f32[400,128], index: 0, kind: input, shape index: {}]
  %s1 = inlined_call_operand.hbm [shape: f32[128,128], index: 1, kind: input, shape index: {}]
  %s2 = inlined_call_operand.vmem [shape: f32[1,128], index: 2, kind: input, shape index: {}]
  %s3 = inlined_call_operand.hbm [shape: f32[128,128], index: 3, kind: input, shape index: {}]
  %s4 = inlined_call_operand.vmem [shape: f32[1,128], index: 4, kind: input, shape index: {}]
  %s5 = inlined_call_operand.vmem [shape: f32[1,128], index: 5, kind: input, shape index: {}]
  %s6 = inlined_call_operand.hbm [shape: f32[128,128], index: 6, kind: input, shape index: {}]
  %s7 = inlined_call_operand.vmem [shape: f32[1,128], index: 7, kind: input, shape index: {}]
  %s8 = inlined_call_operand.hbm [shape: f32[400,128], index: 8, kind: output, shape index: {0}]
  %s9 = inlined_call_operand.hbm [shape: s32[2,2,128], index: 9, kind: output, shape index: {1}]
  %s10 = inlined_call_operand.hbm [shape: f32[2,2,128], index: 10, kind: output, shape index: {2}]
  %11 = xla_tuple %s8, %s9, %s10
  %s12 = sld [smem:[#allocation0]]
  $region97: #{tpu_custom_call.1} parent=0
    _
  %s14 = ssub.s32 1, %s12
  %s15 = scalar_select 0, %s14, %s12
  $region1: #{tpu_custom_call.1} parent=0
    #allocation2 [shape = 'u8[262144]{0}', space=vmem, size = 0x40000, scoped, tag = 'input window, operand 0']
    #allocation3 [shape = 's32[2]{0}', space=sflag, size = 0x8, scoped, tag = 'scoped memory for tpu_custom_call.1']
    #allocation4 [shape = 's32[2]{0}', space=sflag, size = 0x8, scoped, tag = 'scoped memory for tpu_custom_call.1']
    #allocation5 [shape = 'u8[65536]{0}', space=vmem, size = 0x10000, scoped, tag = 'input window, operand 1, single buffered']
    #allocation6 [shape = 's32[1]{0}', space=sflag, size = 0x4, scoped, tag = 'scoped memory for tpu_custom_call.1']
    #allocation7 [shape = 'u8[65536]{0}', space=vmem, size = 0x10000, scoped, tag = 'input window, operand 3, single buffered']
    #allocation8 [shape = 'u8[65536]{0}', space=vmem, size = 0x10000, scoped, tag = 'input window, operand 6, single buffered']
    #allocation9 [shape = 's32[1]{0}', space=sflag, size = 0x4, scoped, tag = 'scoped memory for tpu_custom_call.1']
    #allocation10 [shape = 'u8[262144]{0}', space=vmem, size = 0x40000, scoped, tag = 'output window, operand 0']
    #allocation11 [shape = 'u8[2048]{0}', space=vmem, size = 0x800, scoped, tag = 'output window, operand 1']
    #allocation12 [shape = 's32[2]{0}', space=sflag, size = 0x8, scoped, tag = 'scoped memory for tpu_custom_call.1']
    #allocation13 [shape = 'u8[2048]{0}', space=vmem, size = 0x800, scoped, tag = 'output window, operand 2']
    %16 = vsyncpa [#allocation3], 0
    %s17 = scalar_lea.sflag [#allocation3], 1
    %18 = vsyncpa %s17, 0
    %19 = vsyncpa [#allocation6], 0
    %20 = vsyncpa [#allocation9], 0
    %21 = vsyncpa [#allocation4], 0
    %s22 = scalar_lea.sflag [#allocation4], 1
    %23 = vsyncpa %s22, 0
    %24 = vsyncpa [#allocation12], 0
    %s25 = scalar_lea.sflag [#allocation12], 1
    %26 = vsyncpa %s25, 0
    loop: start=0, step=1, limit=4
    $region2: #{tpu_custom_call.1} parent=1 // loop_pre_header
      _
    $region3: #{tpu_custom_call.1} parent=1 // loop_header
      %s28 = sphi 0, %s32
      %p29 = scmp.ge.s32.totalorder %s28, 4
      %s38 = sphi 0, %s40
      %s41 = sphi 0, %s38
      %s42 = sphi 0, %s41
      %s58 = sphi 0, %s42
      %s62 = sphi 0, %s62
      %s64 = sphi 0, %s62
      %s65 = sphi 0, %s64
      %s79 = sphi 0, %s65
      %s83 = sphi 0, %s83
      %s85 = sphi 0, %s83
      %s86 = sphi 0, %s85
      %s100 = sphi 0, %s86
      %s104 = sphi 0, %s104
      %s106 = sphi 0, %s104
      %s107 = sphi 0, %s106
      %s121 = sphi 0, %s107
      %s125 = sphi 0, %s125
      %s127 = sphi 0, %s125
      %s128 = sphi 0, %s127
      %s142 = sphi 0, %s128
      %s146 = sphi 0, %s146
      %s148 = sphi 0, %s146
      %s149 = sphi 0, %s148
      %s163 = sphi 0, %s149
      %s167 = sphi 0, %s167
      %s169 = sphi 0, %s167
      %s170 = sphi 0, %s169
      %s184 = sphi 0, %s170
      %s188 = sphi 0, %s188
      %s190 = sphi 0, %s188
      %s191 = sphi 0, %s190
      %s205 = sphi 0, %s191
      %s211 = sphi 0, %s213
      %s214 = sphi 0, %s211
      %s215 = sphi 0, %s214
      %s231 = sphi 0, %s215
      %s237 = sphi 0, %s239
      %s240 = sphi 0, %s237
      %s241 = sphi 0, %s240
      %s257 = sphi 0, %s241
      %s263 = sphi 0, %s265
      %s266 = sphi 0, %s263
      %s267 = sphi 0, %s266
      %s283 = sphi 0, %s267
    $region4: #{tpu_custom_call.1} parent=1 // loop_header_branch
      %31 = sbr.rel (%p29) target = $region8
    $region5: #{tpu_custom_call.1} parent=1 // loop_body
      %s33 = ssub.s32 %s28, 1
      %s34 = ssub.s32 %s28, 2
      %s35 = sadd.s32 %s28, 1
      %s36 = ssub.s32 %s28, %s35
      %p37 = scmp.eq.s32.totalorder %s36, 0
      %s39 = sadd.s32 %s38, 1
      %s40 = scalar_select %p37, %s38, %s39
      %p43 = pneg %p37
      %p44 = scmp.eq.s32.totalorder %s28, 1
      %p45 = por %p43, %p44
      %p46 = scmp.ne.s32.totalorder %s38, %s41
      %p47 = scmp.eq.s32.totalorder %s28, 0
      %p48 = por %p46, %p47
      %p49 = scmp.ne.s32.totalorder %s38, %s41
      %p50 = scmp.eq.s32.totalorder %s33, 1
      %p51 = por %p49, %p50
      %p52 = scmp.ne.s32.totalorder %s41, %s42
      %p53 = scmp.eq.s32.totalorder %s33, 0
      %p54 = por %p52, %p53
      %p55 = scmp.ne.s32.totalorder %s41, %s42
      %p56 = scmp.eq.s32.totalorder %s34, 1
      %p57 = por %p55, %p56
      %p59 = scmp.ne.s32.totalorder %s42, %s58
      %p60 = scmp.eq.s32.totalorder %s34, 0
      %p61 = por %p59, %p60
      %s63 = sadd.s32 %s62, 1
      %p66 = scmp.eq.s32.totalorder %s28, 1
      %p67 = scmp.ne.s32.totalorder %s62, %s64
      %p68 = scmp.eq.s32.totalorder %s28, 0
      %p69 = por %p67, %p68
      %p70 = scmp.ne.s32.totalorder %s62, %s64
      %p71 = scmp.eq.s32.totalorder %s33, 1
      %p72 = por %p70, %p71
      %p73 = scmp.ne.s32.totalorder %s64, %s65
      %p74 = scmp.eq.s32.totalorder %s33, 0
      %p75 = por %p73, %p74
      %p76 = scmp.ne.s32.totalorder %s64, %s65
      %p77 = scmp.eq.s32.totalorder %s34, 1
      %p78 = por %p76, %p77
      %p80 = scmp.ne.s32.totalorder %s65, %s79
      %p81 = scmp.eq.s32.totalorder %s34, 0
      %p82 = por %p80, %p81
      %s84 = sadd.s32 %s83, 1
      %p87 = scmp.eq.s32.totalorder %s28, 1
      %p88 = scmp.ne.s32.totalorder %s83, %s85
      %p89 = scmp.eq.s32.totalorder %s28, 0
      %p90 = por %p88, %p89
      %p91 = scmp.ne.s32.totalorder %s83, %s85
      %p92 = scmp.eq.s32.totalorder %s33, 1
      %p93 = por %p91, %p92
      %p94 = scmp.ne.s32.totalorder %s85, %s86
      %p95 = scmp.eq.s32.totalorder %s33, 0
      %p96 = por %p94, %p95
      %p97 = scmp.ne.s32.totalorder %s85, %s86
      %p98 = scmp.eq.s32.totalorder %s34, 1
      %p99 = por %p97, %p98
      %p101 = scmp.ne.s32.totalorder %s86, %s100
      %p102 = scmp.eq.s32.totalorder %s34, 0
      %p103 = por %p101, %p102
      %s105 = sadd.s32 %s104, 1
      %p108 = scmp.eq.s32.totalorder %s28, 1
      %p109 = scmp.ne.s32.totalorder %s104, %s106
      %p110 = scmp.eq.s32.totalorder %s28, 0
      %p111 = por %p109, %p110
      %p112 = scmp.ne.s32.totalorder %s104, %s106
      %p113 = scmp.eq.s32.totalorder %s33, 1
      %p114 = por %p112, %p113
      %p115 = scmp.ne.s32.totalorder %s106, %s107
      %p116 = scmp.eq.s32.totalorder %s33, 0
      %p117 = por %p115, %p116
      %p118 = scmp.ne.s32.totalorder %s106, %s107
      %p119 = scmp.eq.s32.totalorder %s34, 1
      %p120 = por %p118, %p119
      %p122 = scmp.ne.s32.totalorder %s107, %s121
      %p123 = scmp.eq.s32.totalorder %s34, 0
      %p124 = por %p122, %p123
      %s126 = sadd.s32 %s125, 1
      %p129 = scmp.eq.s32.totalorder %s28, 1
      %p130 = scmp.ne.s32.totalorder %s125, %s127
      %p131 = scmp.eq.s32.totalorder %s28, 0
      %p132 = por %p130, %p131
      %p133 = scmp.ne.s32.totalorder %s125, %s127
      %p134 = scmp.eq.s32.totalorder %s33, 1
      %p135 = por %p133, %p134
      %p136 = scmp.ne.s32.totalorder %s127, %s128
      %p137 = scmp.eq.s32.totalorder %s33, 0
      %p138 = por %p136, %p137
      %p139 = scmp.ne.s32.totalorder %s127, %s128
      %p140 = scmp.eq.s32.totalorder %s34, 1
      %p141 = por %p139, %p140
      %p143 = scmp.ne.s32.totalorder %s128, %s142
      %p144 = scmp.eq.s32.totalorder %s34, 0
      %p145 = por %p143, %p144
      %s147 = sadd.s32 %s146, 1
      %p150 = scmp.eq.s32.totalorder %s28, 1
      %p151 = scmp.ne.s32.totalorder %s146, %s148
      %p152 = scmp.eq.s32.totalorder %s28, 0
      %p153 = por %p151, %p152
      %p154 = scmp.ne.s32.totalorder %s146, %s148
      %p155 = scmp.eq.s32.totalorder %s33, 1
      %p156 = por %p154, %p155
      %p157 = scmp.ne.s32.totalorder %s148, %s149
      %p158 = scmp.eq.s32.totalorder %s33, 0
      %p159 = por %p157, %p158
      %p160 = scmp.ne.s32.totalorder %s148, %s149
      %p161 = scmp.eq.s32.totalorder %s34, 1
      %p162 = por %p160, %p161
      %p164 = scmp.ne.s32.totalorder %s149, %s163
      %p165 = scmp.eq.s32.totalorder %s34, 0
      %p166 = por %p164, %p165
      %s168 = sadd.s32 %s167, 1
      %p171 = scmp.eq.s32.totalorder %s28, 1
      %p172 = scmp.ne.s32.totalorder %s167, %s169
      %p173 = scmp.eq.s32.totalorder %s28, 0
      %p174 = por %p172, %p173
      %p175 = scmp.ne.s32.totalorder %s167, %s169
      %p176 = scmp.eq.s32.totalorder %s33, 1
      %p177 = por %p175, %p176
      %p178 = scmp.ne.s32.totalorder %s169, %s170
      %p179 = scmp.eq.s32.totalorder %s33, 0
      %p180 = por %p178, %p179
      %p181 = scmp.ne.s32.totalorder %s169, %s170
      %p182 = scmp.eq.s32.totalorder %s34, 1
      %p183 = por %p181, %p182
      %p185 = scmp.ne.s32.totalorder %s170, %s184
      %p186 = scmp.eq.s32.totalorder %s34, 0
      %p187 = por %p185, %p186
      %s189 = sadd.s32 %s188, 1
      %p192 = scmp.eq.s32.totalorder %s28, 1
      %p193 = scmp.ne.s32.totalorder %s188, %s190
      %p194 = scmp.eq.s32.totalorder %s28, 0
      %p195 = por %p193, %p194
      %p196 = scmp.ne.s32.totalorder %s188, %s190
      %p197 = scmp.eq.s32.totalorder %s33, 1
      %p198 = por %p196, %p197
      %p199 = scmp.ne.s32.totalorder %s190, %s191
      %p200 = scmp.eq.s32.totalorder %s33, 0
      %p201 = por %p199, %p200
      %p202 = scmp.ne.s32.totalorder %s190, %s191
      %p203 = scmp.eq.s32.totalorder %s34, 1
      %p204 = por %p202, %p203
      %p206 = scmp.ne.s32.totalorder %s191, %s205
      %p207 = scmp.eq.s32.totalorder %s34, 0
      %p208 = por %p206, %p207
      %s209 = ssub.s32 %s28, %s35
      %p210 = scmp.eq.s32.totalorder %s209, 0
      %s212 = sadd.s32 %s211, 1
      %s213 = scalar_select %p210, %s211, %s212
      %p216 = pneg %p210
      %p217 = scmp.eq.s32.totalorder %s28, 1
      %p218 = por %p216, %p217
      %p219 = scmp.ne.s32.totalorder %s211, %s214
      %p220 = scmp.eq.s32.totalorder %s28, 0
      %p221 = por %p219, %p220
      %p222 = scmp.ne.s32.totalorder %s211, %s214
      %p223 = scmp.eq.s32.totalorder %s33, 1
      %p224 = por %p222, %p223
      %p225 = scmp.ne.s32.totalorder %s214, %s215
      %p226 = scmp.eq.s32.totalorder %s33, 0
      %p227 = por %p225, %p226
      %p228 = scmp.ne.s32.totalorder %s214, %s215
      %p229 = scmp.eq.s32.totalorder %s34, 1
      %p230 = por %p228, %p229
      %p232 = scmp.ne.s32.totalorder %s215, %s231
      %p233 = scmp.eq.s32.totalorder %s34, 0
      %p234 = por %p232, %p233
      %s235 = ssub.s32 %s28, %s35
      %p236 = scmp.eq.s32.totalorder %s235, 0
      %s238 = sadd.s32 %s237, 1
      %s239 = scalar_select %p236, %s237, %s238
      %p242 = pneg %p236
      %p243 = scmp.eq.s32.totalorder %s28, 1
      %p244 = por %p242, %p243
      %p245 = scmp.ne.s32.totalorder %s237, %s240
      %p246 = scmp.eq.s32.totalorder %s28, 0
      %p247 = por %p245, %p246
      %p248 = scmp.ne.s32.totalorder %s237, %s240
      %p249 = scmp.eq.s32.totalorder %s33, 1
      %p250 = por %p248, %p249
      %p251 = scmp.ne.s32.totalorder %s240, %s241
      %p252 = scmp.eq.s32.totalorder %s33, 0
      %p253 = por %p251, %p252
      %p254 = scmp.ne.s32.totalorder %s240, %s241
      %p255 = scmp.eq.s32.totalorder %s34, 1
      %p256 = por %p254, %p255
      %p258 = scmp.ne.s32.totalorder %s241, %s257
      %p259 = scmp.eq.s32.totalorder %s34, 0
      %p260 = por %p258, %p259
      %s261 = ssub.s32 %s28, %s35
      %p262 = scmp.eq.s32.totalorder %s261, 0
      %s264 = sadd.s32 %s263, 1
      %s265 = scalar_select %p262, %s263, %s264
      %p268 = pneg %p262
      %p269 = scmp.eq.s32.totalorder %s28, 1
      %p270 = por %p268, %p269
      %p271 = scmp.ne.s32.totalorder %s263, %s266
      %p272 = scmp.eq.s32.totalorder %s28, 0
      %p273 = por %p271, %p272
      %p274 = scmp.ne.s32.totalorder %s263, %s266
      %p275 = scmp.eq.s32.totalorder %s33, 1
      %p276 = por %p274, %p275
      %p277 = scmp.ne.s32.totalorder %s266, %s267
      %p278 = scmp.eq.s32.totalorder %s33, 0
      %p279 = por %p277, %p278
      %p280 = scmp.ne.s32.totalorder %s266, %s267
      %p281 = scmp.eq.s32.totalorder %s34, 1
      %p282 = por %p280, %p281
      %p284 = scmp.ne.s32.totalorder %s267, %s283
      %p285 = scmp.eq.s32.totalorder %s34, 0
      %p286 = por %p284, %p285
      %p287 = scmp.le.s32.totalorder 1, %s28
      %p288 = scmp.lt.s32.totalorder %s28, 3
      %p289 = pnand %p287, %p288
      %p290 = pneg %p289
      // Predicated region
      $region9: #{tpu_custom_call.1} parent=5 // pred_check
        _
      $region10: #{tpu_custom_call.1} parent=5 // pred_check_branch
        %292 = sbr.rel (%p289) target = $region12
      $region11: #{tpu_custom_call.1} parent=5 // pred_region
        %s293 = ssub.s32 %s28, 1
        // Predicated region
        $region13: #{tpu_custom_call.1} parent=11 // pred_check
          %p294 = pneg %p75
        $region14: #{tpu_custom_call.1} parent=11 // pred_check_branch
          %296 = sbr.rel (%p294) target = $region16
        $region15: #{tpu_custom_call.1} parent=11 // pred_region
          %s298 = ssub.s32 2048, 2048
          %299 = vsyncadd [#allocation6], %s298
          %s300 = sshll.u32 [#allocation5], 4
          %s301 = int_to_ptr.vmem [resolvable:$true] %s300
          %306 = dma.hbm_to_vmem [thread:$0]  %s1, 2048, %s301, [#allocation6], 128, 128, 8
        $region16: #{tpu_custom_call.1} parent=11 // pred_fallthru
          _
        // Predicated region
        $region17: #{tpu_custom_call.1} parent=11 // pred_check
          %p307 = pneg %p96
        $region18: #{tpu_custom_call.1} parent=11 // pred_check_branch
          %309 = sbr.rel (%p307) target = $region20
        $region19: #{tpu_custom_call.1} parent=11 // pred_region
          _
        $region20: #{tpu_custom_call.1} parent=11 // pred_fallthru
          _
        // Predicated region
        $region21: #{tpu_custom_call.1} parent=11 // pred_check
          %p310 = pneg %p117
        $region22: #{tpu_custom_call.1} parent=11 // pred_check_branch
          %312 = sbr.rel (%p310) target = $region24
        $region23: #{tpu_custom_call.1} parent=11 // pred_region
          %s314 = ssub.s32 2048, 2048
          %315 = vsyncadd [#allocation6], %s314
          %s316 = sshll.u32 [#allocation7], 4
          %s317 = int_to_ptr.vmem [resolvable:$true] %s316
          %322 = dma.hbm_to_vmem [thread:$0]  %s3, 2048, %s317, [#allocation6], 128, 128, 8
        $region24: #{tpu_custom_call.1} parent=11 // pred_fallthru
          _
        // Predicated region
        $region25: #{tpu_custom_call.1} parent=11 // pred_check
          %p323 = pneg %p138
        $region26: #{tpu_custom_call.1} parent=11 // pred_check_branch
          %325 = sbr.rel (%p323) target = $region28
        $region27: #{tpu_custom_call.1} parent=11 // pred_region
          _
        $region28: #{tpu_custom_call.1} parent=11 // pred_fallthru
          _
        // Predicated region
        $region29: #{tpu_custom_call.1} parent=11 // pred_check
          %p326 = pneg %p159
        $region30: #{tpu_custom_call.1} parent=11 // pred_check_branch
          %328 = sbr.rel (%p326) target = $region32
        $region31: #{tpu_custom_call.1} parent=11 // pred_region
          _
        $region32: #{tpu_custom_call.1} parent=11 // pred_fallthru
          _
        // Predicated region
        $region33: #{tpu_custom_call.1} parent=11 // pred_check
          %p329 = pneg %p180
        $region34: #{tpu_custom_call.1} parent=11 // pred_check_branch
          %331 = sbr.rel (%p329) target = $region36
        $region35: #{tpu_custom_call.1} parent=11 // pred_region
          %s333 = ssub.s32 2048, 2048
          %334 = vsyncadd [#allocation9], %s333
          %s335 = sshll.u32 [#allocation8], 4
          %s336 = int_to_ptr.vmem [resolvable:$true] %s335
          %341 = dma.hbm_to_vmem [thread:$0]  %s6, 2048, %s336, [#allocation9], 128, 128, 8
        $region36: #{tpu_custom_call.1} parent=11 // pred_fallthru
          _
        // Predicated region
        $region37: #{tpu_custom_call.1} parent=11 // pred_check
          %p342 = pneg %p201
        $region38: #{tpu_custom_call.1} parent=11 // pred_check_branch
          %344 = sbr.rel (%p342) target = $region40
        $region39: #{tpu_custom_call.1} parent=11 // pred_region
          _
        $region40: #{tpu_custom_call.1} parent=11 // pred_fallthru
          _
      $region12: #{tpu_custom_call.1} parent=5 // pred_fallthru
        _
      %p345 = scmp.lt.s32.totalorder %s28, 2
      // Predicated region
      $region41: #{tpu_custom_call.1} parent=5 // pred_check
        %p346 = pneg %p345
      $region42: #{tpu_custom_call.1} parent=5 // pred_check_branch
        %348 = sbr.rel (%p346) target = $region44
      $region43: #{tpu_custom_call.1} parent=5 // pred_region
        // Predicated region
        $region45: #{tpu_custom_call.1} parent=43 // pred_check
          %p349 = pneg %p48
        $region46: #{tpu_custom_call.1} parent=43 // pred_check_branch
          %351 = sbr.rel (%p349) target = $region48
        $region47: #{tpu_custom_call.1} parent=43 // pred_region
          %s352 = sand.u32 %s38, 1
          %s353 = scalar_lea.sflag [#allocation3], %s352
          %s354 = sand.u32 %s38, 1
          %s355 = smul.addr %s354, 256
          %s356 = scalar_lea.vmem [#allocation2], %s355
          %s357 = smul.u32 32, %s28
          %s358 = ssub.s32 50, %s357
          %p359 = scmp.lt.s32.totalorder %s358, 32
          %s360 = scalar_select %p359, %s358, 32
          %s361 = smul.u32 128, %s360
          %s363 = ssub.s32 4096, %s361
          %364 = vsyncadd %s353, %s363
          %p365 = scmp.ne.s32.totalorder 0, %s361
          %s366 = smul.addr %s357, 128
          %s367 = scalar_lea.hbm %s0, %s366
          %s368 = smul.u32 8, %s360
          %s369 = sshll.u32 %s356, 4
          %s370 = int_to_ptr.vmem [resolvable:$true] %s369
          %s371 = sshll.u32 %s368, 4
          %375 = dma.hbm_to_vmem [thread:$0]  (%p365), %s367, %s371, %s370, %s353, 128, 128, 8
        $region48: #{tpu_custom_call.1} parent=43 // pred_fallthru
          _
      $region44: #{tpu_custom_call.1} parent=5 // pred_fallthru
        _
      %p376 = scmp.le.s32.totalorder 1, %s28
      %p377 = scmp.lt.s32.totalorder %s28, 3
      %p378 = pnand %p376, %p377
      %p379 = pneg %p378
      // Predicated region
      $region49: #{tpu_custom_call.1} parent=5 // pred_check
        _
      $region50: #{tpu_custom_call.1} parent=5 // pred_check_branch
        %381 = sbr.rel (%p378) target = $region52
      $region51: #{tpu_custom_call.1} parent=5 // pred_region
        %s382 = ssub.s32 %s28, 1
        %s383 = sand.u32 %s41, 1
        %s384 = scalar_lea.sflag [#allocation3], %s383
        %s385 = sand.u32 %s41, 1
        %s386 = smul.addr %s385, 256
        %s387 = scalar_lea.vmem [#allocation2], %s386
        // Predicated region
        $region53: #{tpu_custom_call.1} parent=51 // pred_check
          %p388 = pneg %p54
        $region54: #{tpu_custom_call.1} parent=51 // pred_check_branch
          %390 = sbr.rel (%p388) target = $region56
        $region55: #{tpu_custom_call.1} parent=51 // pred_region
          %391 = dma.done %s384, 4096
        $region56: #{tpu_custom_call.1} parent=51 // pred_fallthru
          _
        // Predicated region
        $region57: #{tpu_custom_call.1} parent=51 // pred_check
          %p392 = pneg %p75
        $region58: #{tpu_custom_call.1} parent=51 // pred_check_branch
          %394 = sbr.rel (%p392) target = $region60
        $region59: #{tpu_custom_call.1} parent=51 // pred_region
          %395 = dma.done [#allocation6], 2048
        $region60: #{tpu_custom_call.1} parent=51 // pred_fallthru
          _
        // Predicated region
        $region61: #{tpu_custom_call.1} parent=51 // pred_check
          %p396 = pneg %p117
        $region62: #{tpu_custom_call.1} parent=51 // pred_check_branch
          %398 = sbr.rel (%p396) target = $region64
        $region63: #{tpu_custom_call.1} parent=51 // pred_region
          %399 = dma.done [#allocation6], 2048
        $region64: #{tpu_custom_call.1} parent=51 // pred_fallthru
          _
        // Predicated region
        $region65: #{tpu_custom_call.1} parent=51 // pred_check
          %p400 = pneg %p180
        $region66: #{tpu_custom_call.1} parent=51 // pred_check_branch
          %402 = sbr.rel (%p400) target = $region68
        $region67: #{tpu_custom_call.1} parent=51 // pred_region
          %403 = dma.done [#allocation9], 2048
        $region68: #{tpu_custom_call.1} parent=51 // pred_fallthru
          _
        %s404 = sand.u32 %s41, 1
        %s405 = scalar_lea.sflag [#allocation3], %s404
        %s406 = sand.u32 %s41, 1
        %s407 = smul.addr %s406, 256
        %s408 = scalar_lea.vmem [#allocation2], %s407
        %p409 = pneg %p54
        %p410 = pneg %p51
        %p411 = pneg %p75
        %p412 = pneg %p72
        %p413 = pneg %p96
        %p414 = pneg %p93
        %p415 = pneg %p117
        %p416 = pneg %p114
        %p417 = pneg %p138
        %p418 = pneg %p135
        %p419 = pneg %p159
        %p420 = pneg %p156
        %p421 = pneg %p180
        %p422 = pneg %p177
        %p423 = pneg %p201
        %p424 = pneg %p198
        %p425 = pneg %p227
        %p426 = pneg %p224
        %s427 = sand.u32 %s214, 1
        %s428 = scalar_lea.sflag [#allocation4], %s427
        %s429 = sand.u32 %s214, 1
        %s430 = smul.addr %s429, 256
        %s431 = scalar_lea.vmem [#allocation10], %s430
        %p432 = pneg %p253
        %p433 = pneg %p250
        %s434 = sand.u32 %s33, 1
        %s435 = scalar_lea.sflag [#allocation12], %s434
        %s436 = sand.u32 %s240, 1
        %s437 = smul.addr %s436, 2
        %s438 = scalar_lea.vmem [#allocation11], %s437
        %p439 = pneg %p279
        %p440 = pneg %p276
        %s441 = sand.u32 %s33, 1
        %s442 = scalar_lea.sflag [#allocation12], %s441
        %s443 = sand.u32 %s266, 1
        %s444 = smul.addr %s443, 2
        %s445 = scalar_lea.vmem [#allocation13], %s444
        %s446 = smul.u32 32, %s33
        %s447 = ssub.s32 50, %s446
        %p448 = scmp.lt.s32.totalorder %s447, 32
        %s449 = scalar_select %p448, %s447, 32
        %s450 = smul.u32 128, %s449
        %s451 = smul.u32 32, %s33
        %s452 = ssub.s32 50, %s451
        %p453 = scmp.lt.s32.totalorder %s452, 32
        %s454 = scalar_select %p453, %s452, 32
        %s455 = smul.u32 128, %s454
        %v456 = vld [vmem:[%s387] sm:$0xff]
        %v457 = vld [vmem:[%s387 + $0x8] sm:$0xff]
        %v458 = vld [vmem:[%s387 + $0x10] sm:$0xff]
        %v459 = vld [vmem:[%s387 + $0x18] sm:$0xff]
        %v460 = vld [vmem:[%s387 + $0x20] sm:$0xff]
        %v461 = vld [vmem:[%s387 + $0x28] sm:$0xff]
        %v462 = vld [vmem:[%s387 + $0x30] sm:$0xff]
        %v463 = vld [vmem:[%s387 + $0x38] sm:$0xff]
        %v464 = vld [vmem:[%s387 + $0x40] sm:$0xff]
        %v465 = vld [vmem:[%s387 + $0x48] sm:$0xff]
        %v466 = vld [vmem:[%s387 + $0x50] sm:$0xff]
        %v467 = vld [vmem:[%s387 + $0x58] sm:$0xff]
        %v468 = vld [vmem:[%s387 + $0x60] sm:$0xff]
        %v469 = vld [vmem:[%s387 + $0x68] sm:$0xff]
        %v470 = vld [vmem:[%s387 + $0x70] sm:$0xff]
        %v471 = vld [vmem:[%s387 + $0x78] sm:$0xff]
        %v472 = vld [vmem:[%s387 + $0x80] sm:$0xff]
        %v473 = vld [vmem:[%s387 + $0x88] sm:$0xff]
        %v474 = vld [vmem:[%s387 + $0x90] sm:$0xff]
        %v475 = vld [vmem:[%s387 + $0x98] sm:$0xff]
        %v476 = vld [vmem:[%s387 + $0xa0] sm:$0xff]
        %v477 = vld [vmem:[%s387 + $0xa8] sm:$0xff]
        %v478 = vld [vmem:[%s387 + $0xb0] sm:$0xff]
        %v479 = vld [vmem:[%s387 + $0xb8] sm:$0xff]
        %v480 = vld [vmem:[%s387 + $0xc0] sm:$0xff]
        %v481 = vld [vmem:[%s387 + $0xc8] sm:$0xff]
        %v482 = vld [vmem:[%s387 + $0xd0] sm:$0xff]
        %v483 = vld [vmem:[%s387 + $0xd8] sm:$0xff]
        %v484 = vld [vmem:[%s387 + $0xe0] sm:$0xff]
        %v485 = vld [vmem:[%s387 + $0xe8] sm:$0xff]
        %v486 = vld [vmem:[%s387 + $0xf0] sm:$0xff]
        %v487 = vld [vmem:[%s387 + $0xf8] sm:$0xff]
        %v488 = vld [vmem:[#allocation5] sm:$0xff]
        %v489 = vld [vmem:[#allocation5 + $0x8] sm:$0xff]
        %v490 = vld [vmem:[#allocation5 + $0x10] sm:$0xff]
        %v491 = vld [vmem:[#allocation5 + $0x18] sm:$0xff]
        %v492 = vld [vmem:[#allocation5 + $0x20] sm:$0xff]
        %v493 = vld [vmem:[#allocation5 + $0x28] sm:$0xff]
        %v494 = vld [vmem:[#allocation5 + $0x30] sm:$0xff]
        %v495 = vld [vmem:[#allocation5 + $0x38] sm:$0xff]
        %v496 = vld [vmem:[#allocation5 + $0x40] sm:$0xff]
        %v497 = vld [vmem:[#allocation5 + $0x48] sm:$0xff]
        %v498 = vld [vmem:[#allocation5 + $0x50] sm:$0xff]
        %v499 = vld [vmem:[#allocation5 + $0x58] sm:$0xff]
        %v500 = vld [vmem:[#allocation5 + $0x60] sm:$0xff]
        %v501 = vld [vmem:[#allocation5 + $0x68] sm:$0xff]
        %v502 = vld [vmem:[#allocation5 + $0x70] sm:$0xff]
        %v503 = vld [vmem:[#allocation5 + $0x78] sm:$0xff]
        %v504 = vld [vmem:[%s2] sm:$0x1]
        %v506 = vlaneseq
        %v507 = vshrl.u32 %v506, 7
        %v508 = vsub.s32 0, %v507
        %v509 = vrot.slane %v504, %v508
        %511 = vmatprep.subr.mxu0 0.0
        %512 = vmatpush1.msra.mxu0 %v488
        %513 = vmatprep.subr.mxu0 0.0
        %514 = vmatpush1.msra.mxu0 %v489
        %515 = vmatprep.subr.mxu0 0.0
        %516 = vmatpush1.msra.mxu0 %v490
        %517 = vmatprep.subr.mxu0 0.0
        %518 = vmatpush1.msra.mxu0 %v491
        %519 = vmatprep.subr.mxu0 0.0
        %520 = vmatpush1.msra.mxu0 %v492
        %521 = vmatprep.subr.mxu0 0.0
        %522 = vmatpush1.msra.mxu0 %v493
        %523 = vmatprep.subr.mxu0 0.0
        %524 = vmatpush1.msra.mxu0 %v494
        %525 = vmatprep.subr.mxu0 0.0
        %526 = vmatpush1.msra.mxu0 %v495
        %527 = vmatprep.subr.mxu0 0.0
        %528 = vmatpush1.msra.mxu0 %v496
        %529 = vmatprep.subr.mxu0 0.0
        %530 = vmatpush1.msra.mxu0 %v497
        %531 = vmatprep.subr.mxu0 0.0
        %532 = vmatpush1.msra.mxu0 %v498
        %533 = vmatprep.subr.mxu0 0.0
        %534 = vmatpush1.msra.mxu0 %v499
        %535 = vmatprep.subr.mxu0 0.0
        %536 = vmatpush1.msra.mxu0 %v500
        %537 = vmatprep.subr.mxu0 0.0
        %538 = vmatpush1.msra.mxu0 %v501
        %539 = vmatprep.subr.mxu0 0.0
        %540 = vmatpush1.msra.mxu0 %v502
        %541 = vmatprep.subr.mxu0 0.0
        %542 = vmatpush1.msra.mxu0 %v503
        %543 = vmatprep.subr.mxu0 0.0
        %544 = vmatpush1.msra.mxu0 0.0
        %545 = vmatprep.subr.mxu0 0.0
        %546 = vmatpush1.msra.mxu0 0.0
        %547 = vmatprep.subr.mxu0 0.0
        %548 = vmatpush1.msra.mxu0 0.0
        %549 = vmatprep.subr.mxu0 0.0
        %550 = vmatpush1.msra.mxu0 0.0
        %551 = vmatprep.subr.mxu0 0.0
        %552 = vmatpush1.msra.mxu0 0.0
        %553 = vmatprep.subr.mxu0 0.0
        %554 = vmatpush1.msra.mxu0 0.0
        %555 = vmatprep.subr.mxu0 0.0
        %556 = vmatpush1.msra.mxu0 0.0
        %557 = vmatprep.subr.mxu0 0.0
        %558 = vmatpush1.msra.mxu0 0.0
        %559 = vmatprep.subr.mxu0 0.0
        %560 = vmatpush1.msra.mxu0 0.0
        %561 = vmatprep.subr.mxu0 0.0
        %562 = vmatpush1.msra.mxu0 0.0
        %563 = vmatprep.subr.mxu0 0.0
        %564 = vmatpush1.msra.mxu0 0.0
        %565 = vmatprep.subr.mxu0 0.0
        %566 = vmatpush1.msra.mxu0 0.0
        %567 = vmatprep.subr.mxu0 0.0
        %568 = vmatpush1.msra.mxu0 0.0
        %569 = vmatprep.subr.mxu0 0.0
        %570 = vmatpush1.msra.mxu0 0.0
        %571 = vmatprep.subr.mxu0 0.0
        %572 = vmatpush1.msra.mxu0 0.0
        %573 = vmatprep.subr.mxu0 0.0
        %574 = vmatpush1.msra.mxu0 0.0
        %575 = vmatprep.mubr.f32.mxu0 0.0
        %576 = vmatmul.mubr.f32.gmra.mrb[0].mxu0 %v456
        %v577 = vpop.f32.mrb[0].mxu0
        %v578 = vadd.f32 %v509, %v577
        %v579 = vpop.f32.mrb[0].mxu0
        %580 = vmatprep.mubr.f32.mxu0 0.0
        %581 = vmatmul.mubr.f32.gmra.mrb[0].mxu0 %v457
        %v582 = vpop.f32.mrb[0].mxu0
        %v583 = vadd.f32 %v509, %v582
        %v584 = vpop.f32.mrb[0].mxu0
        %585 = vmatprep.mubr.f32.mxu0 0.0
        %586 = vmatmul.mubr.f32.gmra.mrb[0].mxu0 %v458
        %v587 = vpop.f32.mrb[0].mxu0
        %v588 = vadd.f32 %v509, %v587
        %v589 = vpop.f32.mrb[0].mxu0
        %590 = vmatprep.mubr.f32.mxu0 0.0
        %591 = vmatmul.mubr.f32.gmra.mrb[0].mxu0 %v459
        %v592 = vpop.f32.mrb[0].mxu0
        %v593 = vadd.f32 %v509, %v592
        %v594 = vpop.f32.mrb[0].mxu0
        %595 = vmatprep.mubr.f32.mxu0 0.0
        %596 = vmatmul.mubr.f32.gmra.mrb[0].mxu0 %v460
        %v597 = vpop.f32.mrb[0].mxu0
        %v598 = vadd.f32 %v509, %v597
        %v599 = vpop.f32.mrb[0].mxu0
        %600 = vmatprep.mubr.f32.mxu0 0.0
        %601 = vmatmul.mubr.f32.gmra.mrb[0].mxu0 %v461
        %v602 = vpop.f32.mrb[0].mxu0
        %v603 = vadd.f32 %v509, %v602
        %v604 = vpop.f32.mrb[0].mxu0
        %605 = vmatprep.mubr.f32.mxu0 0.0
        %606 = vmatmul.mubr.f32.gmra.mrb[0].mxu0 %v462
        %v607 = vpop.f32.mrb[0].mxu0
        %v608 = vadd.f32 %v509, %v607
        %v609 = vpop.f32.mrb[0].mxu0
        %610 = vmatprep.mubr.f32.mxu0 0.0
        %611 = vmatmul.mubr.f32.gmra.mrb[0].mxu0 %v463
        %v612 = vpop.f32.mrb[0].mxu0
        %v613 = vadd.f32 %v509, %v612
        %v614 = vpop.f32.mrb[0].mxu0
        %615 = vmatprep.mubr.f32.mxu0 0.0
        %616 = vmatmul.mubr.f32.gmra.mrb[0].mxu0 %v464
        %v617 = vpop.f32.mrb[0].mxu0
        %v618 = vadd.f32 %v509, %v617
        %v619 = vpop.f32.mrb[0].mxu0
        %620 = vmatprep.mubr.f32.mxu0 0.0
        %621 = vmatmul.mubr.f32.gmra.mrb[0].mxu0 %v465
        %v622 = vpop.f32.mrb[0].mxu0
        %v623 = vadd.f32 %v509, %v622
        %v624 = vpop.f32.mrb[0].mxu0
        %625 = vmatprep.mubr.f32.mxu0 0.0
        %626 = vmatmul.mubr.f32.gmra.mrb[0].mxu0 %v466
        %v627 = vpop.f32.mrb[0].mxu0
        %v628 = vadd.f32 %v509, %v627
        %v629 = vpop.f32.mrb[0].mxu0
        %630 = vmatprep.mubr.f32.mxu0 0.0
        %631 = vmatmul.mubr.f32.gmra.mrb[0].mxu0 %v467
        %v632 = vpop.f32.mrb[0].mxu0
        %v633 = vadd.f32 %v509, %v632
        %v634 = vpop.f32.mrb[0].mxu0
        %635 = vmatprep.mubr.f32.mxu0 0.0
        %636 = vmatmul.mubr.f32.gmra.mrb[0].mxu0 %v468
        %v637 = vpop.f32.mrb[0].mxu0
        %v638 = vadd.f32 %v509, %v637
        %v639 = vpop.f32.mrb[0].mxu0
        %640 = vmatprep.mubr.f32.mxu0 0.0
        %641 = vmatmul.mubr.f32.gmra.mrb[0].mxu0 %v469
        %v642 = vpop.f32.mrb[0].mxu0
        %v643 = vadd.f32 %v509, %v642
        %v644 = vpop.f32.mrb[0].mxu0
        %645 = vmatprep.mubr.f32.mxu0 0.0
        %646 = vmatmul.mubr.f32.gmra.mrb[0].mxu0 %v470
        %v647 = vpop.f32.mrb[0].mxu0
        %v648 = vadd.f32 %v509, %v647
        %v649 = vpop.f32.mrb[0].mxu0
        %650 = vmatprep.mubr.f32.mxu0 0.0
        %651 = vmatmul.mubr.f32.gmra.mrb[0].mxu0 %v471
        %v652 = vpop.f32.mrb[0].mxu0
        %v653 = vadd.f32 %v509, %v652
        %v654 = vpop.f32.mrb[0].mxu0
        %655 = vmatprep.mubr.f32.mxu0 0.0
        %656 = vmatmul.mubr.f32.gmra.mrb[0].mxu0 %v472
        %v657 = vpop.f32.mrb[0].mxu0
        %v658 = vadd.f32 %v509, %v657
        %v659 = vpop.f32.mrb[0].mxu0
        %660 = vmatprep.mubr.f32.mxu0 0.0
        %661 = vmatmul.mubr.f32.gmra.mrb[0].mxu0 %v473
        %v662 = vpop.f32.mrb[0].mxu0
        %v663 = vadd.f32 %v509, %v662
        %v664 = vpop.f32.mrb[0].mxu0
        %665 = vmatprep.mubr.f32.mxu0 0.0
        %666 = vmatmul.mubr.f32.gmra.mrb[0].mxu0 %v474
        %v667 = vpop.f32.mrb[0].mxu0
        %v668 = vadd.f32 %v509, %v667
        %v669 = vpop.f32.mrb[0].mxu0
        %670 = vmatprep.mubr.f32.mxu0 0.0
        %671 = vmatmul.mubr.f32.gmra.mrb[0].mxu0 %v475
        %v672 = vpop.f32.mrb[0].mxu0
        %v673 = vadd.f32 %v509, %v672
        %v674 = vpop.f32.mrb[0].mxu0
        %675 = vmatprep.mubr.f32.mxu0 0.0
        %676 = vmatmul.mubr.f32.gmra.mrb[0].mxu0 %v476
        %v677 = vpop.f32.mrb[0].mxu0
        %v678 = vadd.f32 %v509, %v677
        %v679 = vpop.f32.mrb[0].mxu0
        %680 = vmatprep.mubr.f32.mxu0 0.0
        %681 = vmatmul.mubr.f32.gmra.mrb[0].mxu0 %v477
        %v682 = vpop.f32.mrb[0].mxu0
        %v683 = vadd.f32 %v509, %v682
        %v684 = vpop.f32.mrb[0].mxu0
        %685 = vmatprep.mubr.f32.mxu0 0.0
        %686 = vmatmul.mubr.f32.gmra.mrb[0].mxu0 %v478
        %v687 = vpop.f32.mrb[0].mxu0
        %v688 = vadd.f32 %v509, %v687
        %v689 = vpop.f32.mrb[0].mxu0
        %690 = vmatprep.mubr.f32.mxu0 0.0
        %691 = vmatmul.mubr.f32.gmra.mrb[0].mxu0 %v479
        %v692 = vpop.f32.mrb[0].mxu0
        %v693 = vadd.f32 %v509, %v692
        %v694 = vpop.f32.mrb[0].mxu0
        %695 = vmatprep.mubr.f32.mxu0 0.0
        %696 = vmatmul.mubr.f32.gmra.mrb[0].mxu0 %v480
        %v697 = vpop.f32.mrb[0].mxu0
        %v698 = vadd.f32 %v509, %v697
        %v699 = vpop.f32.mrb[0].mxu0
        %700 = vmatprep.mubr.f32.mxu0 0.0
        %701 = vmatmul.mubr.f32.gmra.mrb[0].mxu0 %v481
        %v702 = vpop.f32.mrb[0].mxu0
        %v703 = vadd.f32 %v509, %v702
        %v704 = vpop.f32.mrb[0].mxu0
        %705 = vmatprep.mubr.f32.mxu0 0.0
        %706 = vmatmul.mubr.f32.gmra.mrb[0].mxu0 %v482
        %v707 = vpop.f32.mrb[0].mxu0
        %v708 = vadd.f32 %v509, %v707
        %v709 = vpop.f32.mrb[0].mxu0
        %710 = vmatprep.mubr.f32.mxu0 0.0
        %711 = vmatmul.mubr.f32.gmra.mrb[0].mxu0 %v483
        %v712 = vpop.f32.mrb[0].mxu0
        %v713 = vadd.f32 %v509, %v712
        %v714 = vpop.f32.mrb[0].mxu0
        %715 = vmatprep.mubr.f32.mxu0 0.0
        %716 = vmatmul.mubr.f32.gmra.mrb[0].mxu0 %v484
        %v717 = vpop.f32.mrb[0].mxu0
        %v718 = vadd.f32 %v509, %v717
        %v719 = vpop.f32.mrb[0].mxu0
        %720 = vmatprep.mubr.f32.mxu0 0.0
        %721 = vmatmul.mubr.f32.gmra.mrb[0].mxu0 %v485
        %v722 = vpop.f32.mrb[0].mxu0
        %v723 = vadd.f32 %v509, %v722
        %v724 = vpop.f32.mrb[0].mxu0
        %725 = vmatprep.mubr.f32.mxu0 0.0
        %726 = vmatmul.mubr.f32.gmra.mrb[0].mxu0 %v486
        %v727 = vpop.f32.mrb[0].mxu0
        %v728 = vadd.f32 %v509, %v727
        %v729 = vpop.f32.mrb[0].mxu0
        %730 = vmatprep.mubr.f32.mxu0 0.0
        %731 = vmatmul.mubr.f32.gmra.mrb[0].mxu0 %v487
        %v732 = vpop.f32.mrb[0].mxu0
        %v733 = vadd.f32 %v509, %v732
        %v734 = vpop.f32.mrb[0].mxu0
        %735 = vdwg.mxu0
        %v736 = vld [vmem:[#allocation7] sm:$0xff]
        %v737 = vld [vmem:[#allocation7 + $0x8] sm:$0xff]
        %v738 = vld [vmem:[#allocation7 + $0x10] sm:$0xff]
        %v739 = vld [vmem:[#allocation7 + $0x18] sm:$0xff]
        %v740 = vld [vmem:[#allocation7 + $0x20] sm:$0xff]
        %v741 = vld [vmem:[#allocation7 + $0x28] sm:$0xff]
        %v742 = vld [vmem:[#allocation7 + $0x30] sm:$0xff]
        %v743 = vld [vmem:[#allocation7 + $0x38] sm:$0xff]
        %v744 = vld [vmem:[#allocation7 + $0x40] sm:$0xff]
        %v745 = vld [vmem:[#allocation7 + $0x48] sm:$0xff]
        %v746 = vld [vmem:[#allocation7 + $0x50] sm:$0xff]
        %v747 = vld [vmem:[#allocation7 + $0x58] sm:$0xff]
        %v748 = vld [vmem:[#allocation7 + $0x60] sm:$0xff]
        %v749 = vld [vmem:[#allocation7 + $0x68] sm:$0xff]
        %v750 = vld [vmem:[#allocation7 + $0x70] sm:$0xff]
        %v751 = vld [vmem:[#allocation7 + $0x78] sm:$0xff]
        %v752 = vld [vmem:[%s4] sm:$0x1]
        %v754 = vlaneseq
        %v755 = vshrl.u32 %v754, 7
        %v756 = vsub.s32 0, %v755
        %v757 = vrot.slane %v752, %v756
        %759 = vmatprep.subr.mxu0 0.0
        %760 = vmatpush1.msra.mxu0 %v736
        %761 = vmatprep.subr.mxu0 0.0
        %762 = vmatpush1.msra.mxu0 %v737
        %763 = vmatprep.subr.mxu0 0.0
        %764 = vmatpush1.msra.mxu0 %v738
        %765 = vmatprep.subr.mxu0 0.0
        %766 = vmatpush1.msra.mxu0 %v739
        %767 = vmatprep.subr.mxu0 0.0
        %768 = vmatpush1.msra.mxu0 %v740
        %769 = vmatprep.subr.mxu0 0.0
        %770 = vmatpush1.msra.mxu0 %v741
        %771 = vmatprep.subr.mxu0 0.0
        %772 = vmatpush1.msra.mxu0 %v742
        %773 = vmatprep.subr.mxu0 0.0
        %774 = vmatpush1.msra.mxu0 %v743
        %775 = vmatprep.subr.mxu0 0.0
        %776 = vmatpush1.msra.mxu0 %v744
        %777 = vmatprep.subr.mxu0 0.0
        %778 = vmatpush1.msra.mxu0 %v745
        %779 = vmatprep.subr.mxu0 0.0
        %780 = vmatpush1.msra.mxu0 %v746
        %781 = vmatprep.subr.mxu0 0.0
        %782 = vmatpush1.msra.mxu0 %v747
        %783 = vmatprep.subr.mxu0 0.0
        %784 = vmatpush1.msra.mxu0 %v748
        %785 = vmatprep.subr.mxu0 0.0
        %786 = vmatpush1.msra.mxu0 %v749
        %787 = vmatprep.subr.mxu0 0.0
        %788 = vmatpush1.msra.mxu0 %v750
        %789 = vmatprep.subr.mxu0 0.0
        %790 = vmatpush1.msra.mxu0 %v751
        %791 = vmatprep.subr.mxu0 0.0
        %792 = vmatpush1.msra.mxu0 0.0
        %793 = vmatprep.subr.mxu0 0.0
        %794 = vmatpush1.msra.mxu0 0.0
        %795 = vmatprep.subr.mxu0 0.0
        %796 = vmatpush1.msra.mxu0 0.0
        %797 = vmatprep.subr.mxu0 0.0
        %798 = vmatpush1.msra.mxu0 0.0
        %799 = vmatprep.subr.mxu0 0.0
        %800 = vmatpush1.msra.mxu0 0.0
        %801 = vmatprep.subr.mxu0 0.0
        %802 = vmatpush1.msra.mxu0 0.0
        %803 = vmatprep.subr.mxu0 0.0
        %804 = vmatpush1.msra.mxu0 0.0
        %805 = vmatprep.subr.mxu0 0.0
        %806 = vmatpush1.msra.mxu0 0.0
        %807 = vmatprep.subr.mxu0 0.0
        %808 = vmatpush1.msra.mxu0 0.0
        %809 = vmatprep.subr.mxu0 0.0
        %810 = vmatpush1.msra.mxu0 0.0
        %811 = vmatprep.subr.mxu0 0.0
        %812 = vmatpush1.msra.mxu0 0.0
        %813 = vmatprep.subr.mxu0 0.0
        %814 = vmatpush1.msra.mxu0 0.0
        %815 = vmatprep.subr.mxu0 0.0
        %816 = vmatpush1.msra.mxu0 0.0
        %817 = vmatprep.subr.mxu0 0.0
        %818 = vmatpush1.msra.mxu0 0.0
        %819 = vmatprep.subr.mxu0 0.0
        %820 = vmatpush1.msra.mxu0 0.0
        %821 = vmatprep.subr.mxu0 0.0
        %822 = vmatpush1.msra.mxu0 0.0
        %823 = vmatprep.mubr.f32.mxu0 0.0
        %824 = vmatmul.mubr.f32.gmra.mrb[0].mxu0 %v578
        %v825 = vpop.f32.mrb[0].mxu0
        %v826 = vadd.f32 %v757, %v825
        %v827 = vpop.f32.mrb[0].mxu0
        %828 = vmatprep.mubr.f32.mxu0 0.0
        %829 = vmatmul.mubr.f32.gmra.mrb[0].mxu0 %v583
        %v830 = vpop.f32.mrb[0].mxu0
        %v831 = vadd.f32 %v757, %v830
        %v832 = vpop.f32.mrb[0].mxu0
        %833 = vmatprep.mubr.f32.mxu0 0.0
        %834 = vmatmul.mubr.f32.gmra.mrb[0].mxu0 %v588
        %v835 = vpop.f32.mrb[0].mxu0
        %v836 = vadd.f32 %v757, %v835
        %v837 = vpop.f32.mrb[0].mxu0
        %838 = vmatprep.mubr.f32.mxu0 0.0
        %839 = vmatmul.mubr.f32.gmra.mrb[0].mxu0 %v593
        %v840 = vpop.f32.mrb[0].mxu0
        %v841 = vadd.f32 %v757, %v840
        %v842 = vpop.f32.mrb[0].mxu0
        %843 = vmatprep.mubr.f32.mxu0 0.0
        %844 = vmatmul.mubr.f32.gmra.mrb[0].mxu0 %v598
        %v845 = vpop.f32.mrb[0].mxu0
        %v846 = vadd.f32 %v757, %v845
        %v847 = vpop.f32.mrb[0].mxu0
        %848 = vmatprep.mubr.f32.mxu0 0.0
        %849 = vmatmul.mubr.f32.gmra.mrb[0].mxu0 %v603
        %v850 = vpop.f32.mrb[0].mxu0
        %v851 = vadd.f32 %v757, %v850
        %v852 = vpop.f32.mrb[0].mxu0
        %853 = vmatprep.mubr.f32.mxu0 0.0
        %854 = vmatmul.mubr.f32.gmra.mrb[0].mxu0 %v608
        %v855 = vpop.f32.mrb[0].mxu0
        %v856 = vadd.f32 %v757, %v855
        %v857 = vpop.f32.mrb[0].mxu0
        %858 = vmatprep.mubr.f32.mxu0 0.0
        %859 = vmatmul.mubr.f32.gmra.mrb[0].mxu0 %v613
        %v860 = vpop.f32.mrb[0].mxu0
        %v861 = vadd.f32 %v757, %v860
        %v862 = vpop.f32.mrb[0].mxu0
        %863 = vmatprep.mubr.f32.mxu0 0.0
        %864 = vmatmul.mubr.f32.gmra.mrb[0].mxu0 %v618
        %v865 = vpop.f32.mrb[0].mxu0
        %v866 = vadd.f32 %v757, %v865
        %v867 = vpop.f32.mrb[0].mxu0
        %868 = vmatprep.mubr.f32.mxu0 0.0
        %869 = vmatmul.mubr.f32.gmra.mrb[0].mxu0 %v623
        %v870 = vpop.f32.mrb[0].mxu0
        %v871 = vadd.f32 %v757, %v870
        %v872 = vpop.f32.mrb[0].mxu0
        %873 = vmatprep.mubr.f32.mxu0 0.0
        %874 = vmatmul.mubr.f32.gmra.mrb[0].mxu0 %v628
        %v875 = vpop.f32.mrb[0].mxu0
        %v876 = vadd.f32 %v757, %v875
        %v877 = vpop.f32.mrb[0].mxu0
        %878 = vmatprep.mubr.f32.mxu0 0.0
        %879 = vmatmul.mubr.f32.gmra.mrb[0].mxu0 %v633
        %v880 = vpop.f32.mrb[0].mxu0
        %v881 = vadd.f32 %v757, %v880
        %v882 = vpop.f32.mrb[0].mxu0
        %883 = vmatprep.mubr.f32.mxu0 0.0
        %884 = vmatmul.mubr.f32.gmra.mrb[0].mxu0 %v638
        %v885 = vpop.f32.mrb[0].mxu0
        %v886 = vadd.f32 %v757, %v885
        %v887 = vpop.f32.mrb[0].mxu0
        %888 = vmatprep.mubr.f32.mxu0 0.0
        %889 = vmatmul.mubr.f32.gmra.mrb[0].mxu0 %v643
        %v890 = vpop.f32.mrb[0].mxu0
        %v891 = vadd.f32 %v757, %v890
        %v892 = vpop.f32.mrb[0].mxu0
        %893 = vmatprep.mubr.f32.mxu0 0.0
        %894 = vmatmul.mubr.f32.gmra.mrb[0].mxu0 %v648
        %v895 = vpop.f32.mrb[0].mxu0
        %v896 = vadd.f32 %v757, %v895
        %v897 = vpop.f32.mrb[0].mxu0
        %898 = vmatprep.mubr.f32.mxu0 0.0
        %899 = vmatmul.mubr.f32.gmra.mrb[0].mxu0 %v653
        %v900 = vpop.f32.mrb[0].mxu0
        %v901 = vadd.f32 %v757, %v900
        %v902 = vpop.f32.mrb[0].mxu0
        %903 = vmatprep.mubr.f32.mxu0 0.0
        %904 = vmatmul.mubr.f32.gmra.mrb[0].mxu0 %v658
        %v905 = vpop.f32.mrb[0].mxu0
        %v906 = vadd.f32 %v757, %v905
        %v907 = vpop.f32.mrb[0].mxu0
        %908 = vmatprep.mubr.f32.mxu0 0.0
        %909 = vmatmul.mubr.f32.gmra.mrb[0].mxu0 %v663
        %v910 = vpop.f32.mrb[0].mxu0
        %v911 = vadd.f32 %v757, %v910
        %v912 = vpop.f32.mrb[0].mxu0
        %913 = vmatprep.mubr.f32.mxu0 0.0
        %914 = vmatmul.mubr.f32.gmra.mrb[0].mxu0 %v668
        %v915 = vpop.f32.mrb[0].mxu0
        %v916 = vadd.f32 %v757, %v915
        %v917 = vpop.f32.mrb[0].mxu0
        %918 = vmatprep.mubr.f32.mxu0 0.0
        %919 = vmatmul.mubr.f32.gmra.mrb[0].mxu0 %v673
        %v920 = vpop.f32.mrb[0].mxu0
        %v921 = vadd.f32 %v757, %v920
        %v922 = vpop.f32.mrb[0].mxu0
        %923 = vmatprep.mubr.f32.mxu0 0.0
        %924 = vmatmul.mubr.f32.gmra.mrb[0].mxu0 %v678
        %v925 = vpop.f32.mrb[0].mxu0
        %v926 = vadd.f32 %v757, %v925
        %v927 = vpop.f32.mrb[0].mxu0
        %928 = vmatprep.mubr.f32.mxu0 0.0
        %929 = vmatmul.mubr.f32.gmra.mrb[0].mxu0 %v683
        %v930 = vpop.f32.mrb[0].mxu0
        %v931 = vadd.f32 %v757, %v930
        %v932 = vpop.f32.mrb[0].mxu0
        %933 = vmatprep.mubr.f32.mxu0 0.0
        %934 = vmatmul.mubr.f32.gmra.mrb[0].mxu0 %v688
        %v935 = vpop.f32.mrb[0].mxu0
        %v936 = vadd.f32 %v757, %v935
        %v937 = vpop.f32.mrb[0].mxu0
        %938 = vmatprep.mubr.f32.mxu0 0.0
        %939 = vmatmul.mubr.f32.gmra.mrb[0].mxu0 %v693
        %v940 = vpop.f32.mrb[0].mxu0
        %v941 = vadd.f32 %v757, %v940
        %v942 = vpop.f32.mrb[0].mxu0
        %943 = vmatprep.mubr.f32.mxu0 0.0
        %944 = vmatmul.mubr.f32.gmra.mrb[0].mxu0 %v698
        %v945 = vpop.f32.mrb[0].mxu0
        %v946 = vadd.f32 %v757, %v945
        %v947 = vpop.f32.mrb[0].mxu0
        %948 = vmatprep.mubr.f32.mxu0 0.0
        %949 = vmatmul.mubr.f32.gmra.mrb[0].mxu0 %v703
        %v950 = vpop.f32.mrb[0].mxu0
        %v951 = vadd.f32 %v757, %v950
        %v952 = vpop.f32.mrb[0].mxu0
        %953 = vmatprep.mubr.f32.mxu0 0.0
        %954 = vmatmul.mubr.f32.gmra.mrb[0].mxu0 %v708
        %v955 = vpop.f32.mrb[0].mxu0
        %v956 = vadd.f32 %v757, %v955
        %v957 = vpop.f32.mrb[0].mxu0
        %958 = vmatprep.mubr.f32.mxu0 0.0
        %959 = vmatmul.mubr.f32.gmra.mrb[0].mxu0 %v713
        %v960 = vpop.f32.mrb[0].mxu0
        %v961 = vadd.f32 %v757, %v960
        %v962 = vpop.f32.mrb[0].mxu0
        %963 = vmatprep.mubr.f32.mxu0 0.0
        %964 = vmatmul.mubr.f32.gmra.mrb[0].mxu0 %v718
        %v965 = vpop.f32.mrb[0].mxu0
        %v966 = vadd.f32 %v757, %v965
        %v967 = vpop.f32.mrb[0].mxu0
        %968 = vmatprep.mubr.f32.mxu0 0.0
        %969 = vmatmul.mubr.f32.gmra.mrb[0].mxu0 %v723
        %v970 = vpop.f32.mrb[0].mxu0
        %v971 = vadd.f32 %v757, %v970
        %v972 = vpop.f32.mrb[0].mxu0
        %973 = vmatprep.mubr.f32.mxu0 0.0
        %974 = vmatmul.mubr.f32.gmra.mrb[0].mxu0 %v728
        %v975 = vpop.f32.mrb[0].mxu0
        %v976 = vadd.f32 %v757, %v975
        %v977 = vpop.f32.mrb[0].mxu0
        %978 = vmatprep.mubr.f32.mxu0 0.0
        %979 = vmatmul.mubr.f32.gmra.mrb[0].mxu0 %v733
        %v980 = vpop.f32.mrb[0].mxu0
        %v981 = vadd.f32 %v757, %v980
        %v982 = vpop.f32.mrb[0].mxu0
        %983 = vdwg.mxu0
        %984 = vmin.xlane.f32.xlu0 %v826
        %v985 = vpop.xlane.xlu0 %984
        %986 = vmin.xlane.f32.xlu0 %v831
        %v987 = vpop.xlane.xlu0 %986
        %988 = vmin.xlane.f32.xlu0 %v836
        %v989 = vpop.xlane.xlu0 %988
        %990 = vmin.xlane.f32.xlu0 %v841
        %v991 = vpop.xlane.xlu0 %990
        %992 = vmin.xlane.f32.xlu0 %v846
        %v993 = vpop.xlane.xlu0 %992
        %994 = vmin.xlane.f32.xlu0 %v851
        %v995 = vpop.xlane.xlu0 %994
        %996 = vmin.xlane.f32.xlu0 %v856
        %v997 = vpop.xlane.xlu0 %996
        %998 = vmin.xlane.f32.xlu0 %v861
        %v999 = vpop.xlane.xlu0 %998
        %1000 = vmin.xlane.f32.xlu0 %v866
        %v1001 = vpop.xlane.xlu0 %1000
        %1002 = vmin.xlane.f32.xlu0 %v871
        %v1003 = vpop.xlane.xlu0 %1002
        %1004 = vmin.xlane.f32.xlu0 %v876
        %v1005 = vpop.xlane.xlu0 %1004
        %1006 = vmin.xlane.f32.xlu0 %v881
        %v1007 = vpop.xlane.xlu0 %1006
        %1008 = vmin.xlane.f32.xlu0 %v886
        %v1009 = vpop.xlane.xlu0 %1008
        %1010 = vmin.xlane.f32.xlu0 %v891
        %v1011 = vpop.xlane.xlu0 %1010
        %1012 = vmin.xlane.f32.xlu0 %v896
        %v1013 = vpop.xlane.xlu0 %1012
        %1014 = vmin.xlane.f32.xlu0 %v901
        %v1015 = vpop.xlane.xlu0 %1014
        %1016 = vmin.xlane.f32.xlu0 %v906
        %v1017 = vpop.xlane.xlu0 %1016
        %1018 = vmin.xlane.f32.xlu0 %v911
        %v1019 = vpop.xlane.xlu0 %1018
        %1020 = vmin.xlane.f32.xlu0 %v916
        %v1021 = vpop.xlane.xlu0 %1020
        %1022 = vmin.xlane.f32.xlu0 %v921
        %v1023 = vpop.xlane.xlu0 %1022
        %1024 = vmin.xlane.f32.xlu0 %v926
        %v1025 = vpop.xlane.xlu0 %1024
        %1026 = vmin.xlane.f32.xlu0 %v931
        %v1027 = vpop.xlane.xlu0 %1026
        %1028 = vmin.xlane.f32.xlu0 %v936
        %v1029 = vpop.xlane.xlu0 %1028
        %1030 = vmin.xlane.f32.xlu0 %v941
        %v1031 = vpop.xlane.xlu0 %1030
        %1032 = vmin.xlane.f32.xlu0 %v946
        %v1033 = vpop.xlane.xlu0 %1032
        %1034 = vmin.xlane.f32.xlu0 %v951
        %v1035 = vpop.xlane.xlu0 %1034
        %1036 = vmin.xlane.f32.xlu0 %v956
        %v1037 = vpop.xlane.xlu0 %1036
        %1038 = vmin.xlane.f32.xlu0 %v961
        %v1039 = vpop.xlane.xlu0 %1038
        %1040 = vmin.xlane.f32.xlu0 %v966
        %v1041 = vpop.xlane.xlu0 %1040
        %1042 = vmin.xlane.f32.xlu0 %v971
        %v1043 = vpop.xlane.xlu0 %1042
        %1044 = vmin.xlane.f32.xlu0 %v976
        %v1045 = vpop.xlane.xlu0 %1044
        %1046 = vmin.xlane.f32.xlu0 %v981
        %v1047 = vpop.xlane.xlu0 %1046
        %v1048 = vld [vmem:[%s5] sm:$0x1]
        %vm1049 = vcmp.le.f32.partialorder %v826, %v985
        %vm1050 = vcmp.le.f32.partialorder %v831, %v987
        %vm1051 = vcmp.le.f32.partialorder %v836, %v989
        %vm1052 = vcmp.le.f32.partialorder %v841, %v991
        %vm1053 = vcmp.le.f32.partialorder %v846, %v993
        %vm1054 = vcmp.le.f32.partialorder %v851, %v995
        %vm1055 = vcmp.le.f32.partialorder %v856, %v997
        %vm1056 = vcmp.le.f32.partialorder %v861, %v999
        %vm1057 = vcmp.le.f32.partialorder %v866, %v1001
        %vm1058 = vcmp.le.f32.partialorder %v871, %v1003
        %vm1059 = vcmp.le.f32.partialorder %v876, %v1005
        %vm1060 = vcmp.le.f32.partialorder %v881, %v1007
        %vm1061 = vcmp.le.f32.partialorder %v886, %v1009
        %vm1062 = vcmp.le.f32.partialorder %v891, %v1011
        %vm1063 = vcmp.le.f32.partialorder %v896, %v1013
        %vm1064 = vcmp.le.f32.partialorder %v901, %v1015
        %vm1065 = vcmp.le.f32.partialorder %v906, %v1017
        %vm1066 = vcmp.le.f32.partialorder %v911, %v1019
        %vm1067 = vcmp.le.f32.partialorder %v916, %v1021
        %vm1068 = vcmp.le.f32.partialorder %v921, %v1023
        %vm1069 = vcmp.le.f32.partialorder %v926, %v1025
        %vm1070 = vcmp.le.f32.partialorder %v931, %v1027
        %vm1071 = vcmp.le.f32.partialorder %v936, %v1029
        %vm1072 = vcmp.le.f32.partialorder %v941, %v1031
        %vm1073 = vcmp.le.f32.partialorder %v946, %v1033
        %vm1074 = vcmp.le.f32.partialorder %v951, %v1035
        %vm1075 = vcmp.le.f32.partialorder %v956, %v1037
        %vm1076 = vcmp.le.f32.partialorder %v961, %v1039
        %vm1077 = vcmp.le.f32.partialorder %v966, %v1041
        %vm1078 = vcmp.le.f32.partialorder %v971, %v1043
        %vm1079 = vcmp.le.f32.partialorder %v976, %v1045
        %vm1080 = vcmp.le.f32.partialorder %v981, %v1047
        %v1082 = vlaneseq
        %v1083 = vshrl.u32 %v1082, 7
        %v1084 = vsub.s32 0, %v1083
        %v1085 = vrot.slane %v1048, %v1084
        %v1087 = vsel %vm1049, %v1085, 128.0
        %v1088 = vsel %vm1050, %v1085, 128.0
        %v1089 = vsel %vm1051, %v1085, 128.0
        %v1090 = vsel %vm1052, %v1085, 128.0
        %v1091 = vsel %vm1053, %v1085, 128.0
        %v1092 = vsel %vm1054, %v1085, 128.0
        %v1093 = vsel %vm1055, %v1085, 128.0
        %v1094 = vsel %vm1056, %v1085, 128.0
        %v1095 = vsel %vm1057, %v1085, 128.0
        %v1096 = vsel %vm1058, %v1085, 128.0
        %v1097 = vsel %vm1059, %v1085, 128.0
        %v1098 = vsel %vm1060, %v1085, 128.0
        %v1099 = vsel %vm1061, %v1085, 128.0
        %v1100 = vsel %vm1062, %v1085, 128.0
        %v1101 = vsel %vm1063, %v1085, 128.0
        %v1102 = vsel %vm1064, %v1085, 128.0
        %v1103 = vsel %vm1065, %v1085, 128.0
        %v1104 = vsel %vm1066, %v1085, 128.0
        %v1105 = vsel %vm1067, %v1085, 128.0
        %v1106 = vsel %vm1068, %v1085, 128.0
        %v1107 = vsel %vm1069, %v1085, 128.0
        %v1108 = vsel %vm1070, %v1085, 128.0
        %v1109 = vsel %vm1071, %v1085, 128.0
        %v1110 = vsel %vm1072, %v1085, 128.0
        %v1111 = vsel %vm1073, %v1085, 128.0
        %v1112 = vsel %vm1074, %v1085, 128.0
        %v1113 = vsel %vm1075, %v1085, 128.0
        %v1114 = vsel %vm1076, %v1085, 128.0
        %v1115 = vsel %vm1077, %v1085, 128.0
        %v1116 = vsel %vm1078, %v1085, 128.0
        %v1117 = vsel %vm1079, %v1085, 128.0
        %v1118 = vsel %vm1080, %v1085, 128.0
        %1119 = vmin.xlane.f32.xlu0 %v1087
        %v1120 = vpop.xlane.xlu0 %1119
        %1121 = vmin.xlane.f32.xlu0 %v1088
        %v1122 = vpop.xlane.xlu0 %1121
        %1123 = vmin.xlane.f32.xlu0 %v1089
        %v1124 = vpop.xlane.xlu0 %1123
        %1125 = vmin.xlane.f32.xlu0 %v1090
        %v1126 = vpop.xlane.xlu0 %1125
        %1127 = vmin.xlane.f32.xlu0 %v1091
        %v1128 = vpop.xlane.xlu0 %1127
        %1129 = vmin.xlane.f32.xlu0 %v1092
        %v1130 = vpop.xlane.xlu0 %1129
        %1131 = vmin.xlane.f32.xlu0 %v1093
        %v1132 = vpop.xlane.xlu0 %1131
        %1133 = vmin.xlane.f32.xlu0 %v1094
        %v1134 = vpop.xlane.xlu0 %1133
        %1135 = vmin.xlane.f32.xlu0 %v1095
        %v1136 = vpop.xlane.xlu0 %1135
        %1137 = vmin.xlane.f32.xlu0 %v1096
        %v1138 = vpop.xlane.xlu0 %1137
        %1139 = vmin.xlane.f32.xlu0 %v1097
        %v1140 = vpop.xlane.xlu0 %1139
        %1141 = vmin.xlane.f32.xlu0 %v1098
        %v1142 = vpop.xlane.xlu0 %1141
        %1143 = vmin.xlane.f32.xlu0 %v1099
        %v1144 = vpop.xlane.xlu0 %1143
        %1145 = vmin.xlane.f32.xlu0 %v1100
        %v1146 = vpop.xlane.xlu0 %1145
        %1147 = vmin.xlane.f32.xlu0 %v1101
        %v1148 = vpop.xlane.xlu0 %1147
        %1149 = vmin.xlane.f32.xlu0 %v1102
        %v1150 = vpop.xlane.xlu0 %1149
        %1151 = vmin.xlane.f32.xlu0 %v1103
        %v1152 = vpop.xlane.xlu0 %1151
        %1153 = vmin.xlane.f32.xlu0 %v1104
        %v1154 = vpop.xlane.xlu0 %1153
        %1155 = vmin.xlane.f32.xlu0 %v1105
        %v1156 = vpop.xlane.xlu0 %1155
        %1157 = vmin.xlane.f32.xlu0 %v1106
        %v1158 = vpop.xlane.xlu0 %1157
        %1159 = vmin.xlane.f32.xlu0 %v1107
        %v1160 = vpop.xlane.xlu0 %1159
        %1161 = vmin.xlane.f32.xlu0 %v1108
        %v1162 = vpop.xlane.xlu0 %1161
        %1163 = vmin.xlane.f32.xlu0 %v1109
        %v1164 = vpop.xlane.xlu0 %1163
        %1165 = vmin.xlane.f32.xlu0 %v1110
        %v1166 = vpop.xlane.xlu0 %1165
        %1167 = vmin.xlane.f32.xlu0 %v1111
        %v1168 = vpop.xlane.xlu0 %1167
        %1169 = vmin.xlane.f32.xlu0 %v1112
        %v1170 = vpop.xlane.xlu0 %1169
        %1171 = vmin.xlane.f32.xlu0 %v1113
        %v1172 = vpop.xlane.xlu0 %1171
        %1173 = vmin.xlane.f32.xlu0 %v1114
        %v1174 = vpop.xlane.xlu0 %1173
        %1175 = vmin.xlane.f32.xlu0 %v1115
        %v1176 = vpop.xlane.xlu0 %1175
        %1177 = vmin.xlane.f32.xlu0 %v1116
        %v1178 = vpop.xlane.xlu0 %1177
        %1179 = vmin.xlane.f32.xlu0 %v1117
        %v1180 = vpop.xlane.xlu0 %1179
        %1181 = vmin.xlane.f32.xlu0 %v1118
        %v1182 = vpop.xlane.xlu0 %1181
        %v1183 = vmul.f32 %v578, %v578
        %v1184 = vmul.f32 %v583, %v583
        %v1185 = vmul.f32 %v588, %v588
        %v1186 = vmul.f32 %v593, %v593
        %v1187 = vmul.f32 %v598, %v598
        %v1188 = vmul.f32 %v603, %v603
        %v1189 = vmul.f32 %v608, %v608
        %v1190 = vmul.f32 %v613, %v613
        %v1191 = vmul.f32 %v618, %v618
        %v1192 = vmul.f32 %v623, %v623
        %v1193 = vmul.f32 %v628, %v628
        %v1194 = vmul.f32 %v633, %v633
        %v1195 = vmul.f32 %v638, %v638
        %v1196 = vmul.f32 %v643, %v643
        %v1197 = vmul.f32 %v648, %v648
        %v1198 = vmul.f32 %v653, %v653
        %v1199 = vmul.f32 %v658, %v658
        %v1200 = vmul.f32 %v663, %v663
        %v1201 = vmul.f32 %v668, %v668
        %v1202 = vmul.f32 %v673, %v673
        %v1203 = vmul.f32 %v678, %v678
        %v1204 = vmul.f32 %v683, %v683
        %v1205 = vmul.f32 %v688, %v688
        %v1206 = vmul.f32 %v693, %v693
        %v1207 = vmul.f32 %v698, %v698
        %v1208 = vmul.f32 %v703, %v703
        %v1209 = vmul.f32 %v708, %v708
        %v1210 = vmul.f32 %v713, %v713
        %v1211 = vmul.f32 %v718, %v718
        %v1212 = vmul.f32 %v723, %v723
        %v1213 = vmul.f32 %v728, %v728
        %v1214 = vmul.f32 %v733, %v733
        %1215 = vadd.xlane.f32.xlu0 %v1183
        %v1216 = vpop.xlane.xlu0 %1215
        %1217 = vadd.xlane.f32.xlu0 %v1184
        %v1218 = vpop.xlane.xlu0 %1217
        %1219 = vadd.xlane.f32.xlu0 %v1185
        %v1220 = vpop.xlane.xlu0 %1219
        %1221 = vadd.xlane.f32.xlu0 %v1186
        %v1222 = vpop.xlane.xlu0 %1221
        %1223 = vadd.xlane.f32.xlu0 %v1187
        %v1224 = vpop.xlane.xlu0 %1223
        %1225 = vadd.xlane.f32.xlu0 %v1188
        %v1226 = vpop.xlane.xlu0 %1225
        %1227 = vadd.xlane.f32.xlu0 %v1189
        %v1228 = vpop.xlane.xlu0 %1227
        %1229 = vadd.xlane.f32.xlu0 %v1190
        %v1230 = vpop.xlane.xlu0 %1229
        %1231 = vadd.xlane.f32.xlu0 %v1191
        %v1232 = vpop.xlane.xlu0 %1231
        %1233 = vadd.xlane.f32.xlu0 %v1192
        %v1234 = vpop.xlane.xlu0 %1233
        %1235 = vadd.xlane.f32.xlu0 %v1193
        %v1236 = vpop.xlane.xlu0 %1235
        %1237 = vadd.xlane.f32.xlu0 %v1194
        %v1238 = vpop.xlane.xlu0 %1237
        %1239 = vadd.xlane.f32.xlu0 %v1195
        %v1240 = vpop.xlane.xlu0 %1239
        %1241 = vadd.xlane.f32.xlu0 %v1196
        %v1242 = vpop.xlane.xlu0 %1241
        %1243 = vadd.xlane.f32.xlu0 %v1197
        %v1244 = vpop.xlane.xlu0 %1243
        %1245 = vadd.xlane.f32.xlu0 %v1198
        %v1246 = vpop.xlane.xlu0 %1245
        %1247 = vadd.xlane.f32.xlu0 %v1199
        %v1248 = vpop.xlane.xlu0 %1247
        %1249 = vadd.xlane.f32.xlu0 %v1200
        %v1250 = vpop.xlane.xlu0 %1249
        %1251 = vadd.xlane.f32.xlu0 %v1201
        %v1252 = vpop.xlane.xlu0 %1251
        %1253 = vadd.xlane.f32.xlu0 %v1202
        %v1254 = vpop.xlane.xlu0 %1253
        %1255 = vadd.xlane.f32.xlu0 %v1203
        %v1256 = vpop.xlane.xlu0 %1255
        %1257 = vadd.xlane.f32.xlu0 %v1204
        %v1258 = vpop.xlane.xlu0 %1257
        %1259 = vadd.xlane.f32.xlu0 %v1205
        %v1260 = vpop.xlane.xlu0 %1259
        %1261 = vadd.xlane.f32.xlu0 %v1206
        %v1262 = vpop.xlane.xlu0 %1261
        %1263 = vadd.xlane.f32.xlu0 %v1207
        %v1264 = vpop.xlane.xlu0 %1263
        %1265 = vadd.xlane.f32.xlu0 %v1208
        %v1266 = vpop.xlane.xlu0 %1265
        %1267 = vadd.xlane.f32.xlu0 %v1209
        %v1268 = vpop.xlane.xlu0 %1267
        %1269 = vadd.xlane.f32.xlu0 %v1210
        %v1270 = vpop.xlane.xlu0 %1269
        %1271 = vadd.xlane.f32.xlu0 %v1211
        %v1272 = vpop.xlane.xlu0 %1271
        %1273 = vadd.xlane.f32.xlu0 %v1212
        %v1274 = vpop.xlane.xlu0 %1273
        %1275 = vadd.xlane.f32.xlu0 %v1213
        %v1276 = vpop.xlane.xlu0 %1275
        %1277 = vadd.xlane.f32.xlu0 %v1214
        %v1278 = vpop.xlane.xlu0 %1277
        %v1279 = vadd.f32 %v1216, %v985
        %v1280 = vadd.f32 %v1218, %v987
        %v1281 = vadd.f32 %v1220, %v989
        %v1282 = vadd.f32 %v1222, %v991
        %v1283 = vadd.f32 %v1224, %v993
        %v1284 = vadd.f32 %v1226, %v995
        %v1285 = vadd.f32 %v1228, %v997
        %v1286 = vadd.f32 %v1230, %v999
        %v1287 = vadd.f32 %v1232, %v1001
        %v1288 = vadd.f32 %v1234, %v1003
        %v1289 = vadd.f32 %v1236, %v1005
        %v1290 = vadd.f32 %v1238, %v1007
        %v1291 = vadd.f32 %v1240, %v1009
        %v1292 = vadd.f32 %v1242, %v1011
        %v1293 = vadd.f32 %v1244, %v1013
        %v1294 = vadd.f32 %v1246, %v1015
        %v1295 = vadd.f32 %v1248, %v1017
        %v1296 = vadd.f32 %v1250, %v1019
        %v1297 = vadd.f32 %v1252, %v1021
        %v1298 = vadd.f32 %v1254, %v1023
        %v1299 = vadd.f32 %v1256, %v1025
        %v1300 = vadd.f32 %v1258, %v1027
        %v1301 = vadd.f32 %v1260, %v1029
        %v1302 = vadd.f32 %v1262, %v1031
        %v1303 = vadd.f32 %v1264, %v1033
        %v1304 = vadd.f32 %v1266, %v1035
        %v1305 = vadd.f32 %v1268, %v1037
        %v1306 = vadd.f32 %v1270, %v1039
        %v1307 = vadd.f32 %v1272, %v1041
        %v1308 = vadd.f32 %v1274, %v1043
        %v1309 = vadd.f32 %v1276, %v1045
        %v1310 = vadd.f32 %v1278, %v1047
        %v1311 = vmax.f32 %v1279, 0.0
        %v1312 = vmax.f32 %v1280, 0.0
        %v1313 = vmax.f32 %v1281, 0.0
        %v1314 = vmax.f32 %v1282, 0.0
        %v1315 = vmax.f32 %v1283, 0.0
        %v1316 = vmax.f32 %v1284, 0.0
        %v1317 = vmax.f32 %v1285, 0.0
        %v1318 = vmax.f32 %v1286, 0.0
        %v1319 = vmax.f32 %v1287, 0.0
        %v1320 = vmax.f32 %v1288, 0.0
        %v1321 = vmax.f32 %v1289, 0.0
        %v1322 = vmax.f32 %v1290, 0.0
        %v1323 = vmax.f32 %v1291, 0.0
        %v1324 = vmax.f32 %v1292, 0.0
        %v1325 = vmax.f32 %v1293, 0.0
        %v1326 = vmax.f32 %v1294, 0.0
        %v1327 = vmax.f32 %v1295, 0.0
        %v1328 = vmax.f32 %v1296, 0.0
        %v1329 = vmax.f32 %v1297, 0.0
        %v1330 = vmax.f32 %v1298, 0.0
        %v1331 = vmax.f32 %v1299, 0.0
        %v1332 = vmax.f32 %v1300, 0.0
        %v1333 = vmax.f32 %v1301, 0.0
        %v1334 = vmax.f32 %v1302, 0.0
        %v1335 = vmax.f32 %v1303, 0.0
        %v1336 = vmax.f32 %v1304, 0.0
        %v1337 = vmax.f32 %v1305, 0.0
        %v1338 = vmax.f32 %v1306, 0.0
        %v1339 = vmax.f32 %v1307, 0.0
        %v1340 = vmax.f32 %v1308, 0.0
        %v1341 = vmax.f32 %v1309, 0.0
        %v1342 = vmax.f32 %v1310, 0.0
        %s1343 = smul.u32 %s33, 256
        %v1344 = vlaneseq
        %v1345 = vshrl.u32 %v1344, 7
        %v1346 = vadd.s32 %v1345, 8
        %v1347 = vadd.s32 %v1345, 16
        %v1348 = vadd.s32 %v1345, 24
        %v1349 = vadd.s32 %v1345, 32
        %v1350 = vadd.s32 %v1345, 40
        %v1351 = vadd.s32 %v1345, 48
        %v1352 = vadd.s32 %v1345, 56
        %v1353 = vadd.s32 %v1345, 64
        %v1354 = vadd.s32 %v1345, 72
        %v1355 = vadd.s32 %v1345, 80
        %v1356 = vadd.s32 %v1345, 88
        %v1357 = vadd.s32 %v1345, 96
        %v1358 = vadd.s32 %v1345, 104
        %v1359 = vadd.s32 %v1345, 112
        %v1360 = vadd.s32 %v1345, 120
        %v1361 = vadd.s32 %v1345, 128
        %v1362 = vadd.s32 %v1345, 136
        %v1363 = vadd.s32 %v1345, 144
        %v1364 = vadd.s32 %v1345, 152
        %v1365 = vadd.s32 %v1345, 160
        %v1366 = vadd.s32 %v1345, 168
        %v1367 = vadd.s32 %v1345, 176
        %v1368 = vadd.s32 %v1345, 184
        %v1369 = vadd.s32 %v1345, 192
        %v1370 = vadd.s32 %v1345, 200
        %v1371 = vadd.s32 %v1345, 208
        %v1372 = vadd.s32 %v1345, 216
        %v1373 = vadd.s32 %v1345, 224
        %v1374 = vadd.s32 %v1345, 232
        %v1375 = vadd.s32 %v1345, 240
        %v1376 = vadd.s32 %v1345, 248
        %v1377 = vstv %s1343
        %v1378 = vadd.s32 %v1377, %v1345
        %v1379 = vadd.s32 %v1377, %v1346
        %v1380 = vadd.s32 %v1377, %v1347
        %v1381 = vadd.s32 %v1377, %v1348
        %v1382 = vadd.s32 %v1377, %v1349
        %v1383 = vadd.s32 %v1377, %v1350
        %v1384 = vadd.s32 %v1377, %v1351
        %v1385 = vadd.s32 %v1377, %v1352
        %v1386 = vadd.s32 %v1377, %v1353
        %v1387 = vadd.s32 %v1377, %v1354
        %v1388 = vadd.s32 %v1377, %v1355
        %v1389 = vadd.s32 %v1377, %v1356
        %v1390 = vadd.s32 %v1377, %v1357
        %v1391 = vadd.s32 %v1377, %v1358
        %v1392 = vadd.s32 %v1377, %v1359
        %v1393 = vadd.s32 %v1377, %v1360
        %v1394 = vadd.s32 %v1377, %v1361
        %v1395 = vadd.s32 %v1377, %v1362
        %v1396 = vadd.s32 %v1377, %v1363
        %v1397 = vadd.s32 %v1377, %v1364
        %v1398 = vadd.s32 %v1377, %v1365
        %v1399 = vadd.s32 %v1377, %v1366
        %v1400 = vadd.s32 %v1377, %v1367
        %v1401 = vadd.s32 %v1377, %v1368
        %v1402 = vadd.s32 %v1377, %v1369
        %v1403 = vadd.s32 %v1377, %v1370
        %v1404 = vadd.s32 %v1377, %v1371
        %v1405 = vadd.s32 %v1377, %v1372
        %v1406 = vadd.s32 %v1377, %v1373
        %v1407 = vadd.s32 %v1377, %v1374
        %v1408 = vadd.s32 %v1377, %v1375
        %v1409 = vadd.s32 %v1377, %v1376
        %vm1410 = vcmp.lt.s32.totalorder %v1378, 400
        %vm1411 = vcmp.lt.s32.totalorder %v1379, 400
        %vm1412 = vcmp.lt.s32.totalorder %v1380, 400
        %vm1413 = vcmp.lt.s32.totalorder %v1381, 400
        %vm1414 = vcmp.lt.s32.totalorder %v1382, 400
        %vm1415 = vcmp.lt.s32.totalorder %v1383, 400
        %vm1416 = vcmp.lt.s32.totalorder %v1384, 400
        %vm1417 = vcmp.lt.s32.totalorder %v1385, 400
        %vm1418 = vcmp.lt.s32.totalorder %v1386, 400
        %vm1419 = vcmp.lt.s32.totalorder %v1387, 400
        %vm1420 = vcmp.lt.s32.totalorder %v1388, 400
        %vm1421 = vcmp.lt.s32.totalorder %v1389, 400
        %vm1422 = vcmp.lt.s32.totalorder %v1390, 400
        %vm1423 = vcmp.lt.s32.totalorder %v1391, 400
        %vm1424 = vcmp.lt.s32.totalorder %v1392, 400
        %vm1425 = vcmp.lt.s32.totalorder %v1393, 400
        %vm1426 = vcmp.lt.s32.totalorder %v1394, 400
        %vm1427 = vcmp.lt.s32.totalorder %v1395, 400
        %vm1428 = vcmp.lt.s32.totalorder %v1396, 400
        %vm1429 = vcmp.lt.s32.totalorder %v1397, 400
        %vm1430 = vcmp.lt.s32.totalorder %v1398, 400
        %vm1431 = vcmp.lt.s32.totalorder %v1399, 400
        %vm1432 = vcmp.lt.s32.totalorder %v1400, 400
        %vm1433 = vcmp.lt.s32.totalorder %v1401, 400
        %vm1434 = vcmp.lt.s32.totalorder %v1402, 400
        %vm1435 = vcmp.lt.s32.totalorder %v1403, 400
        %vm1436 = vcmp.lt.s32.totalorder %v1404, 400
        %vm1437 = vcmp.lt.s32.totalorder %v1405, 400
        %vm1438 = vcmp.lt.s32.totalorder %v1406, 400
        %vm1439 = vcmp.lt.s32.totalorder %v1407, 400
        %vm1440 = vcmp.lt.s32.totalorder %v1408, 400
        %vm1441 = vcmp.lt.s32.totalorder %v1409, 400
        %v1442 = vsel %vm1410, %v1311, 0.0
        %v1443 = vsel %vm1411, %v1312, 0.0
        %v1444 = vsel %vm1412, %v1313, 0.0
        %v1445 = vsel %vm1413, %v1314, 0.0
        %v1446 = vsel %vm1414, %v1315, 0.0
        %v1447 = vsel %vm1415, %v1316, 0.0
        %v1448 = vsel %vm1416, %v1317, 0.0
        %v1449 = vsel %vm1417, %v1318, 0.0
        %v1450 = vsel %vm1418, %v1319, 0.0
        %v1451 = vsel %vm1419, %v1320, 0.0
        %v1452 = vsel %vm1420, %v1321, 0.0
        %v1453 = vsel %vm1421, %v1322, 0.0
        %v1454 = vsel %vm1422, %v1323, 0.0
        %v1455 = vsel %vm1423, %v1324, 0.0
        %v1456 = vsel %vm1424, %v1325, 0.0
        %v1457 = vsel %vm1425, %v1326, 0.0
        %v1458 = vsel %vm1426, %v1327, 0.0
        %v1459 = vsel %vm1427, %v1328, 0.0
        %v1460 = vsel %vm1428, %v1329, 0.0
        %v1461 = vsel %vm1429, %v1330, 0.0
        %v1462 = vsel %vm1430, %v1331, 0.0
        %v1463 = vsel %vm1431, %v1332, 0.0
        %v1464 = vsel %vm1432, %v1333, 0.0
        %v1465 = vsel %vm1433, %v1334, 0.0
        %v1466 = vsel %vm1434, %v1335, 0.0
        %v1467 = vsel %vm1435, %v1336, 0.0
        %v1468 = vsel %vm1436, %v1337, 0.0
        %v1469 = vsel %vm1437, %v1338, 0.0
        %v1470 = vsel %vm1438, %v1339, 0.0
        %v1471 = vsel %vm1439, %v1340, 0.0
        %v1472 = vsel %vm1440, %v1341, 0.0
        %v1473 = vsel %vm1441, %v1342, 0.0
        %vm1474 = vcmp.eq.f32.partialorder %v1085, %v1120
        %vm1475 = vcmp.eq.f32.partialorder %v1085, %v1122
        %vm1476 = vcmp.eq.f32.partialorder %v1085, %v1124
        %vm1477 = vcmp.eq.f32.partialorder %v1085, %v1126
        %vm1478 = vcmp.eq.f32.partialorder %v1085, %v1128
        %vm1479 = vcmp.eq.f32.partialorder %v1085, %v1130
        %vm1480 = vcmp.eq.f32.partialorder %v1085, %v1132
        %vm1481 = vcmp.eq.f32.partialorder %v1085, %v1134
        %vm1482 = vcmp.eq.f32.partialorder %v1085, %v1136
        %vm1483 = vcmp.eq.f32.partialorder %v1085, %v1138
        %vm1484 = vcmp.eq.f32.partialorder %v1085, %v1140
        %vm1485 = vcmp.eq.f32.partialorder %v1085, %v1142
        %vm1486 = vcmp.eq.f32.partialorder %v1085, %v1144
        %vm1487 = vcmp.eq.f32.partialorder %v1085, %v1146
        %vm1488 = vcmp.eq.f32.partialorder %v1085, %v1148
        %vm1489 = vcmp.eq.f32.partialorder %v1085, %v1150
        %vm1490 = vcmp.eq.f32.partialorder %v1085, %v1152
        %vm1491 = vcmp.eq.f32.partialorder %v1085, %v1154
        %vm1492 = vcmp.eq.f32.partialorder %v1085, %v1156
        %vm1493 = vcmp.eq.f32.partialorder %v1085, %v1158
        %vm1494 = vcmp.eq.f32.partialorder %v1085, %v1160
        %vm1495 = vcmp.eq.f32.partialorder %v1085, %v1162
        %vm1496 = vcmp.eq.f32.partialorder %v1085, %v1164
        %vm1497 = vcmp.eq.f32.partialorder %v1085, %v1166
        %vm1498 = vcmp.eq.f32.partialorder %v1085, %v1168
        %vm1499 = vcmp.eq.f32.partialorder %v1085, %v1170
        %vm1500 = vcmp.eq.f32.partialorder %v1085, %v1172
        %vm1501 = vcmp.eq.f32.partialorder %v1085, %v1174
        %vm1502 = vcmp.eq.f32.partialorder %v1085, %v1176
        %vm1503 = vcmp.eq.f32.partialorder %v1085, %v1178
        %vm1504 = vcmp.eq.f32.partialorder %v1085, %v1180
        %vm1505 = vcmp.eq.f32.partialorder %v1085, %v1182
        %v1506 = vsel %vm1474, 1, 0
        %v1507 = vsel %vm1475, 1, 0
        %v1508 = vsel %vm1476, 1, 0
        %v1509 = vsel %vm1477, 1, 0
        %v1510 = vsel %vm1478, 1, 0
        %v1511 = vsel %vm1479, 1, 0
        %v1512 = vsel %vm1480, 1, 0
        %v1513 = vsel %vm1481, 1, 0
        %v1514 = vsel %vm1482, 1, 0
        %v1515 = vsel %vm1483, 1, 0
        %v1516 = vsel %vm1484, 1, 0
        %v1517 = vsel %vm1485, 1, 0
        %v1518 = vsel %vm1486, 1, 0
        %v1519 = vsel %vm1487, 1, 0
        %v1520 = vsel %vm1488, 1, 0
        %v1521 = vsel %vm1489, 1, 0
        %v1522 = vsel %vm1490, 1, 0
        %v1523 = vsel %vm1491, 1, 0
        %v1524 = vsel %vm1492, 1, 0
        %v1525 = vsel %vm1493, 1, 0
        %v1526 = vsel %vm1494, 1, 0
        %v1527 = vsel %vm1495, 1, 0
        %v1528 = vsel %vm1496, 1, 0
        %v1529 = vsel %vm1497, 1, 0
        %v1530 = vsel %vm1498, 1, 0
        %v1531 = vsel %vm1499, 1, 0
        %v1532 = vsel %vm1500, 1, 0
        %v1533 = vsel %vm1501, 1, 0
        %v1534 = vsel %vm1502, 1, 0
        %v1535 = vsel %vm1503, 1, 0
        %v1536 = vsel %vm1504, 1, 0
        %v1537 = vsel %vm1505, 1, 0
        %v1538 = vcvt.s32.f32 %v1506
        %v1539 = vcvt.s32.f32 %v1507
        %v1540 = vcvt.s32.f32 %v1508
        %v1541 = vcvt.s32.f32 %v1509
        %v1542 = vcvt.s32.f32 %v1510
        %v1543 = vcvt.s32.f32 %v1511
        %v1544 = vcvt.s32.f32 %v1512
        %v1545 = vcvt.s32.f32 %v1513
        %v1546 = vcvt.s32.f32 %v1514
        %v1547 = vcvt.s32.f32 %v1515
        %v1548 = vcvt.s32.f32 %v1516
        %v1549 = vcvt.s32.f32 %v1517
        %v1550 = vcvt.s32.f32 %v1518
        %v1551 = vcvt.s32.f32 %v1519
        %v1552 = vcvt.s32.f32 %v1520
        %v1553 = vcvt.s32.f32 %v1521
        %v1554 = vcvt.s32.f32 %v1522
        %v1555 = vcvt.s32.f32 %v1523
        %v1556 = vcvt.s32.f32 %v1524
        %v1557 = vcvt.s32.f32 %v1525
        %v1558 = vcvt.s32.f32 %v1526
        %v1559 = vcvt.s32.f32 %v1527
        %v1560 = vcvt.s32.f32 %v1528
        %v1561 = vcvt.s32.f32 %v1529
        %v1562 = vcvt.s32.f32 %v1530
        %v1563 = vcvt.s32.f32 %v1531
        %v1564 = vcvt.s32.f32 %v1532
        %v1565 = vcvt.s32.f32 %v1533
        %v1566 = vcvt.s32.f32 %v1534
        %v1567 = vcvt.s32.f32 %v1535
        %v1568 = vcvt.s32.f32 %v1536
        %v1569 = vcvt.s32.f32 %v1537
        %v1570 = vld [vmem:[#allocation8] sm:$0xff]
        %v1571 = vld [vmem:[#allocation8 + $0x8] sm:$0xff]
        %v1572 = vld [vmem:[#allocation8 + $0x10] sm:$0xff]
        %v1573 = vld [vmem:[#allocation8 + $0x18] sm:$0xff]
        %v1574 = vld [vmem:[#allocation8 + $0x20] sm:$0xff]
        %v1575 = vld [vmem:[#allocation8 + $0x28] sm:$0xff]
        %v1576 = vld [vmem:[#allocation8 + $0x30] sm:$0xff]
        %v1577 = vld [vmem:[#allocation8 + $0x38] sm:$0xff]
        %v1578 = vld [vmem:[#allocation8 + $0x40] sm:$0xff]
        %v1579 = vld [vmem:[#allocation8 + $0x48] sm:$0xff]
        %v1580 = vld [vmem:[#allocation8 + $0x50] sm:$0xff]
        %v1581 = vld [vmem:[#allocation8 + $0x58] sm:$0xff]
        %v1582 = vld [vmem:[#allocation8 + $0x60] sm:$0xff]
        %v1583 = vld [vmem:[#allocation8 + $0x68] sm:$0xff]
        %v1584 = vld [vmem:[#allocation8 + $0x70] sm:$0xff]
        %v1585 = vld [vmem:[#allocation8 + $0x78] sm:$0xff]
        %v1586 = vld [vmem:[%s7] sm:$0x1]
        %v1588 = vlaneseq
        %v1589 = vshrl.u32 %v1588, 7
        %v1590 = vsub.s32 0, %v1589
        %v1591 = vrot.slane %v1586, %v1590
        %1593 = vmatprep.subr.mxu0 0.0
        %1594 = vmatpush1.msra.mxu0 %v1570
        %1595 = vmatprep.subr.mxu0 0.0
        %1596 = vmatpush1.msra.mxu0 %v1571
        %1597 = vmatprep.subr.mxu0 0.0
        %1598 = vmatpush1.msra.mxu0 %v1572
        %1599 = vmatprep.subr.mxu0 0.0
        %1600 = vmatpush1.msra.mxu0 %v1573
        %1601 = vmatprep.subr.mxu0 0.0
        %1602 = vmatpush1.msra.mxu0 %v1574
        %1603 = vmatprep.subr.mxu0 0.0
        %1604 = vmatpush1.msra.mxu0 %v1575
        %1605 = vmatprep.subr.mxu0 0.0
        %1606 = vmatpush1.msra.mxu0 %v1576
        %1607 = vmatprep.subr.mxu0 0.0
        %1608 = vmatpush1.msra.mxu0 %v1577
        %1609 = vmatprep.subr.mxu0 0.0
        %1610 = vmatpush1.msra.mxu0 %v1578
        %1611 = vmatprep.subr.mxu0 0.0
        %1612 = vmatpush1.msra.mxu0 %v1579
        %1613 = vmatprep.subr.mxu0 0.0
        %1614 = vmatpush1.msra.mxu0 %v1580
        %1615 = vmatprep.subr.mxu0 0.0
        %1616 = vmatpush1.msra.mxu0 %v1581
        %1617 = vmatprep.subr.mxu0 0.0
        %1618 = vmatpush1.msra.mxu0 %v1582
        %1619 = vmatprep.subr.mxu0 0.0
        %1620 = vmatpush1.msra.mxu0 %v1583
        %1621 = vmatprep.subr.mxu0 0.0
        %1622 = vmatpush1.msra.mxu0 %v1584
        %1623 = vmatprep.subr.mxu0 0.0
        %1624 = vmatpush1.msra.mxu0 %v1585
        %1625 = vmatprep.subr.mxu0 0.0
        %1626 = vmatpush1.msra.mxu0 0.0
        %1627 = vmatprep.subr.mxu0 0.0
        %1628 = vmatpush1.msra.mxu0 0.0
        %1629 = vmatprep.subr.mxu0 0.0
        %1630 = vmatpush1.msra.mxu0 0.0
        %1631 = vmatprep.subr.mxu0 0.0
        %1632 = vmatpush1.msra.mxu0 0.0
        %1633 = vmatprep.subr.mxu0 0.0
        %1634 = vmatpush1.msra.mxu0 0.0
        %1635 = vmatprep.subr.mxu0 0.0
        %1636 = vmatpush1.msra.mxu0 0.0
        %1637 = vmatprep.subr.mxu0 0.0
        %1638 = vmatpush1.msra.mxu0 0.0
        %1639 = vmatprep.subr.mxu0 0.0
        %1640 = vmatpush1.msra.mxu0 0.0
        %1641 = vmatprep.subr.mxu0 0.0
        %1642 = vmatpush1.msra.mxu0 0.0
        %1643 = vmatprep.subr.mxu0 0.0
        %1644 = vmatpush1.msra.mxu0 0.0
        %1645 = vmatprep.subr.mxu0 0.0
        %1646 = vmatpush1.msra.mxu0 0.0
        %1647 = vmatprep.subr.mxu0 0.0
        %1648 = vmatpush1.msra.mxu0 0.0
        %1649 = vmatprep.subr.mxu0 0.0
        %1650 = vmatpush1.msra.mxu0 0.0
        %1651 = vmatprep.subr.mxu0 0.0
        %1652 = vmatpush1.msra.mxu0 0.0
        %1653 = vmatprep.subr.mxu0 0.0
        %1654 = vmatpush1.msra.mxu0 0.0
        %1655 = vmatprep.subr.mxu0 0.0
        %1656 = vmatpush1.msra.mxu0 0.0
        %1657 = vmatprep.mubr.f32.mxu0 0.0
        %1658 = vmatmul.mubr.f32.gmra.mrb[0].mxu0 %v1538
        %v1659 = vpop.f32.mrb[0].mxu0
        %v1660 = vadd.f32 %v1591, %v1659
        %v1661 = vpop.f32.mrb[0].mxu0
        %1662 = vmatprep.mubr.f32.mxu0 0.0
        %1663 = vmatmul.mubr.f32.gmra.mrb[0].mxu0 %v1539
        %v1664 = vpop.f32.mrb[0].mxu0
        %v1665 = vadd.f32 %v1591, %v1664
        %v1666 = vpop.f32.mrb[0].mxu0
        %1667 = vmatprep.mubr.f32.mxu0 0.0
        %1668 = vmatmul.mubr.f32.gmra.mrb[0].mxu0 %v1540
        %v1669 = vpop.f32.mrb[0].mxu0
        %v1670 = vadd.f32 %v1591, %v1669
        %v1671 = vpop.f32.mrb[0].mxu0
        %1672 = vmatprep.mubr.f32.mxu0 0.0
        %1673 = vmatmul.mubr.f32.gmra.mrb[0].mxu0 %v1541
        %v1674 = vpop.f32.mrb[0].mxu0
        %v1675 = vadd.f32 %v1591, %v1674
        %v1676 = vpop.f32.mrb[0].mxu0
        %1677 = vmatprep.mubr.f32.mxu0 0.0
        %1678 = vmatmul.mubr.f32.gmra.mrb[0].mxu0 %v1542
        %v1679 = vpop.f32.mrb[0].mxu0
        %v1680 = vadd.f32 %v1591, %v1679
        %v1681 = vpop.f32.mrb[0].mxu0
        %1682 = vmatprep.mubr.f32.mxu0 0.0
        %1683 = vmatmul.mubr.f32.gmra.mrb[0].mxu0 %v1543
        %v1684 = vpop.f32.mrb[0].mxu0
        %v1685 = vadd.f32 %v1591, %v1684
        %v1686 = vpop.f32.mrb[0].mxu0
        %1687 = vmatprep.mubr.f32.mxu0 0.0
        %1688 = vmatmul.mubr.f32.gmra.mrb[0].mxu0 %v1544
        %v1689 = vpop.f32.mrb[0].mxu0
        %v1690 = vadd.f32 %v1591, %v1689
        %v1691 = vpop.f32.mrb[0].mxu0
        %1692 = vmatprep.mubr.f32.mxu0 0.0
        %1693 = vmatmul.mubr.f32.gmra.mrb[0].mxu0 %v1545
        %v1694 = vpop.f32.mrb[0].mxu0
        %v1695 = vadd.f32 %v1591, %v1694
        %v1696 = vpop.f32.mrb[0].mxu0
        %1697 = vmatprep.mubr.f32.mxu0 0.0
        %1698 = vmatmul.mubr.f32.gmra.mrb[0].mxu0 %v1546
        %v1699 = vpop.f32.mrb[0].mxu0
        %v1700 = vadd.f32 %v1591, %v1699
        %v1701 = vpop.f32.mrb[0].mxu0
        %1702 = vmatprep.mubr.f32.mxu0 0.0
        %1703 = vmatmul.mubr.f32.gmra.mrb[0].mxu0 %v1547
        %v1704 = vpop.f32.mrb[0].mxu0
        %v1705 = vadd.f32 %v1591, %v1704
        %v1706 = vpop.f32.mrb[0].mxu0
        %1707 = vmatprep.mubr.f32.mxu0 0.0
        %1708 = vmatmul.mubr.f32.gmra.mrb[0].mxu0 %v1548
        %v1709 = vpop.f32.mrb[0].mxu0
        %v1710 = vadd.f32 %v1591, %v1709
        %v1711 = vpop.f32.mrb[0].mxu0
        %1712 = vmatprep.mubr.f32.mxu0 0.0
        %1713 = vmatmul.mubr.f32.gmra.mrb[0].mxu0 %v1549
        %v1714 = vpop.f32.mrb[0].mxu0
        %v1715 = vadd.f32 %v1591, %v1714
        %v1716 = vpop.f32.mrb[0].mxu0
        %1717 = vmatprep.mubr.f32.mxu0 0.0
        %1718 = vmatmul.mubr.f32.gmra.mrb[0].mxu0 %v1550
        %v1719 = vpop.f32.mrb[0].mxu0
        %v1720 = vadd.f32 %v1591, %v1719
        %v1721 = vpop.f32.mrb[0].mxu0
        %1722 = vmatprep.mubr.f32.mxu0 0.0
        %1723 = vmatmul.mubr.f32.gmra.mrb[0].mxu0 %v1551
        %v1724 = vpop.f32.mrb[0].mxu0
        %v1725 = vadd.f32 %v1591, %v1724
        %v1726 = vpop.f32.mrb[0].mxu0
        %1727 = vmatprep.mubr.f32.mxu0 0.0
        %1728 = vmatmul.mubr.f32.gmra.mrb[0].mxu0 %v1552
        %v1729 = vpop.f32.mrb[0].mxu0
        %v1730 = vadd.f32 %v1591, %v1729
        %v1731 = vpop.f32.mrb[0].mxu0
        %1732 = vmatprep.mubr.f32.mxu0 0.0
        %1733 = vmatmul.mubr.f32.gmra.mrb[0].mxu0 %v1553
        %v1734 = vpop.f32.mrb[0].mxu0
        %v1735 = vadd.f32 %v1591, %v1734
        %v1736 = vpop.f32.mrb[0].mxu0
        %1737 = vmatprep.mubr.f32.mxu0 0.0
        %1738 = vmatmul.mubr.f32.gmra.mrb[0].mxu0 %v1554
        %v1739 = vpop.f32.mrb[0].mxu0
        %v1740 = vadd.f32 %v1591, %v1739
        %v1741 = vpop.f32.mrb[0].mxu0
        %1742 = vmatprep.mubr.f32.mxu0 0.0
        %1743 = vmatmul.mubr.f32.gmra.mrb[0].mxu0 %v1555
        %v1744 = vpop.f32.mrb[0].mxu0
        %v1745 = vadd.f32 %v1591, %v1744
        %v1746 = vpop.f32.mrb[0].mxu0
        %1747 = vmatprep.mubr.f32.mxu0 0.0
        %1748 = vmatmul.mubr.f32.gmra.mrb[0].mxu0 %v1556
        %v1749 = vpop.f32.mrb[0].mxu0
        %v1750 = vadd.f32 %v1591, %v1749
        %v1751 = vpop.f32.mrb[0].mxu0
        %1752 = vmatprep.mubr.f32.mxu0 0.0
        %1753 = vmatmul.mubr.f32.gmra.mrb[0].mxu0 %v1557
        %v1754 = vpop.f32.mrb[0].mxu0
        %v1755 = vadd.f32 %v1591, %v1754
        %v1756 = vpop.f32.mrb[0].mxu0
        %1757 = vmatprep.mubr.f32.mxu0 0.0
        %1758 = vmatmul.mubr.f32.gmra.mrb[0].mxu0 %v1558
        %v1759 = vpop.f32.mrb[0].mxu0
        %v1760 = vadd.f32 %v1591, %v1759
        %v1761 = vpop.f32.mrb[0].mxu0
        %1762 = vmatprep.mubr.f32.mxu0 0.0
        %1763 = vmatmul.mubr.f32.gmra.mrb[0].mxu0 %v1559
        %v1764 = vpop.f32.mrb[0].mxu0
        %v1765 = vadd.f32 %v1591, %v1764
        %v1766 = vpop.f32.mrb[0].mxu0
        %1767 = vmatprep.mubr.f32.mxu0 0.0
        %1768 = vmatmul.mubr.f32.gmra.mrb[0].mxu0 %v1560
        %v1769 = vpop.f32.mrb[0].mxu0
        %v1770 = vadd.f32 %v1591, %v1769
        %v1771 = vpop.f32.mrb[0].mxu0
        %1772 = vmatprep.mubr.f32.mxu0 0.0
        %1773 = vmatmul.mubr.f32.gmra.mrb[0].mxu0 %v1561
        %v1774 = vpop.f32.mrb[0].mxu0
        %v1775 = vadd.f32 %v1591, %v1774
        %v1776 = vpop.f32.mrb[0].mxu0
        %1777 = vmatprep.mubr.f32.mxu0 0.0
        %1778 = vmatmul.mubr.f32.gmra.mrb[0].mxu0 %v1562
        %v1779 = vpop.f32.mrb[0].mxu0
        %v1780 = vadd.f32 %v1591, %v1779
        %v1781 = vpop.f32.mrb[0].mxu0
        %1782 = vmatprep.mubr.f32.mxu0 0.0
        %1783 = vmatmul.mubr.f32.gmra.mrb[0].mxu0 %v1563
        %v1784 = vpop.f32.mrb[0].mxu0
        %v1785 = vadd.f32 %v1591, %v1784
        %v1786 = vpop.f32.mrb[0].mxu0
        %1787 = vmatprep.mubr.f32.mxu0 0.0
        %1788 = vmatmul.mubr.f32.gmra.mrb[0].mxu0 %v1564
        %v1789 = vpop.f32.mrb[0].mxu0
        %v1790 = vadd.f32 %v1591, %v1789
        %v1791 = vpop.f32.mrb[0].mxu0
        %1792 = vmatprep.mubr.f32.mxu0 0.0
        %1793 = vmatmul.mubr.f32.gmra.mrb[0].mxu0 %v1565
        %v1794 = vpop.f32.mrb[0].mxu0
        %v1795 = vadd.f32 %v1591, %v1794
        %v1796 = vpop.f32.mrb[0].mxu0
        %1797 = vmatprep.mubr.f32.mxu0 0.0
        %1798 = vmatmul.mubr.f32.gmra.mrb[0].mxu0 %v1566
        %v1799 = vpop.f32.mrb[0].mxu0
        %v1800 = vadd.f32 %v1591, %v1799
        %v1801 = vpop.f32.mrb[0].mxu0
        %1802 = vmatprep.mubr.f32.mxu0 0.0
        %1803 = vmatmul.mubr.f32.gmra.mrb[0].mxu0 %v1567
        %v1804 = vpop.f32.mrb[0].mxu0
        %v1805 = vadd.f32 %v1591, %v1804
        %v1806 = vpop.f32.mrb[0].mxu0
        %1807 = vmatprep.mubr.f32.mxu0 0.0
        %1808 = vmatmul.mubr.f32.gmra.mrb[0].mxu0 %v1568
        %v1809 = vpop.f32.mrb[0].mxu0
        %v1810 = vadd.f32 %v1591, %v1809
        %v1811 = vpop.f32.mrb[0].mxu0
        %1812 = vmatprep.mubr.f32.mxu0 0.0
        %1813 = vmatmul.mubr.f32.gmra.mrb[0].mxu0 %v1569
        %v1814 = vpop.f32.mrb[0].mxu0
        %v1815 = vadd.f32 %v1591, %v1814
        %v1816 = vpop.f32.mrb[0].mxu0
        %1817 = vdwg.mxu0
        %1818 = vst [vmem:[%s431] sm:$0xff] %v1660
        %1819 = vst [vmem:[%s431 + $0x8] sm:$0xff] %v1665
        %1820 = vst [vmem:[%s431 + $0x10] sm:$0xff] %v1670
        %1821 = vst [vmem:[%s431 + $0x18] sm:$0xff] %v1675
        %1822 = vst [vmem:[%s431 + $0x20] sm:$0xff] %v1680
        %1823 = vst [vmem:[%s431 + $0x28] sm:$0xff] %v1685
        %1824 = vst [vmem:[%s431 + $0x30] sm:$0xff] %v1690
        %1825 = vst [vmem:[%s431 + $0x38] sm:$0xff] %v1695
        %1826 = vst [vmem:[%s431 + $0x40] sm:$0xff] %v1700
        %1827 = vst [vmem:[%s431 + $0x48] sm:$0xff] %v1705
        %1828 = vst [vmem:[%s431 + $0x50] sm:$0xff] %v1710
        %1829 = vst [vmem:[%s431 + $0x58] sm:$0xff] %v1715
        %1830 = vst [vmem:[%s431 + $0x60] sm:$0xff] %v1720
        %1831 = vst [vmem:[%s431 + $0x68] sm:$0xff] %v1725
        %1832 = vst [vmem:[%s431 + $0x70] sm:$0xff] %v1730
        %1833 = vst [vmem:[%s431 + $0x78] sm:$0xff] %v1735
        %1834 = vst [vmem:[%s431 + $0x80] sm:$0xff] %v1740
        %1835 = vst [vmem:[%s431 + $0x88] sm:$0xff] %v1745
        %1836 = vst [vmem:[%s431 + $0x90] sm:$0xff] %v1750
        %1837 = vst [vmem:[%s431 + $0x98] sm:$0xff] %v1755
        %1838 = vst [vmem:[%s431 + $0xa0] sm:$0xff] %v1760
        %1839 = vst [vmem:[%s431 + $0xa8] sm:$0xff] %v1765
        %1840 = vst [vmem:[%s431 + $0xb0] sm:$0xff] %v1770
        %1841 = vst [vmem:[%s431 + $0xb8] sm:$0xff] %v1775
        %1842 = vst [vmem:[%s431 + $0xc0] sm:$0xff] %v1780
        %1843 = vst [vmem:[%s431 + $0xc8] sm:$0xff] %v1785
        %1844 = vst [vmem:[%s431 + $0xd0] sm:$0xff] %v1790
        %1845 = vst [vmem:[%s431 + $0xd8] sm:$0xff] %v1795
        %1846 = vst [vmem:[%s431 + $0xe0] sm:$0xff] %v1800
        %1847 = vst [vmem:[%s431 + $0xe8] sm:$0xff] %v1805
        %1848 = vst [vmem:[%s431 + $0xf0] sm:$0xff] %v1810
        %1849 = vst [vmem:[%s431 + $0xf8] sm:$0xff] %v1815
        %v1850 = vcvt.f32.s32.to.zero.pseudo %v1120
        %v1851 = vcvt.f32.s32.to.zero.pseudo %v1122
        %v1852 = vcvt.f32.s32.to.zero.pseudo %v1124
        %v1853 = vcvt.f32.s32.to.zero.pseudo %v1126
        %v1854 = vcvt.f32.s32.to.zero.pseudo %v1128
        %v1855 = vcvt.f32.s32.to.zero.pseudo %v1130
        %v1856 = vcvt.f32.s32.to.zero.pseudo %v1132
        %v1857 = vcvt.f32.s32.to.zero.pseudo %v1134
        %v1858 = vcvt.f32.s32.to.zero.pseudo %v1136
        %v1859 = vcvt.f32.s32.to.zero.pseudo %v1138
        %v1860 = vcvt.f32.s32.to.zero.pseudo %v1140
        %v1861 = vcvt.f32.s32.to.zero.pseudo %v1142
        %v1862 = vcvt.f32.s32.to.zero.pseudo %v1144
        %v1863 = vcvt.f32.s32.to.zero.pseudo %v1146
        %v1864 = vcvt.f32.s32.to.zero.pseudo %v1148
        %v1865 = vcvt.f32.s32.to.zero.pseudo %v1150
        %v1866 = vcvt.f32.s32.to.zero.pseudo %v1152
        %v1867 = vcvt.f32.s32.to.zero.pseudo %v1154
        %v1868 = vcvt.f32.s32.to.zero.pseudo %v1156
        %v1869 = vcvt.f32.s32.to.zero.pseudo %v1158
        %v1870 = vcvt.f32.s32.to.zero.pseudo %v1160
        %v1871 = vcvt.f32.s32.to.zero.pseudo %v1162
        %v1872 = vcvt.f32.s32.to.zero.pseudo %v1164
        %v1873 = vcvt.f32.s32.to.zero.pseudo %v1166
        %v1874 = vcvt.f32.s32.to.zero.pseudo %v1168
        %v1875 = vcvt.f32.s32.to.zero.pseudo %v1170
        %v1876 = vcvt.f32.s32.to.zero.pseudo %v1172
        %v1877 = vcvt.f32.s32.to.zero.pseudo %v1174
        %v1878 = vcvt.f32.s32.to.zero.pseudo %v1176
        %v1879 = vcvt.f32.s32.to.zero.pseudo %v1178
        %v1880 = vcvt.f32.s32.to.zero.pseudo %v1180
        %v1881 = vcvt.f32.s32.to.zero.pseudo %v1182
        %v1882 = vlaneseq
        %v1883 = vand.u32 %v1882, 127
        %v1884 = vlaneseq
        %v1885 = vshrl.u32 %v1884, 7
        %v1886 = vsub.s32 %v1883, %v1885
        %v1887 = vrot.slane %v1850, %v1886
        %v1888 = vadd.s32 %v1883, 4294967288
        %v1889 = vlaneseq
        %v1890 = vshrl.u32 %v1889, 7
        %v1891 = vsub.s32 %v1888, %v1890
        %v1892 = vrot.slane %v1851, %v1891
        %vm1893 = vcmask 130112
        %v1894 = vsel %vm1893, %v1892, %v1887
        %v1895 = vadd.s32 %v1883, 4294967280
        %v1896 = vlaneseq
        %v1897 = vshrl.u32 %v1896, 7
        %v1898 = vsub.s32 %v1895, %v1897
        %v1899 = vrot.slane %v1852, %v1898
        %vm1900 = vcmask 195712
        %v1901 = vsel %vm1900, %v1899, %v1894
        %v1902 = vadd.s32 %v1883, 4294967272
        %v1903 = vlaneseq
        %v1904 = vshrl.u32 %v1903, 7
        %v1905 = vsub.s32 %v1902, %v1904
        %v1906 = vrot.slane %v1853, %v1905
        %vm1907 = vcmask 261312
        %v1908 = vsel %vm1907, %v1906, %v1901
        %v1909 = vadd.s32 %v1883, 4294967264
        %v1910 = vlaneseq
        %v1911 = vshrl.u32 %v1910, 7
        %v1912 = vsub.s32 %v1909, %v1911
        %v1913 = vrot.slane %v1854, %v1912
        %vm1914 = vcmask 326912
        %v1915 = vsel %vm1914, %v1913, %v1908
        %v1916 = vadd.s32 %v1883, 4294967256
        %v1917 = vlaneseq
        %v1918 = vshrl.u32 %v1917, 7
        %v1919 = vsub.s32 %v1916, %v1918
        %v1920 = vrot.slane %v1855, %v1919
        %vm1921 = vcmask 392512
        %v1922 = vsel %vm1921, %v1920, %v1915
        %v1923 = vadd.s32 %v1883, 4294967248
        %v1924 = vlaneseq
        %v1925 = vshrl.u32 %v1924, 7
        %v1926 = vsub.s32 %v1923, %v1925
        %v1927 = vrot.slane %v1856, %v1926
        %vm1928 = vcmask 458112
        %v1929 = vsel %vm1928, %v1927, %v1922
        %v1930 = vadd.s32 %v1883, 4294967240
        %v1931 = vlaneseq
        %v1932 = vshrl.u32 %v1931, 7
        %v1933 = vsub.s32 %v1930, %v1932
        %v1934 = vrot.slane %v1857, %v1933
        %vm1935 = vcmask 523712
        %v1936 = vsel %vm1935, %v1934, %v1929
        %v1937 = vadd.s32 %v1883, 4294967232
        %v1938 = vlaneseq
        %v1939 = vshrl.u32 %v1938, 7
        %v1940 = vsub.s32 %v1937, %v1939
        %v1941 = vrot.slane %v1858, %v1940
        %vm1942 = vcmask 589312
        %v1943 = vsel %vm1942, %v1941, %v1936
        %v1944 = vadd.s32 %v1883, 4294967224
        %v1945 = vlaneseq
        %v1946 = vshrl.u32 %v1945, 7
        %v1947 = vsub.s32 %v1944, %v1946
        %v1948 = vrot.slane %v1859, %v1947
        %vm1949 = vcmask 654912
        %v1950 = vsel %vm1949, %v1948, %v1943
        %v1951 = vadd.s32 %v1883, 4294967216
        %v1952 = vlaneseq
        %v1953 = vshrl.u32 %v1952, 7
        %v1954 = vsub.s32 %v1951, %v1953
        %v1955 = vrot.slane %v1860, %v1954
        %vm1956 = vcmask 720512
        %v1957 = vsel %vm1956, %v1955, %v1950
        %v1958 = vadd.s32 %v1883, 4294967208
        %v1959 = vlaneseq
        %v1960 = vshrl.u32 %v1959, 7
        %v1961 = vsub.s32 %v1958, %v1960
        %v1962 = vrot.slane %v1861, %v1961
        %vm1963 = vcmask 786112
        %v1964 = vsel %vm1963, %v1962, %v1957
        %v1965 = vadd.s32 %v1883, 4294967200
        %v1966 = vlaneseq
        %v1967 = vshrl.u32 %v1966, 7
        %v1968 = vsub.s32 %v1965, %v1967
        %v1969 = vrot.slane %v1862, %v1968
        %vm1970 = vcmask 851712
        %v1971 = vsel %vm1970, %v1969, %v1964
        %v1972 = vadd.s32 %v1883, 4294967192
        %v1973 = vlaneseq
        %v1974 = vshrl.u32 %v1973, 7
        %v1975 = vsub.s32 %v1972, %v1974
        %v1976 = vrot.slane %v1863, %v1975
        %vm1977 = vcmask 917312
        %v1978 = vsel %vm1977, %v1976, %v1971
        %v1979 = vadd.s32 %v1883, 4294967184
        %v1980 = vlaneseq
        %v1981 = vshrl.u32 %v1980, 7
        %v1982 = vsub.s32 %v1979, %v1981
        %v1983 = vrot.slane %v1864, %v1982
        %vm1984 = vcmask 982912
        %v1985 = vsel %vm1984, %v1983, %v1978
        %v1986 = vadd.s32 %v1883, 4294967176
        %v1987 = vlaneseq
        %v1988 = vshrl.u32 %v1987, 7
        %v1989 = vsub.s32 %v1986, %v1988
        %v1990 = vrot.slane %v1865, %v1989
        %vm1991 = vcmask 1048512
        %v1992 = vsel %vm1991, %v1990, %v1985
        %v1993 = vlaneseq
        %v1994 = vshrl.u32 %v1993, 7
        %v1995 = vsub.s32 %v1883, %v1994
        %v1996 = vrot.slane %v1866, %v1995
        %v1997 = vlaneseq
        %v1998 = vshrl.u32 %v1997, 7
        %v1999 = vsub.s32 %v1888, %v1998
        %v2000 = vrot.slane %v1867, %v1999
        %v2001 = vsel %vm1893, %v2000, %v1996
        %v2002 = vlaneseq
        %v2003 = vshrl.u32 %v2002, 7
        %v2004 = vsub.s32 %v1895, %v2003
        %v2005 = vrot.slane %v1868, %v2004
        %v2006 = vsel %vm1900, %v2005, %v2001
        %v2007 = vlaneseq
        %v2008 = vshrl.u32 %v2007, 7
        %v2009 = vsub.s32 %v1902, %v2008
        %v2010 = vrot.slane %v1869, %v2009
        %v2011 = vsel %vm1907, %v2010, %v2006
        %v2012 = vlaneseq
        %v2013 = vshrl.u32 %v2012, 7
        %v2014 = vsub.s32 %v1909, %v2013
        %v2015 = vrot.slane %v1870, %v2014
        %v2016 = vsel %vm1914, %v2015, %v2011
        %v2017 = vlaneseq
        %v2018 = vshrl.u32 %v2017, 7
        %v2019 = vsub.s32 %v1916, %v2018
        %v2020 = vrot.slane %v1871, %v2019
        %v2021 = vsel %vm1921, %v2020, %v2016
        %v2022 = vlaneseq
        %v2023 = vshrl.u32 %v2022, 7
        %v2024 = vsub.s32 %v1923, %v2023
        %v2025 = vrot.slane %v1872, %v2024
        %v2026 = vsel %vm1928, %v2025, %v2021
        %v2027 = vlaneseq
        %v2028 = vshrl.u32 %v2027, 7
        %v2029 = vsub.s32 %v1930, %v2028
        %v2030 = vrot.slane %v1873, %v2029
        %v2031 = vsel %vm1935, %v2030, %v2026
        %v2032 = vlaneseq
        %v2033 = vshrl.u32 %v2032, 7
        %v2034 = vsub.s32 %v1937, %v2033
        %v2035 = vrot.slane %v1874, %v2034
        %v2036 = vsel %vm1942, %v2035, %v2031
        %v2037 = vlaneseq
        %v2038 = vshrl.u32 %v2037, 7
        %v2039 = vsub.s32 %v1944, %v2038
        %v2040 = vrot.slane %v1875, %v2039
        %v2041 = vsel %vm1949, %v2040, %v2036
        %v2042 = vlaneseq
        %v2043 = vshrl.u32 %v2042, 7
        %v2044 = vsub.s32 %v1951, %v2043
        %v2045 = vrot.slane %v1876, %v2044
        %v2046 = vsel %vm1956, %v2045, %v2041
        %v2047 = vlaneseq
        %v2048 = vshrl.u32 %v2047, 7
        %v2049 = vsub.s32 %v1958, %v2048
        %v2050 = vrot.slane %v1877, %v2049
        %v2051 = vsel %vm1963, %v2050, %v2046
        %v2052 = vlaneseq
        %v2053 = vshrl.u32 %v2052, 7
        %v2054 = vsub.s32 %v1965, %v2053
        %v2055 = vrot.slane %v1878, %v2054
        %v2056 = vsel %vm1970, %v2055, %v2051
        %v2057 = vlaneseq
        %v2058 = vshrl.u32 %v2057, 7
        %v2059 = vsub.s32 %v1972, %v2058
        %v2060 = vrot.slane %v1879, %v2059
        %v2061 = vsel %vm1977, %v2060, %v2056
        %v2062 = vlaneseq
        %v2063 = vshrl.u32 %v2062, 7
        %v2064 = vsub.s32 %v1979, %v2063
        %v2065 = vrot.slane %v1880, %v2064
        %v2066 = vsel %vm1984, %v2065, %v2061
        %v2067 = vlaneseq
        %v2068 = vshrl.u32 %v2067, 7
        %v2069 = vsub.s32 %v1986, %v2068
        %v2070 = vrot.slane %v1881, %v2069
        %v2071 = vsel %vm1991, %v2070, %v2066
        %vm2072 = vcmask 1041409
        %v2073 = vsel %vm2072, %v2071, %v1992
        %2074 = vst [vmem:[%s438] sm:$0x3] %v2073
        %v2107 = vlaneseq
        %v2108 = vshrl.u32 %v2107, 7
        %v2109 = vsub.s32 %v1883, %v2108
        %v2110 = vrot.slane %v1442, %v2109
        %v2111 = vlaneseq
        %v2112 = vshrl.u32 %v2111, 7
        %v2113 = vsub.s32 %v1888, %v2112
        %v2114 = vrot.slane %v1443, %v2113
        %v2115 = vsel %vm1893, %v2114, %v2110
        %v2116 = vlaneseq
        %v2117 = vshrl.u32 %v2116, 7
        %v2118 = vsub.s32 %v1895, %v2117
        %v2119 = vrot.slane %v1444, %v2118
        %v2120 = vsel %vm1900, %v2119, %v2115
        %v2121 = vlaneseq
        %v2122 = vshrl.u32 %v2121, 7
        %v2123 = vsub.s32 %v1902, %v2122
        %v2124 = vrot.slane %v1445, %v2123
        %v2125 = vsel %vm1907, %v2124, %v2120
        %v2126 = vlaneseq
        %v2127 = vshrl.u32 %v2126, 7
        %v2128 = vsub.s32 %v1909, %v2127
        %v2129 = vrot.slane %v1446, %v2128
        %v2130 = vsel %vm1914, %v2129, %v2125
        %v2131 = vlaneseq
        %v2132 = vshrl.u32 %v2131, 7
        %v2133 = vsub.s32 %v1916, %v2132
        %v2134 = vrot.slane %v1447, %v2133
        %v2135 = vsel %vm1921, %v2134, %v2130
        %v2136 = vlaneseq
        %v2137 = vshrl.u32 %v2136, 7
        %v2138 = vsub.s32 %v1923, %v2137
        %v2139 = vrot.slane %v1448, %v2138
        %v2140 = vsel %vm1928, %v2139, %v2135
        %v2141 = vlaneseq
        %v2142 = vshrl.u32 %v2141, 7
        %v2143 = vsub.s32 %v1930, %v2142
        %v2144 = vrot.slane %v1449, %v2143
        %v2145 = vsel %vm1935, %v2144, %v2140
        %v2146 = vlaneseq
        %v2147 = vshrl.u32 %v2146, 7
        %v2148 = vsub.s32 %v1937, %v2147
        %v2149 = vrot.slane %v1450, %v2148
        %v2150 = vsel %vm1942, %v2149, %v2145
        %v2151 = vlaneseq
        %v2152 = vshrl.u32 %v2151, 7
        %v2153 = vsub.s32 %v1944, %v2152
        %v2154 = vrot.slane %v1451, %v2153
        %v2155 = vsel %vm1949, %v2154, %v2150
        %v2156 = vlaneseq
        %v2157 = vshrl.u32 %v2156, 7
        %v2158 = vsub.s32 %v1951, %v2157
        %v2159 = vrot.slane %v1452, %v2158
        %v2160 = vsel %vm1956, %v2159, %v2155
        %v2161 = vlaneseq
        %v2162 = vshrl.u32 %v2161, 7
        %v2163 = vsub.s32 %v1958, %v2162
        %v2164 = vrot.slane %v1453, %v2163
        %v2165 = vsel %vm1963, %v2164, %v2160
        %v2166 = vlaneseq
        %v2167 = vshrl.u32 %v2166, 7
        %v2168 = vsub.s32 %v1965, %v2167
        %v2169 = vrot.slane %v1454, %v2168
        %v2170 = vsel %vm1970, %v2169, %v2165
        %v2171 = vlaneseq
        %v2172 = vshrl.u32 %v2171, 7
        %v2173 = vsub.s32 %v1972, %v2172
        %v2174 = vrot.slane %v1455, %v2173
        %v2175 = vsel %vm1977, %v2174, %v2170
        %v2176 = vlaneseq
        %v2177 = vshrl.u32 %v2176, 7
        %v2178 = vsub.s32 %v1979, %v2177
        %v2179 = vrot.slane %v1456, %v2178
        %v2180 = vsel %vm1984, %v2179, %v2175
        %v2181 = vlaneseq
        %v2182 = vshrl.u32 %v2181, 7
        %v2183 = vsub.s32 %v1986, %v2182
        %v2184 = vrot.slane %v1457, %v2183
        %v2185 = vsel %vm1991, %v2184, %v2180
        %v2186 = vlaneseq
        %v2187 = vshrl.u32 %v2186, 7
        %v2188 = vsub.s32 %v1883, %v2187
        %v2189 = vrot.slane %v1458, %v2188
        %v2190 = vlaneseq
        %v2191 = vshrl.u32 %v2190, 7
        %v2192 = vsub.s32 %v1888, %v2191
        %v2193 = vrot.slane %v1459, %v2192
        %v2194 = vsel %vm1893, %v2193, %v2189
        %v2195 = vlaneseq
        %v2196 = vshrl.u32 %v2195, 7
        %v2197 = vsub.s32 %v1895, %v2196
        %v2198 = vrot.slane %v1460, %v2197
        %v2199 = vsel %vm1900, %v2198, %v2194
        %v2200 = vlaneseq
        %v2201 = vshrl.u32 %v2200, 7
        %v2202 = vsub.s32 %v1902, %v2201
        %v2203 = vrot.slane %v1461, %v2202
        %v2204 = vsel %vm1907, %v2203, %v2199
        %v2205 = vlaneseq
        %v2206 = vshrl.u32 %v2205, 7
        %v2207 = vsub.s32 %v1909, %v2206
        %v2208 = vrot.slane %v1462, %v2207
        %v2209 = vsel %vm1914, %v2208, %v2204
        %v2210 = vlaneseq
        %v2211 = vshrl.u32 %v2210, 7
        %v2212 = vsub.s32 %v1916, %v2211
        %v2213 = vrot.slane %v1463, %v2212
        %v2214 = vsel %vm1921, %v2213, %v2209
        %v2215 = vlaneseq
        %v2216 = vshrl.u32 %v2215, 7
        %v2217 = vsub.s32 %v1923, %v2216
        %v2218 = vrot.slane %v1464, %v2217
        %v2219 = vsel %vm1928, %v2218, %v2214
        %v2220 = vlaneseq
        %v2221 = vshrl.u32 %v2220, 7
        %v2222 = vsub.s32 %v1930, %v2221
        %v2223 = vrot.slane %v1465, %v2222
        %v2224 = vsel %vm1935, %v2223, %v2219
        %v2225 = vlaneseq
        %v2226 = vshrl.u32 %v2225, 7
        %v2227 = vsub.s32 %v1937, %v2226
        %v2228 = vrot.slane %v1466, %v2227
        %v2229 = vsel %vm1942, %v2228, %v2224
        %v2230 = vlaneseq
        %v2231 = vshrl.u32 %v2230, 7
        %v2232 = vsub.s32 %v1944, %v2231
        %v2233 = vrot.slane %v1467, %v2232
        %v2234 = vsel %vm1949, %v2233, %v2229
        %v2235 = vlaneseq
        %v2236 = vshrl.u32 %v2235, 7
        %v2237 = vsub.s32 %v1951, %v2236
        %v2238 = vrot.slane %v1468, %v2237
        %v2239 = vsel %vm1956, %v2238, %v2234
        %v2240 = vlaneseq
        %v2241 = vshrl.u32 %v2240, 7
        %v2242 = vsub.s32 %v1958, %v2241
        %v2243 = vrot.slane %v1469, %v2242
        %v2244 = vsel %vm1963, %v2243, %v2239
        %v2245 = vlaneseq
        %v2246 = vshrl.u32 %v2245, 7
        %v2247 = vsub.s32 %v1965, %v2246
        %v2248 = vrot.slane %v1470, %v2247
        %v2249 = vsel %vm1970, %v2248, %v2244
        %v2250 = vlaneseq
        %v2251 = vshrl.u32 %v2250, 7
        %v2252 = vsub.s32 %v1972, %v2251
        %v2253 = vrot.slane %v1471, %v2252
        %v2254 = vsel %vm1977, %v2253, %v2249
        %v2255 = vlaneseq
        %v2256 = vshrl.u32 %v2255, 7
        %v2257 = vsub.s32 %v1979, %v2256
        %v2258 = vrot.slane %v1472, %v2257
        %v2259 = vsel %vm1984, %v2258, %v2254
        %v2260 = vlaneseq
        %v2261 = vshrl.u32 %v2260, 7
        %v2262 = vsub.s32 %v1986, %v2261
        %v2263 = vrot.slane %v1473, %v2262
        %v2264 = vsel %vm1991, %v2263, %v2259
        %v2265 = vsel %vm2072, %v2264, %v2185
        %2267 = vst [vmem:[%s445] sm:$0x3] %v2265
        %s2268 = sand.u32 %s214, 1
        %s2269 = scalar_lea.sflag [#allocation4], %s2268
        %s2270 = sand.u32 %s214, 1
        %s2271 = smul.addr %s2270, 256
        %s2272 = scalar_lea.vmem [#allocation10], %s2271
        %s2273 = sand.u32 %s33, 1
        %s2274 = scalar_lea.sflag [#allocation12], %s2273
        %s2275 = sand.u32 %s240, 1
        %s2276 = smul.addr %s2275, 2
        %s2277 = scalar_lea.vmem [#allocation11], %s2276
        %s2278 = sand.u32 %s33, 1
        %s2279 = scalar_lea.sflag [#allocation12], %s2278
        %s2280 = sand.u32 %s266, 1
        %s2281 = smul.addr %s2280, 2
        %s2282 = scalar_lea.vmem [#allocation13], %s2281
        // Predicated region
        $region69: #{tpu_custom_call.1} parent=51 // pred_check
          %p2283 = pneg %p224
        $region70: #{tpu_custom_call.1} parent=51 // pred_check_branch
          %2285 = sbr.rel (%p2283) target = $region72
        $region71: #{tpu_custom_call.1} parent=51 // pred_region
          %s2286 = smul.u32 32, %s33
          %s2287 = ssub.s32 50, %s2286
          %p2288 = scmp.lt.s32.totalorder %s2287, 32
          %s2289 = scalar_select %p2288, %s2287, 32
          %s2290 = smul.u32 128, %s2289
          %s2292 = ssub.s32 4096, %s2290
          %2293 = vsyncadd %s2269, %s2292
          %p2294 = scmp.ne.s32.totalorder 0, %s2290
          %s2295 = smul.addr %s2286, 128
          %s2296 = scalar_lea.hbm %s8, %s2295
          %s2297 = smul.u32 8, %s2289
          %s2298 = sshll.u32 %s2272, 4
          %s2299 = int_to_ptr.vmem [resolvable:$true] %s2298
          %s2300 = sshll.u32 %s2297, 4
          %2304 = dma.vmem_to_hbm [thread:$0]  (%p2294), %s2299, %s2300, %s2296, %s2269, 128, 128, 8
        $region72: #{tpu_custom_call.1} parent=51 // pred_fallthru
          _
        // Predicated region
        $region73: #{tpu_custom_call.1} parent=51 // pred_check
          %p2305 = pneg %p250
        $region74: #{tpu_custom_call.1} parent=51 // pred_check_branch
          %2307 = sbr.rel (%p2305) target = $region76
        $region75: #{tpu_custom_call.1} parent=51 // pred_region
          %s2309 = ssub.s32 32, 32
          %2310 = vsyncadd %s2274, %s2309
          %s2311 = smul.addr %s33, 32
          %s2312 = scalar_lea.hbm %s9, %s2311
          %s2314 = sshll.u32 %s2277, 4
          %s2315 = int_to_ptr.vmem [resolvable:$true] %s2314
          %2317 = dma.vmem_to_hbm [thread:$0]  %s2315, 32, %s2312, %s2274
        $region76: #{tpu_custom_call.1} parent=51 // pred_fallthru
          _
        // Predicated region
        $region77: #{tpu_custom_call.1} parent=51 // pred_check
          %p2318 = pneg %p276
        $region78: #{tpu_custom_call.1} parent=51 // pred_check_branch
          %2320 = sbr.rel (%p2318) target = $region80
        $region79: #{tpu_custom_call.1} parent=51 // pred_region
          %s2322 = ssub.s32 32, 32
          %2323 = vsyncadd %s2279, %s2322
          %s2324 = smul.addr %s33, 32
          %s2325 = scalar_lea.hbm %s10, %s2324
          %s2327 = sshll.u32 %s2282, 4
          %s2328 = int_to_ptr.vmem [resolvable:$true] %s2327
          %2330 = dma.vmem_to_hbm [thread:$0]  %s2328, 32, %s2325, %s2279
        $region80: #{tpu_custom_call.1} parent=51 // pred_fallthru
          _
      $region52: #{tpu_custom_call.1} parent=5 // pred_fallthru
        _
      %p2331 = scmp.le.s32.totalorder 2, %s28
      // Predicated region
      $region81: #{tpu_custom_call.1} parent=5 // pred_check
        %p2332 = pneg %p2331
      $region82: #{tpu_custom_call.1} parent=5 // pred_check_branch
        %2334 = sbr.rel (%p2332) target = $region84
      $region83: #{tpu_custom_call.1} parent=5 // pred_region
        %s2335 = ssub.s32 %s28, 2
        // Predicated region
        $region85: #{tpu_custom_call.1} parent=83 // pred_check
          %p2336 = pneg %p230
        $region86: #{tpu_custom_call.1} parent=83 // pred_check_branch
          %2338 = sbr.rel (%p2336) target = $region88
        $region87: #{tpu_custom_call.1} parent=83 // pred_region
          %s2339 = sand.u32 %s215, 1
          %s2340 = scalar_lea.sflag [#allocation4], %s2339
          %s2341 = sand.u32 %s215, 1
          %s2342 = smul.addr %s2341, 256
          %s2343 = scalar_lea.vmem [#allocation10], %s2342
          %2344 = dma.done %s2340, 4096
        $region88: #{tpu_custom_call.1} parent=83 // pred_fallthru
          _
        // Predicated region
        $region89: #{tpu_custom_call.1} parent=83 // pred_check
          %p2345 = pneg %p256
        $region90: #{tpu_custom_call.1} parent=83 // pred_check_branch
          %2347 = sbr.rel (%p2345) target = $region92
        $region91: #{tpu_custom_call.1} parent=83 // pred_region
          %s2348 = sand.u32 %s34, 1
          %s2349 = scalar_lea.sflag [#allocation12], %s2348
          %s2350 = sand.u32 %s241, 1
          %s2351 = smul.addr %s2350, 2
          %s2352 = scalar_lea.vmem [#allocation11], %s2351
          %2353 = dma.done %s2349, 32
        $region92: #{tpu_custom_call.1} parent=83 // pred_fallthru
          _
        // Predicated region
        $region93: #{tpu_custom_call.1} parent=83 // pred_check
          %p2354 = pneg %p282
        $region94: #{tpu_custom_call.1} parent=83 // pred_check_branch
          %2356 = sbr.rel (%p2354) target = $region96
        $region95: #{tpu_custom_call.1} parent=83 // pred_region
          %s2357 = sand.u32 %s34, 1
          %s2358 = scalar_lea.sflag [#allocation12], %s2357
          %s2359 = sand.u32 %s267, 1
          %s2360 = smul.addr %s2359, 2
          %s2361 = scalar_lea.vmem [#allocation13], %s2360
          %2362 = dma.done %s2358, 32
        $region96: #{tpu_custom_call.1} parent=83 // pred_fallthru
          _
      $region84: #{tpu_custom_call.1} parent=5 // pred_fallthru
        _
    $region6: #{tpu_custom_call.1} parent=1 // loop_footer
      %s32 = sadd.s32 1, %s28
    $region7: #{tpu_custom_call.1} parent=1 // loop_footer_branch
      %27 = sbr.rel target = $region3
    $region8: #{tpu_custom_call.1} parent=1 // loop_exit
      _
    %2363 = vsyncpa [#allocation3], 1
    %s2364 = scalar_lea.sflag [#allocation3], 1
    %2365 = vsyncpa %s2364, 1
    %2366 = vsyncpa [#allocation6], 1
    %2367 = vsyncpa [#allocation9], 1
    %2368 = vsyncpa [#allocation4], 1
    %s2369 = scalar_lea.sflag [#allocation4], 1
    %2370 = vsyncpa %s2369, 1
    %2371 = vsyncpa [#allocation12], 1
    %s2372 = scalar_lea.sflag [#allocation12], 1
    %2373 = vsyncpa %s2372, 1

// kernel: tpu_custom_call.1
$region0: #{tpu_custom_call.1}
  #allocation0 [shape = 'u32[]', space=smem, size = 0x4, offset = 0x4, fixed_abs, tag = 'smem constant byte address 0x4 - core index']
  #allocation1 [shape = 'u32[144,128]{1,0:T(1,128)}', space=vmem, size = 0x12000, scoped, tag = 'internal scratch']
  %s0 = inlined_call_operand.hbm [shape: f32[400,128], index: 0, kind: input, shape index: {}]
  %s1 = inlined_call_operand.hbm [shape: f32[128,128], index: 1, kind: input, shape index: {}]
  %s2 = inlined_call_operand.vmem [shape: f32[1,128], index: 2, kind: input, shape index: {}]
  %s3 = inlined_call_operand.hbm [shape: f32[128,128], index: 3, kind: input, shape index: {}]
  %s4 = inlined_call_operand.vmem [shape: f32[1,128], index: 4, kind: input, shape index: {}]
  %s5 = inlined_call_operand.vmem [shape: f32[1,128], index: 5, kind: input, shape index: {}]
  %s6 = inlined_call_operand.hbm [shape: f32[128,128], index: 6, kind: input, shape index: {}]
  %s7 = inlined_call_operand.vmem [shape: f32[1,128], index: 7, kind: input, shape index: {}]
  %s8 = inlined_call_operand.hbm [shape: f32[400,128], index: 8, kind: output, shape index: {0}]
  %s9 = inlined_call_operand.hbm [shape: s32[2,2,128], index: 9, kind: output, shape index: {1}]
  %s10 = inlined_call_operand.hbm [shape: f32[2,2,128], index: 10, kind: output, shape index: {2}]
  %11 = xla_tuple %s8, %s9, %s10
  %s12 = sld [smem:[#allocation0]]
  $region97: #{tpu_custom_call.1} parent=0
    _
  %s14 = ssub.s32 1, %s12
  %s15 = scalar_select 0, %s14, %s12
  $region1: #{tpu_custom_call.1} parent=0
    #allocation2 [shape = 'u8[262144]{0}', space=vmem, size = 0x40000, scoped, tag = 'input window, operand 0']
    #allocation3 [shape = 's32[2]{0}', space=sflag, size = 0x8, scoped, tag = 'scoped memory for tpu_custom_call.1']
    #allocation4 [shape = 's32[2]{0}', space=sflag, size = 0x8, scoped, tag = 'scoped memory for tpu_custom_call.1']
    #allocation5 [shape = 'u8[65536]{0}', space=vmem, size = 0x10000, scoped, tag = 'input window, operand 1, single buffered']
    #allocation6 [shape = 's32[1]{0}', space=sflag, size = 0x4, scoped, tag = 'scoped memory for tpu_custom_call.1']
    #allocation7 [shape = 'u8[65536]{0}', space=vmem, size = 0x10000, scoped, tag = 'input window, operand 3, single buffered']
    #allocation8 [shape = 'u8[65536]{0}', space=vmem, size = 0x10000, scoped, tag = 'input window, operand 6, single buffered']
    #allocation9 [shape = 's32[1]{0}', space=sflag, size = 0x4, scoped, tag = 'scoped memory for tpu_custom_call.1']
    #allocation10 [shape = 'u8[262144]{0}', space=vmem, size = 0x40000, scoped, tag = 'output window, operand 0']
    #allocation11 [shape = 'u8[2048]{0}', space=vmem, size = 0x800, scoped, tag = 'output window, operand 1']
    #allocation12 [shape = 's32[2]{0}', space=sflag, size = 0x8, scoped, tag = 'scoped memory for tpu_custom_call.1']
    #allocation13 [shape = 'u8[2048]{0}', space=vmem, size = 0x800, scoped, tag = 'output window, operand 2']
    %16 = vsyncpa [#allocation3], 0
    %s17 = scalar_lea.sflag [#allocation3], 1
    %18 = vsyncpa %s17, 0
    %19 = vsyncpa [#allocation6], 0
    %20 = vsyncpa [#allocation9], 0
    %21 = vsyncpa [#allocation4], 0
    %s22 = scalar_lea.sflag [#allocation4], 1
    %23 = vsyncpa %s22, 0
    %24 = vsyncpa [#allocation12], 0
    %s25 = scalar_lea.sflag [#allocation12], 1
    %26 = vsyncpa %s25, 0
    loop: start=0, step=1, limit=4
    $region2: #{tpu_custom_call.1} parent=1 // loop_pre_header
      _
    $region3: #{tpu_custom_call.1} parent=1 // loop_header
      %s28 = sphi 0, %s32
      %p29 = scmp.ge.s32.totalorder %s28, 4
      %s38 = sphi 0, %s40
      %s41 = sphi 0, %s38
      %s42 = sphi 0, %s41
      %s58 = sphi 0, %s42
      %s62 = sphi 0, %s62
      %s64 = sphi 0, %s62
      %s65 = sphi 0, %s64
      %s79 = sphi 0, %s65
      %s83 = sphi 0, %s83
      %s85 = sphi 0, %s83
      %s86 = sphi 0, %s85
      %s100 = sphi 0, %s86
      %s104 = sphi 0, %s104
      %s106 = sphi 0, %s104
      %s107 = sphi 0, %s106
      %s121 = sphi 0, %s107
      %s125 = sphi 0, %s125
      %s127 = sphi 0, %s125
      %s128 = sphi 0, %s127
      %s142 = sphi 0, %s128
      %s146 = sphi 0, %s146
      %s148 = sphi 0, %s146
      %s149 = sphi 0, %s148
      %s163 = sphi 0, %s149
      %s167 = sphi 0, %s167
      %s169 = sphi 0, %s167
      %s170 = sphi 0, %s169
      %s184 = sphi 0, %s170
      %s188 = sphi 0, %s188
      %s190 = sphi 0, %s188
      %s191 = sphi 0, %s190
      %s205 = sphi 0, %s191
      %s211 = sphi 0, %s213
      %s214 = sphi 0, %s211
      %s215 = sphi 0, %s214
      %s231 = sphi 0, %s215
      %s237 = sphi 0, %s239
      %s240 = sphi 0, %s237
      %s241 = sphi 0, %s240
      %s257 = sphi 0, %s241
      %s263 = sphi 0, %s265
      %s266 = sphi 0, %s263
      %s267 = sphi 0, %s266
      %s283 = sphi 0, %s267
    $region4: #{tpu_custom_call.1} parent=1 // loop_header_branch
      %31 = sbr.rel (%p29) target = $region8
    $region5: #{tpu_custom_call.1} parent=1 // loop_body
      %s33 = ssub.s32 %s28, 1
      %s34 = ssub.s32 %s28, 2
      %s35 = sadd.s32 %s28, 1
      %s36 = ssub.s32 %s28, %s35
      %p37 = scmp.eq.s32.totalorder %s36, 0
      %s39 = sadd.s32 %s38, 1
      %s40 = scalar_select %p37, %s38, %s39
      %p43 = pneg %p37
      %p44 = scmp.eq.s32.totalorder %s28, 1
      %p45 = por %p43, %p44
      %p46 = scmp.ne.s32.totalorder %s38, %s41
      %p47 = scmp.eq.s32.totalorder %s28, 0
      %p48 = por %p46, %p47
      %p49 = scmp.ne.s32.totalorder %s38, %s41
      %p50 = scmp.eq.s32.totalorder %s33, 1
      %p51 = por %p49, %p50
      %p52 = scmp.ne.s32.totalorder %s41, %s42
      %p53 = scmp.eq.s32.totalorder %s33, 0
      %p54 = por %p52, %p53
      %p55 = scmp.ne.s32.totalorder %s41, %s42
      %p56 = scmp.eq.s32.totalorder %s34, 1
      %p57 = por %p55, %p56
      %p59 = scmp.ne.s32.totalorder %s42, %s58
      %p60 = scmp.eq.s32.totalorder %s34, 0
      %p61 = por %p59, %p60
      %s63 = sadd.s32 %s62, 1
      %p66 = scmp.eq.s32.totalorder %s28, 1
      %p67 = scmp.ne.s32.totalorder %s62, %s64
      %p68 = scmp.eq.s32.totalorder %s28, 0
      %p69 = por %p67, %p68
      %p70 = scmp.ne.s32.totalorder %s62, %s64
      %p71 = scmp.eq.s32.totalorder %s33, 1
      %p72 = por %p70, %p71
      %p73 = scmp.ne.s32.totalorder %s64, %s65
      %p74 = scmp.eq.s32.totalorder %s33, 0
      %p75 = por %p73, %p74
      %p76 = scmp.ne.s32.totalorder %s64, %s65
      %p77 = scmp.eq.s32.totalorder %s34, 1
      %p78 = por %p76, %p77
      %p80 = scmp.ne.s32.totalorder %s65, %s79
      %p81 = scmp.eq.s32.totalorder %s34, 0
      %p82 = por %p80, %p81
      %s84 = sadd.s32 %s83, 1
      %p87 = scmp.eq.s32.totalorder %s28, 1
      %p88 = scmp.ne.s32.totalorder %s83, %s85
      %p89 = scmp.eq.s32.totalorder %s28, 0
      %p90 = por %p88, %p89
      %p91 = scmp.ne.s32.totalorder %s83, %s85
      %p92 = scmp.eq.s32.totalorder %s33, 1
      %p93 = por %p91, %p92
      %p94 = scmp.ne.s32.totalorder %s85, %s86
      %p95 = scmp.eq.s32.totalorder %s33, 0
      %p96 = por %p94, %p95
      %p97 = scmp.ne.s32.totalorder %s85, %s86
      %p98 = scmp.eq.s32.totalorder %s34, 1
      %p99 = por %p97, %p98
      %p101 = scmp.ne.s32.totalorder %s86, %s100
      %p102 = scmp.eq.s32.totalorder %s34, 0
      %p103 = por %p101, %p102
      %s105 = sadd.s32 %s104, 1
      %p108 = scmp.eq.s32.totalorder %s28, 1
      %p109 = scmp.ne.s32.totalorder %s104, %s106
      %p110 = scmp.eq.s32.totalorder %s28, 0
      %p111 = por %p109, %p110
      %p112 = scmp.ne.s32.totalorder %s104, %s106
      %p113 = scmp.eq.s32.totalorder %s33, 1
      %p114 = por %p112, %p113
      %p115 = scmp.ne.s32.totalorder %s106, %s107
      %p116 = scmp.eq.s32.totalorder %s33, 0
      %p117 = por %p115, %p116
      %p118 = scmp.ne.s32.totalorder %s106, %s107
      %p119 = scmp.eq.s32.totalorder %s34, 1
      %p120 = por %p118, %p119
      %p122 = scmp.ne.s32.totalorder %s107, %s121
      %p123 = scmp.eq.s32.totalorder %s34, 0
      %p124 = por %p122, %p123
      %s126 = sadd.s32 %s125, 1
      %p129 = scmp.eq.s32.totalorder %s28, 1
      %p130 = scmp.ne.s32.totalorder %s125, %s127
      %p131 = scmp.eq.s32.totalorder %s28, 0
      %p132 = por %p130, %p131
      %p133 = scmp.ne.s32.totalorder %s125, %s127
      %p134 = scmp.eq.s32.totalorder %s33, 1
      %p135 = por %p133, %p134
      %p136 = scmp.ne.s32.totalorder %s127, %s128
      %p137 = scmp.eq.s32.totalorder %s33, 0
      %p138 = por %p136, %p137
      %p139 = scmp.ne.s32.totalorder %s127, %s128
      %p140 = scmp.eq.s32.totalorder %s34, 1
      %p141 = por %p139, %p140
      %p143 = scmp.ne.s32.totalorder %s128, %s142
      %p144 = scmp.eq.s32.totalorder %s34, 0
      %p145 = por %p143, %p144
      %s147 = sadd.s32 %s146, 1
      %p150 = scmp.eq.s32.totalorder %s28, 1
      %p151 = scmp.ne.s32.totalorder %s146, %s148
      %p152 = scmp.eq.s32.totalorder %s28, 0
      %p153 = por %p151, %p152
      %p154 = scmp.ne.s32.totalorder %s146, %s148
      %p155 = scmp.eq.s32.totalorder %s33, 1
      %p156 = por %p154, %p155
      %p157 = scmp.ne.s32.totalorder %s148, %s149
      %p158 = scmp.eq.s32.totalorder %s33, 0
      %p159 = por %p157, %p158
      %p160 = scmp.ne.s32.totalorder %s148, %s149
      %p161 = scmp.eq.s32.totalorder %s34, 1
      %p162 = por %p160, %p161
      %p164 = scmp.ne.s32.totalorder %s149, %s163
      %p165 = scmp.eq.s32.totalorder %s34, 0
      %p166 = por %p164, %p165
      %s168 = sadd.s32 %s167, 1
      %p171 = scmp.eq.s32.totalorder %s28, 1
      %p172 = scmp.ne.s32.totalorder %s167, %s169
      %p173 = scmp.eq.s32.totalorder %s28, 0
      %p174 = por %p172, %p173
      %p175 = scmp.ne.s32.totalorder %s167, %s169
      %p176 = scmp.eq.s32.totalorder %s33, 1
      %p177 = por %p175, %p176
      %p178 = scmp.ne.s32.totalorder %s169, %s170
      %p179 = scmp.eq.s32.totalorder %s33, 0
      %p180 = por %p178, %p179
      %p181 = scmp.ne.s32.totalorder %s169, %s170
      %p182 = scmp.eq.s32.totalorder %s34, 1
      %p183 = por %p181, %p182
      %p185 = scmp.ne.s32.totalorder %s170, %s184
      %p186 = scmp.eq.s32.totalorder %s34, 0
      %p187 = por %p185, %p186
      %s189 = sadd.s32 %s188, 1
      %p192 = scmp.eq.s32.totalorder %s28, 1
      %p193 = scmp.ne.s32.totalorder %s188, %s190
      %p194 = scmp.eq.s32.totalorder %s28, 0
      %p195 = por %p193, %p194
      %p196 = scmp.ne.s32.totalorder %s188, %s190
      %p197 = scmp.eq.s32.totalorder %s33, 1
      %p198 = por %p196, %p197
      %p199 = scmp.ne.s32.totalorder %s190, %s191
      %p200 = scmp.eq.s32.totalorder %s33, 0
      %p201 = por %p199, %p200
      %p202 = scmp.ne.s32.totalorder %s190, %s191
      %p203 = scmp.eq.s32.totalorder %s34, 1
      %p204 = por %p202, %p203
      %p206 = scmp.ne.s32.totalorder %s191, %s205
      %p207 = scmp.eq.s32.totalorder %s34, 0
      %p208 = por %p206, %p207
      %s209 = ssub.s32 %s28, %s35
      %p210 = scmp.eq.s32.totalorder %s209, 0
      %s212 = sadd.s32 %s211, 1
      %s213 = scalar_select %p210, %s211, %s212
      %p216 = pneg %p210
      %p217 = scmp.eq.s32.totalorder %s28, 1
      %p218 = por %p216, %p217
      %p219 = scmp.ne.s32.totalorder %s211, %s214
      %p220 = scmp.eq.s32.totalorder %s28, 0
      %p221 = por %p219, %p220
      %p222 = scmp.ne.s32.totalorder %s211, %s214
      %p223 = scmp.eq.s32.totalorder %s33, 1
      %p224 = por %p222, %p223
      %p225 = scmp.ne.s32.totalorder %s214, %s215
      %p226 = scmp.eq.s32.totalorder %s33, 0
      %p227 = por %p225, %p226
      %p228 = scmp.ne.s32.totalorder %s214, %s215
      %p229 = scmp.eq.s32.totalorder %s34, 1
      %p230 = por %p228, %p229
      %p232 = scmp.ne.s32.totalorder %s215, %s231
      %p233 = scmp.eq.s32.totalorder %s34, 0
      %p234 = por %p232, %p233
      %s235 = ssub.s32 %s28, %s35
      %p236 = scmp.eq.s32.totalorder %s235, 0
      %s238 = sadd.s32 %s237, 1
      %s239 = scalar_select %p236, %s237, %s238
      %p242 = pneg %p236
      %p243 = scmp.eq.s32.totalorder %s28, 1
      %p244 = por %p242, %p243
      %p245 = scmp.ne.s32.totalorder %s237, %s240
      %p246 = scmp.eq.s32.totalorder %s28, 0
      %p247 = por %p245, %p246
      %p248 = scmp.ne.s32.totalorder %s237, %s240
      %p249 = scmp.eq.s32.totalorder %s33, 1
      %p250 = por %p248, %p249
      %p251 = scmp.ne.s32.totalorder %s240, %s241
      %p252 = scmp.eq.s32.totalorder %s33, 0
      %p253 = por %p251, %p252
      %p254 = scmp.ne.s32.totalorder %s240, %s241
      %p255 = scmp.eq.s32.totalorder %s34, 1
      %p256 = por %p254, %p255
      %p258 = scmp.ne.s32.totalorder %s241, %s257
      %p259 = scmp.eq.s32.totalorder %s34, 0
      %p260 = por %p258, %p259
      %s261 = ssub.s32 %s28, %s35
      %p262 = scmp.eq.s32.totalorder %s261, 0
      %s264 = sadd.s32 %s263, 1
      %s265 = scalar_select %p262, %s263, %s264
      %p268 = pneg %p262
      %p269 = scmp.eq.s32.totalorder %s28, 1
      %p270 = por %p268, %p269
      %p271 = scmp.ne.s32.totalorder %s263, %s266
      %p272 = scmp.eq.s32.totalorder %s28, 0
      %p273 = por %p271, %p272
      %p274 = scmp.ne.s32.totalorder %s263, %s266
      %p275 = scmp.eq.s32.totalorder %s33, 1
      %p276 = por %p274, %p275
      %p277 = scmp.ne.s32.totalorder %s266, %s267
      %p278 = scmp.eq.s32.totalorder %s33, 0
      %p279 = por %p277, %p278
      %p280 = scmp.ne.s32.totalorder %s266, %s267
      %p281 = scmp.eq.s32.totalorder %s34, 1
      %p282 = por %p280, %p281
      %p284 = scmp.ne.s32.totalorder %s267, %s283
      %p285 = scmp.eq.s32.totalorder %s34, 0
      %p286 = por %p284, %p285
      %p287 = scmp.le.s32.totalorder 1, %s28
      %p288 = scmp.lt.s32.totalorder %s28, 3
      %p289 = pnand %p287, %p288
      %p290 = pneg %p289
      // Predicated region
      $region9: #{tpu_custom_call.1} parent=5 // pred_check
        _
      $region10: #{tpu_custom_call.1} parent=5 // pred_check_branch
        %292 = sbr.rel (%p289) target = $region12
      $region11: #{tpu_custom_call.1} parent=5 // pred_region
        %s293 = ssub.s32 %s28, 1
        // Predicated region
        $region13: #{tpu_custom_call.1} parent=11 // pred_check
          %p294 = pneg %p75
        $region14: #{tpu_custom_call.1} parent=11 // pred_check_branch
          %296 = sbr.rel (%p294) target = $region16
        $region15: #{tpu_custom_call.1} parent=11 // pred_region
          %s298 = ssub.s32 2048, 2048
          %299 = vsyncadd [#allocation6], %s298
          %s300 = sshll.u32 [#allocation5], 4
          %s301 = int_to_ptr.vmem [resolvable:$true] %s300
          %306 = dma.hbm_to_vmem [thread:$0]  %s1, 2048, %s301, [#allocation6], 128, 128, 8
        $region16: #{tpu_custom_call.1} parent=11 // pred_fallthru
          _
        // Predicated region
        $region17: #{tpu_custom_call.1} parent=11 // pred_check
          %p307 = pneg %p96
        $region18: #{tpu_custom_call.1} parent=11 // pred_check_branch
          %309 = sbr.rel (%p307) target = $region20
        $region19: #{tpu_custom_call.1} parent=11 // pred_region
          _
        $region20: #{tpu_custom_call.1} parent=11 // pred_fallthru
          _
        // Predicated region
        $region21: #{tpu_custom_call.1} parent=11 // pred_check
          %p310 = pneg %p117
        $region22: #{tpu_custom_call.1} parent=11 // pred_check_branch
          %312 = sbr.rel (%p310) target = $region24
        $region23: #{tpu_custom_call.1} parent=11 // pred_region
          %s314 = ssub.s32 2048, 2048
          %315 = vsyncadd [#allocation6], %s314
          %s316 = sshll.u32 [#allocation7], 4
          %s317 = int_to_ptr.vmem [resolvable:$true] %s316
          %322 = dma.hbm_to_vmem [thread:$0]  %s3, 2048, %s317, [#allocation6], 128, 128, 8
        $region24: #{tpu_custom_call.1} parent=11 // pred_fallthru
          _
        // Predicated region
        $region25: #{tpu_custom_call.1} parent=11 // pred_check
          %p323 = pneg %p138
        $region26: #{tpu_custom_call.1} parent=11 // pred_check_branch
          %325 = sbr.rel (%p323) target = $region28
        $region27: #{tpu_custom_call.1} parent=11 // pred_region
          _
        $region28: #{tpu_custom_call.1} parent=11 // pred_fallthru
          _
        // Predicated region
        $region29: #{tpu_custom_call.1} parent=11 // pred_check
          %p326 = pneg %p159
        $region30: #{tpu_custom_call.1} parent=11 // pred_check_branch
          %328 = sbr.rel (%p326) target = $region32
        $region31: #{tpu_custom_call.1} parent=11 // pred_region
          _
        $region32: #{tpu_custom_call.1} parent=11 // pred_fallthru
          _
        // Predicated region
        $region33: #{tpu_custom_call.1} parent=11 // pred_check
          %p329 = pneg %p180
        $region34: #{tpu_custom_call.1} parent=11 // pred_check_branch
          %331 = sbr.rel (%p329) target = $region36
        $region35: #{tpu_custom_call.1} parent=11 // pred_region
          %s333 = ssub.s32 2048, 2048
          %334 = vsyncadd [#allocation9], %s333
          %s335 = sshll.u32 [#allocation8], 4
          %s336 = int_to_ptr.vmem [resolvable:$true] %s335
          %341 = dma.hbm_to_vmem [thread:$0]  %s6, 2048, %s336, [#allocation9], 128, 128, 8
        $region36: #{tpu_custom_call.1} parent=11 // pred_fallthru
          _
        // Predicated region
        $region37: #{tpu_custom_call.1} parent=11 // pred_check
          %p342 = pneg %p201
        $region38: #{tpu_custom_call.1} parent=11 // pred_check_branch
          %344 = sbr.rel (%p342) target = $region40
        $region39: #{tpu_custom_call.1} parent=11 // pred_region
          _
        $region40: #{tpu_custom_call.1} parent=11 // pred_fallthru
          _
      $region12: #{tpu_custom_call.1} parent=5 // pred_fallthru
        _
      %p345 = scmp.lt.s32.totalorder %s28, 2
      // Predicated region
      $region41: #{tpu_custom_call.1} parent=5 // pred_check
        %p346 = pneg %p345
      $region42: #{tpu_custom_call.1} parent=5 // pred_check_branch
        %348 = sbr.rel (%p346) target = $region44
      $region43: #{tpu_custom_call.1} parent=5 // pred_region
        // Predicated region
        $region45: #{tpu_custom_call.1} parent=43 // pred_check
          %p349 = pneg %p48
        $region46: #{tpu_custom_call.1} parent=43 // pred_check_branch
          %351 = sbr.rel (%p349) target = $region48
        $region47: #{tpu_custom_call.1} parent=43 // pred_region
          %s352 = sand.u32 %s38, 1
          %s353 = scalar_lea.sflag [#allocation3], %s352
          %s354 = sand.u32 %s38, 1
          %s355 = smul.addr %s354, 256
          %s356 = scalar_lea.vmem [#allocation2], %s355
          %s357 = smul.u32 32, %s28
          %s358 = ssub.s32 50, %s357
          %p359 = scmp.lt.s32.totalorder %s358, 32
          %s360 = scalar_select %p359, %s358, 32
          %s361 = smul.u32 128, %s360
          %s363 = ssub.s32 4096, %s361
          %364 = vsyncadd %s353, %s363
          %p365 = scmp.ne.s32.totalorder 0, %s361
          %s366 = smul.addr %s357, 128
          %s367 = scalar_lea.hbm %s0, %s366
          %s368 = smul.u32 8, %s360
          %s369 = sshll.u32 %s356, 4
          %s370 = int_to_ptr.vmem [resolvable:$true] %s369
          %s371 = sshll.u32 %s368, 4
          %375 = dma.hbm_to_vmem [thread:$0]  (%p365), %s367, %s371, %s370, %s353, 128, 128, 8
        $region48: #{tpu_custom_call.1} parent=43 // pred_fallthru
          _
      $region44: #{tpu_custom_call.1} parent=5 // pred_fallthru
        _
      %p376 = scmp.le.s32.totalorder 1, %s28
      %p377 = scmp.lt.s32.totalorder %s28, 3
      %p378 = pnand %p376, %p377
      %p379 = pneg %p378
      // Predicated region
      $region49: #{tpu_custom_call.1} parent=5 // pred_check
        _
      $region50: #{tpu_custom_call.1} parent=5 // pred_check_branch
        %381 = sbr.rel (%p378) target = $region52
      $region51: #{tpu_custom_call.1} parent=5 // pred_region
        %s382 = ssub.s32 %s28, 1
        %s383 = sand.u32 %s41, 1
        %s384 = scalar_lea.sflag [#allocation3], %s383
        %s385 = sand.u32 %s41, 1
        %s386 = smul.addr %s385, 256
        %s387 = scalar_lea.vmem [#allocation2], %s386
        // Predicated region
        $region53: #{tpu_custom_call.1} parent=51 // pred_check
          %p388 = pneg %p54
        $region54: #{tpu_custom_call.1} parent=51 // pred_check_branch
          %390 = sbr.rel (%p388) target = $region56
        $region55: #{tpu_custom_call.1} parent=51 // pred_region
          %391 = dma.done %s384, 4096
        $region56: #{tpu_custom_call.1} parent=51 // pred_fallthru
          _
        // Predicated region
        $region57: #{tpu_custom_call.1} parent=51 // pred_check
          %p392 = pneg %p75
        $region58: #{tpu_custom_call.1} parent=51 // pred_check_branch
          %394 = sbr.rel (%p392) target = $region60
        $region59: #{tpu_custom_call.1} parent=51 // pred_region
          %395 = dma.done [#allocation6], 2048
        $region60: #{tpu_custom_call.1} parent=51 // pred_fallthru
          _
        // Predicated region
        $region61: #{tpu_custom_call.1} parent=51 // pred_check
          %p396 = pneg %p117
        $region62: #{tpu_custom_call.1} parent=51 // pred_check_branch
          %398 = sbr.rel (%p396) target = $region64
        $region63: #{tpu_custom_call.1} parent=51 // pred_region
          %399 = dma.done [#allocation6], 2048
        $region64: #{tpu_custom_call.1} parent=51 // pred_fallthru
          _
        // Predicated region
        $region65: #{tpu_custom_call.1} parent=51 // pred_check
          %p400 = pneg %p180
        $region66: #{tpu_custom_call.1} parent=51 // pred_check_branch
          %402 = sbr.rel (%p400) target = $region68
        $region67: #{tpu_custom_call.1} parent=51 // pred_region
          %403 = dma.done [#allocation9], 2048
        $region68: #{tpu_custom_call.1} parent=51 // pred_fallthru
          _
        %s404 = sand.u32 %s41, 1
        %s405 = scalar_lea.sflag [#allocation3], %s404
        %s406 = sand.u32 %s41, 1
        %s407 = smul.addr %s406, 256
        %s408 = scalar_lea.vmem [#allocation2], %s407
        %p409 = pneg %p54
        %p410 = pneg %p51
        %p411 = pneg %p75
        %p412 = pneg %p72
        %p413 = pneg %p96
        %p414 = pneg %p93
        %p415 = pneg %p117
        %p416 = pneg %p114
        %p417 = pneg %p138
        %p418 = pneg %p135
        %p419 = pneg %p159
        %p420 = pneg %p156
        %p421 = pneg %p180
        %p422 = pneg %p177
        %p423 = pneg %p201
        %p424 = pneg %p198
        %p425 = pneg %p227
        %p426 = pneg %p224
        %s427 = sand.u32 %s214, 1
        %s428 = scalar_lea.sflag [#allocation4], %s427
        %s429 = sand.u32 %s214, 1
        %s430 = smul.addr %s429, 256
        %s431 = scalar_lea.vmem [#allocation10], %s430
        %p432 = pneg %p253
        %p433 = pneg %p250
        %s434 = sand.u32 %s33, 1
        %s435 = scalar_lea.sflag [#allocation12], %s434
        %s436 = sand.u32 %s240, 1
        %s437 = smul.addr %s436, 2
        %s438 = scalar_lea.vmem [#allocation11], %s437
        %p439 = pneg %p279
        %p440 = pneg %p276
        %s441 = sand.u32 %s33, 1
        %s442 = scalar_lea.sflag [#allocation12], %s441
        %s443 = sand.u32 %s266, 1
        %s444 = smul.addr %s443, 2
        %s445 = scalar_lea.vmem [#allocation13], %s444
        %s446 = smul.u32 32, %s33
        %s447 = ssub.s32 50, %s446
        %p448 = scmp.lt.s32.totalorder %s447, 32
        %s449 = scalar_select %p448, %s447, 32
        %s450 = smul.u32 128, %s449
        %s451 = smul.u32 32, %s33
        %s452 = ssub.s32 50, %s451
        %p453 = scmp.lt.s32.totalorder %s452, 32
        %s454 = scalar_select %p453, %s452, 32
        %s455 = smul.u32 128, %s454
        %v456 = vld [vmem:[%s387] sm:$0xff]
        %v457 = vld [vmem:[%s387 + $0x8] sm:$0xff]
        %v458 = vld [vmem:[%s387 + $0x10] sm:$0xff]
        %v459 = vld [vmem:[%s387 + $0x18] sm:$0xff]
        %v460 = vld [vmem:[%s387 + $0x20] sm:$0xff]
        %v461 = vld [vmem:[%s387 + $0x28] sm:$0xff]
        %v462 = vld [vmem:[%s387 + $0x30] sm:$0xff]
        %v463 = vld [vmem:[%s387 + $0x38] sm:$0xff]
        %v464 = vld [vmem:[%s387 + $0x40] sm:$0xff]
        %v465 = vld [vmem:[%s387 + $0x48] sm:$0xff]
        %v466 = vld [vmem:[%s387 + $0x50] sm:$0xff]
        %v467 = vld [vmem:[%s387 + $0x58] sm:$0xff]
        %v468 = vld [vmem:[%s387 + $0x60] sm:$0xff]
        %v469 = vld [vmem:[%s387 + $0x68] sm:$0xff]
        %v470 = vld [vmem:[%s387 + $0x70] sm:$0xff]
        %v471 = vld [vmem:[%s387 + $0x78] sm:$0xff]
        %v472 = vld [vmem:[%s387 + $0x80] sm:$0xff]
        %v473 = vld [vmem:[%s387 + $0x88] sm:$0xff]
        %v474 = vld [vmem:[%s387 + $0x90] sm:$0xff]
        %v475 = vld [vmem:[%s387 + $0x98] sm:$0xff]
        %v476 = vld [vmem:[%s387 + $0xa0] sm:$0xff]
        %v477 = vld [vmem:[%s387 + $0xa8] sm:$0xff]
        %v478 = vld [vmem:[%s387 + $0xb0] sm:$0xff]
        %v479 = vld [vmem:[%s387 + $0xb8] sm:$0xff]
        %v480 = vld [vmem:[%s387 + $0xc0] sm:$0xff]
        %v481 = vld [vmem:[%s387 + $0xc8] sm:$0xff]
        %v482 = vld [vmem:[%s387 + $0xd0] sm:$0xff]
        %v483 = vld [vmem:[%s387 + $0xd8] sm:$0xff]
        %v484 = vld [vmem:[%s387 + $0xe0] sm:$0xff]
        %v485 = vld [vmem:[%s387 + $0xe8] sm:$0xff]
        %v486 = vld [vmem:[%s387 + $0xf0] sm:$0xff]
        %v487 = vld [vmem:[%s387 + $0xf8] sm:$0xff]
        %v488 = vld [vmem:[#allocation5] sm:$0xff]
        %v489 = vld [vmem:[#allocation5 + $0x8] sm:$0xff]
        %v490 = vld [vmem:[#allocation5 + $0x10] sm:$0xff]
        %v491 = vld [vmem:[#allocation5 + $0x18] sm:$0xff]
        %v492 = vld [vmem:[#allocation5 + $0x20] sm:$0xff]
        %v493 = vld [vmem:[#allocation5 + $0x28] sm:$0xff]
        %v494 = vld [vmem:[#allocation5 + $0x30] sm:$0xff]
        %v495 = vld [vmem:[#allocation5 + $0x38] sm:$0xff]
        %v496 = vld [vmem:[#allocation5 + $0x40] sm:$0xff]
        %v497 = vld [vmem:[#allocation5 + $0x48] sm:$0xff]
        %v498 = vld [vmem:[#allocation5 + $0x50] sm:$0xff]
        %v499 = vld [vmem:[#allocation5 + $0x58] sm:$0xff]
        %v500 = vld [vmem:[#allocation5 + $0x60] sm:$0xff]
        %v501 = vld [vmem:[#allocation5 + $0x68] sm:$0xff]
        %v502 = vld [vmem:[#allocation5 + $0x70] sm:$0xff]
        %v503 = vld [vmem:[#allocation5 + $0x78] sm:$0xff]
        %v504 = vld [vmem:[%s2] sm:$0x1]
        %v506 = vlaneseq
        %v507 = vshrl.u32 %v506, 7
        %v508 = vsub.s32 0, %v507
        %v509 = vrot.slane %v504, %v508
        %511 = vmatprep.subr.mxu0 0.0
        %512 = vmatpush1.msra.mxu0 %v488
        %513 = vmatprep.subr.mxu0 0.0
        %514 = vmatpush1.msra.mxu0 %v489
        %515 = vmatprep.subr.mxu0 0.0
        %516 = vmatpush1.msra.mxu0 %v490
        %517 = vmatprep.subr.mxu0 0.0
        %518 = vmatpush1.msra.mxu0 %v491
        %519 = vmatprep.subr.mxu0 0.0
        %520 = vmatpush1.msra.mxu0 %v492
        %521 = vmatprep.subr.mxu0 0.0
        %522 = vmatpush1.msra.mxu0 %v493
        %523 = vmatprep.subr.mxu0 0.0
        %524 = vmatpush1.msra.mxu0 %v494
        %525 = vmatprep.subr.mxu0 0.0
        %526 = vmatpush1.msra.mxu0 %v495
        %527 = vmatprep.subr.mxu0 0.0
        %528 = vmatpush1.msra.mxu0 %v496
        %529 = vmatprep.subr.mxu0 0.0
        %530 = vmatpush1.msra.mxu0 %v497
        %531 = vmatprep.subr.mxu0 0.0
        %532 = vmatpush1.msra.mxu0 %v498
        %533 = vmatprep.subr.mxu0 0.0
        %534 = vmatpush1.msra.mxu0 %v499
        %535 = vmatprep.subr.mxu0 0.0
        %536 = vmatpush1.msra.mxu0 %v500
        %537 = vmatprep.subr.mxu0 0.0
        %538 = vmatpush1.msra.mxu0 %v501
        %539 = vmatprep.subr.mxu0 0.0
        %540 = vmatpush1.msra.mxu0 %v502
        %541 = vmatprep.subr.mxu0 0.0
        %542 = vmatpush1.msra.mxu0 %v503
        %543 = vmatprep.subr.mxu0 0.0
        %544 = vmatpush1.msra.mxu0 0.0
        %545 = vmatprep.subr.mxu0 0.0
        %546 = vmatpush1.msra.mxu0 0.0
        %547 = vmatprep.subr.mxu0 0.0
        %548 = vmatpush1.msra.mxu0 0.0
        %549 = vmatprep.subr.mxu0 0.0
        %550 = vmatpush1.msra.mxu0 0.0
        %551 = vmatprep.subr.mxu0 0.0
        %552 = vmatpush1.msra.mxu0 0.0
        %553 = vmatprep.subr.mxu0 0.0
        %554 = vmatpush1.msra.mxu0 0.0
        %555 = vmatprep.subr.mxu0 0.0
        %556 = vmatpush1.msra.mxu0 0.0
        %557 = vmatprep.subr.mxu0 0.0
        %558 = vmatpush1.msra.mxu0 0.0
        %559 = vmatprep.subr.mxu0 0.0
        %560 = vmatpush1.msra.mxu0 0.0
        %561 = vmatprep.subr.mxu0 0.0
        %562 = vmatpush1.msra.mxu0 0.0
        %563 = vmatprep.subr.mxu0 0.0
        %564 = vmatpush1.msra.mxu0 0.0
        %565 = vmatprep.subr.mxu0 0.0
        %566 = vmatpush1.msra.mxu0 0.0
        %567 = vmatprep.subr.mxu0 0.0
        %568 = vmatpush1.msra.mxu0 0.0
        %569 = vmatprep.subr.mxu0 0.0
        %570 = vmatpush1.msra.mxu0 0.0
        %571 = vmatprep.subr.mxu0 0.0
        %572 = vmatpush1.msra.mxu0 0.0
        %573 = vmatprep.subr.mxu0 0.0
        %574 = vmatpush1.msra.mxu0 0.0
        %575 = vmatprep.mubr.f32.mxu0 0.0
        %576 = vmatmul.mubr.f32.gmra.mrb[0].mxu0 %v456
        %v577 = vpop.f32.mrb[0].mxu0
        %v578 = vadd.f32 %v509, %v577
        %v579 = vpop.f32.mrb[0].mxu0
        %580 = vmatprep.mubr.f32.mxu0 0.0
        %581 = vmatmul.mubr.f32.gmra.mrb[0].mxu0 %v457
        %v582 = vpop.f32.mrb[0].mxu0
        %v583 = vadd.f32 %v509, %v582
        %v584 = vpop.f32.mrb[0].mxu0
        %585 = vmatprep.mubr.f32.mxu0 0.0
        %586 = vmatmul.mubr.f32.gmra.mrb[0].mxu0 %v458
        %v587 = vpop.f32.mrb[0].mxu0
        %v588 = vadd.f32 %v509, %v587
        %v589 = vpop.f32.mrb[0].mxu0
        %590 = vmatprep.mubr.f32.mxu0 0.0
        %591 = vmatmul.mubr.f32.gmra.mrb[0].mxu0 %v459
        %v592 = vpop.f32.mrb[0].mxu0
        %v593 = vadd.f32 %v509, %v592
        %v594 = vpop.f32.mrb[0].mxu0
        %595 = vmatprep.mubr.f32.mxu0 0.0
        %596 = vmatmul.mubr.f32.gmra.mrb[0].mxu0 %v460
        %v597 = vpop.f32.mrb[0].mxu0
        %v598 = vadd.f32 %v509, %v597
        %v599 = vpop.f32.mrb[0].mxu0
        %600 = vmatprep.mubr.f32.mxu0 0.0
        %601 = vmatmul.mubr.f32.gmra.mrb[0].mxu0 %v461
        %v602 = vpop.f32.mrb[0].mxu0
        %v603 = vadd.f32 %v509, %v602
        %v604 = vpop.f32.mrb[0].mxu0
        %605 = vmatprep.mubr.f32.mxu0 0.0
        %606 = vmatmul.mubr.f32.gmra.mrb[0].mxu0 %v462
        %v607 = vpop.f32.mrb[0].mxu0
        %v608 = vadd.f32 %v509, %v607
        %v609 = vpop.f32.mrb[0].mxu0
        %610 = vmatprep.mubr.f32.mxu0 0.0
        %611 = vmatmul.mubr.f32.gmra.mrb[0].mxu0 %v463
        %v612 = vpop.f32.mrb[0].mxu0
        %v613 = vadd.f32 %v509, %v612
        %v614 = vpop.f32.mrb[0].mxu0
        %615 = vmatprep.mubr.f32.mxu0 0.0
        %616 = vmatmul.mubr.f32.gmra.mrb[0].mxu0 %v464
        %v617 = vpop.f32.mrb[0].mxu0
        %v618 = vadd.f32 %v509, %v617
        %v619 = vpop.f32.mrb[0].mxu0
        %620 = vmatprep.mubr.f32.mxu0 0.0
        %621 = vmatmul.mubr.f32.gmra.mrb[0].mxu0 %v465
        %v622 = vpop.f32.mrb[0].mxu0
        %v623 = vadd.f32 %v509, %v622
        %v624 = vpop.f32.mrb[0].mxu0
        %625 = vmatprep.mubr.f32.mxu0 0.0
        %626 = vmatmul.mubr.f32.gmra.mrb[0].mxu0 %v466
        %v627 = vpop.f32.mrb[0].mxu0
        %v628 = vadd.f32 %v509, %v627
        %v629 = vpop.f32.mrb[0].mxu0
        %630 = vmatprep.mubr.f32.mxu0 0.0
        %631 = vmatmul.mubr.f32.gmra.mrb[0].mxu0 %v467
        %v632 = vpop.f32.mrb[0].mxu0
        %v633 = vadd.f32 %v509, %v632
        %v634 = vpop.f32.mrb[0].mxu0
        %635 = vmatprep.mubr.f32.mxu0 0.0
        %636 = vmatmul.mubr.f32.gmra.mrb[0].mxu0 %v468
        %v637 = vpop.f32.mrb[0].mxu0
        %v638 = vadd.f32 %v509, %v637
        %v639 = vpop.f32.mrb[0].mxu0
        %640 = vmatprep.mubr.f32.mxu0 0.0
        %641 = vmatmul.mubr.f32.gmra.mrb[0].mxu0 %v469
        %v642 = vpop.f32.mrb[0].mxu0
        %v643 = vadd.f32 %v509, %v642
        %v644 = vpop.f32.mrb[0].mxu0
        %645 = vmatprep.mubr.f32.mxu0 0.0
        %646 = vmatmul.mubr.f32.gmra.mrb[0].mxu0 %v470
        %v647 = vpop.f32.mrb[0].mxu0
        %v648 = vadd.f32 %v509, %v647
        %v649 = vpop.f32.mrb[0].mxu0
        %650 = vmatprep.mubr.f32.mxu0 0.0
        %651 = vmatmul.mubr.f32.gmra.mrb[0].mxu0 %v471
        %v652 = vpop.f32.mrb[0].mxu0
        %v653 = vadd.f32 %v509, %v652
        %v654 = vpop.f32.mrb[0].mxu0
        %655 = vmatprep.mubr.f32.mxu0 0.0
        %656 = vmatmul.mubr.f32.gmra.mrb[0].mxu0 %v472
        %v657 = vpop.f32.mrb[0].mxu0
        %v658 = vadd.f32 %v509, %v657
        %v659 = vpop.f32.mrb[0].mxu0
        %660 = vmatprep.mubr.f32.mxu0 0.0
        %661 = vmatmul.mubr.f32.gmra.mrb[0].mxu0 %v473
        %v662 = vpop.f32.mrb[0].mxu0
        %v663 = vadd.f32 %v509, %v662
        %v664 = vpop.f32.mrb[0].mxu0
        %665 = vmatprep.mubr.f32.mxu0 0.0
        %666 = vmatmul.mubr.f32.gmra.mrb[0].mxu0 %v474
        %v667 = vpop.f32.mrb[0].mxu0
        %v668 = vadd.f32 %v509, %v667
        %v669 = vpop.f32.mrb[0].mxu0
        %670 = vmatprep.mubr.f32.mxu0 0.0
        %671 = vmatmul.mubr.f32.gmra.mrb[0].mxu0 %v475
        %v672 = vpop.f32.mrb[0].mxu0
        %v673 = vadd.f32 %v509, %v672
        %v674 = vpop.f32.mrb[0].mxu0
        %675 = vmatprep.mubr.f32.mxu0 0.0
        %676 = vmatmul.mubr.f32.gmra.mrb[0].mxu0 %v476
        %v677 = vpop.f32.mrb[0].mxu0
        %v678 = vadd.f32 %v509, %v677
        %v679 = vpop.f32.mrb[0].mxu0
        %680 = vmatprep.mubr.f32.mxu0 0.0
        %681 = vmatmul.mubr.f32.gmra.mrb[0].mxu0 %v477
        %v682 = vpop.f32.mrb[0].mxu0
        %v683 = vadd.f32 %v509, %v682
        %v684 = vpop.f32.mrb[0].mxu0
        %685 = vmatprep.mubr.f32.mxu0 0.0
        %686 = vmatmul.mubr.f32.gmra.mrb[0].mxu0 %v478
        %v687 = vpop.f32.mrb[0].mxu0
        %v688 = vadd.f32 %v509, %v687
        %v689 = vpop.f32.mrb[0].mxu0
        %690 = vmatprep.mubr.f32.mxu0 0.0
        %691 = vmatmul.mubr.f32.gmra.mrb[0].mxu0 %v479
        %v692 = vpop.f32.mrb[0].mxu0
        %v693 = vadd.f32 %v509, %v692
        %v694 = vpop.f32.mrb[0].mxu0
        %695 = vmatprep.mubr.f32.mxu0 0.0
        %696 = vmatmul.mubr.f32.gmra.mrb[0].mxu0 %v480
        %v697 = vpop.f32.mrb[0].mxu0
        %v698 = vadd.f32 %v509, %v697
        %v699 = vpop.f32.mrb[0].mxu0
        %700 = vmatprep.mubr.f32.mxu0 0.0
        %701 = vmatmul.mubr.f32.gmra.mrb[0].mxu0 %v481
        %v702 = vpop.f32.mrb[0].mxu0
        %v703 = vadd.f32 %v509, %v702
        %v704 = vpop.f32.mrb[0].mxu0
        %705 = vmatprep.mubr.f32.mxu0 0.0
        %706 = vmatmul.mubr.f32.gmra.mrb[0].mxu0 %v482
        %v707 = vpop.f32.mrb[0].mxu0
        %v708 = vadd.f32 %v509, %v707
        %v709 = vpop.f32.mrb[0].mxu0
        %710 = vmatprep.mubr.f32.mxu0 0.0
        %711 = vmatmul.mubr.f32.gmra.mrb[0].mxu0 %v483
        %v712 = vpop.f32.mrb[0].mxu0
        %v713 = vadd.f32 %v509, %v712
        %v714 = vpop.f32.mrb[0].mxu0
        %715 = vmatprep.mubr.f32.mxu0 0.0
        %716 = vmatmul.mubr.f32.gmra.mrb[0].mxu0 %v484
        %v717 = vpop.f32.mrb[0].mxu0
        %v718 = vadd.f32 %v509, %v717
        %v719 = vpop.f32.mrb[0].mxu0
        %720 = vmatprep.mubr.f32.mxu0 0.0
        %721 = vmatmul.mubr.f32.gmra.mrb[0].mxu0 %v485
        %v722 = vpop.f32.mrb[0].mxu0
        %v723 = vadd.f32 %v509, %v722
        %v724 = vpop.f32.mrb[0].mxu0
        %725 = vmatprep.mubr.f32.mxu0 0.0
        %726 = vmatmul.mubr.f32.gmra.mrb[0].mxu0 %v486
        %v727 = vpop.f32.mrb[0].mxu0
        %v728 = vadd.f32 %v509, %v727
        %v729 = vpop.f32.mrb[0].mxu0
        %730 = vmatprep.mubr.f32.mxu0 0.0
        %731 = vmatmul.mubr.f32.gmra.mrb[0].mxu0 %v487
        %v732 = vpop.f32.mrb[0].mxu0
        %v733 = vadd.f32 %v509, %v732
        %v734 = vpop.f32.mrb[0].mxu0
        %735 = vdwg.mxu0
        %v736 = vld [vmem:[#allocation7] sm:$0xff]
        %v737 = vld [vmem:[#allocation7 + $0x8] sm:$0xff]
        %v738 = vld [vmem:[#allocation7 + $0x10] sm:$0xff]
        %v739 = vld [vmem:[#allocation7 + $0x18] sm:$0xff]
        %v740 = vld [vmem:[#allocation7 + $0x20] sm:$0xff]
        %v741 = vld [vmem:[#allocation7 + $0x28] sm:$0xff]
        %v742 = vld [vmem:[#allocation7 + $0x30] sm:$0xff]
        %v743 = vld [vmem:[#allocation7 + $0x38] sm:$0xff]
        %v744 = vld [vmem:[#allocation7 + $0x40] sm:$0xff]
        %v745 = vld [vmem:[#allocation7 + $0x48] sm:$0xff]
        %v746 = vld [vmem:[#allocation7 + $0x50] sm:$0xff]
        %v747 = vld [vmem:[#allocation7 + $0x58] sm:$0xff]
        %v748 = vld [vmem:[#allocation7 + $0x60] sm:$0xff]
        %v749 = vld [vmem:[#allocation7 + $0x68] sm:$0xff]
        %v750 = vld [vmem:[#allocation7 + $0x70] sm:$0xff]
        %v751 = vld [vmem:[#allocation7 + $0x78] sm:$0xff]
        %v752 = vld [vmem:[%s4] sm:$0x1]
        %v754 = vlaneseq
        %v755 = vshrl.u32 %v754, 7
        %v756 = vsub.s32 0, %v755
        %v757 = vrot.slane %v752, %v756
        %759 = vmatprep.subr.mxu0 0.0
        %760 = vmatpush1.msra.mxu0 %v736
        %761 = vmatprep.subr.mxu0 0.0
        %762 = vmatpush1.msra.mxu0 %v737
        %763 = vmatprep.subr.mxu0 0.0
        %764 = vmatpush1.msra.mxu0 %v738
        %765 = vmatprep.subr.mxu0 0.0
        %766 = vmatpush1.msra.mxu0 %v739
        %767 = vmatprep.subr.mxu0 0.0
        %768 = vmatpush1.msra.mxu0 %v740
        %769 = vmatprep.subr.mxu0 0.0
        %770 = vmatpush1.msra.mxu0 %v741
        %771 = vmatprep.subr.mxu0 0.0
        %772 = vmatpush1.msra.mxu0 %v742
        %773 = vmatprep.subr.mxu0 0.0
        %774 = vmatpush1.msra.mxu0 %v743
        %775 = vmatprep.subr.mxu0 0.0
        %776 = vmatpush1.msra.mxu0 %v744
        %777 = vmatprep.subr.mxu0 0.0
        %778 = vmatpush1.msra.mxu0 %v745
        %779 = vmatprep.subr.mxu0 0.0
        %780 = vmatpush1.msra.mxu0 %v746
        %781 = vmatprep.subr.mxu0 0.0
        %782 = vmatpush1.msra.mxu0 %v747
        %783 = vmatprep.subr.mxu0 0.0
        %784 = vmatpush1.msra.mxu0 %v748
        %785 = vmatprep.subr.mxu0 0.0
        %786 = vmatpush1.msra.mxu0 %v749
        %787 = vmatprep.subr.mxu0 0.0
        %788 = vmatpush1.msra.mxu0 %v750
        %789 = vmatprep.subr.mxu0 0.0
        %790 = vmatpush1.msra.mxu0 %v751
        %791 = vmatprep.subr.mxu0 0.0
        %792 = vmatpush1.msra.mxu0 0.0
        %793 = vmatprep.subr.mxu0 0.0
        %794 = vmatpush1.msra.mxu0 0.0
        %795 = vmatprep.subr.mxu0 0.0
        %796 = vmatpush1.msra.mxu0 0.0
        %797 = vmatprep.subr.mxu0 0.0
        %798 = vmatpush1.msra.mxu0 0.0
        %799 = vmatprep.subr.mxu0 0.0
        %800 = vmatpush1.msra.mxu0 0.0
        %801 = vmatprep.subr.mxu0 0.0
        %802 = vmatpush1.msra.mxu0 0.0
        %803 = vmatprep.subr.mxu0 0.0
        %804 = vmatpush1.msra.mxu0 0.0
        %805 = vmatprep.subr.mxu0 0.0
        %806 = vmatpush1.msra.mxu0 0.0
        %807 = vmatprep.subr.mxu0 0.0
        %808 = vmatpush1.msra.mxu0 0.0
        %809 = vmatprep.subr.mxu0 0.0
        %810 = vmatpush1.msra.mxu0 0.0
        %811 = vmatprep.subr.mxu0 0.0
        %812 = vmatpush1.msra.mxu0 0.0
        %813 = vmatprep.subr.mxu0 0.0
        %814 = vmatpush1.msra.mxu0 0.0
        %815 = vmatprep.subr.mxu0 0.0
        %816 = vmatpush1.msra.mxu0 0.0
        %817 = vmatprep.subr.mxu0 0.0
        %818 = vmatpush1.msra.mxu0 0.0
        %819 = vmatprep.subr.mxu0 0.0
        %820 = vmatpush1.msra.mxu0 0.0
        %821 = vmatprep.subr.mxu0 0.0
        %822 = vmatpush1.msra.mxu0 0.0
        %823 = vmatprep.mubr.f32.mxu0 0.0
        %824 = vmatmul.mubr.f32.gmra.mrb[0].mxu0 %v578
        %v825 = vpop.f32.mrb[0].mxu0
        %v826 = vadd.f32 %v757, %v825
        %v827 = vpop.f32.mrb[0].mxu0
        %828 = vmatprep.mubr.f32.mxu0 0.0
        %829 = vmatmul.mubr.f32.gmra.mrb[0].mxu0 %v583
        %v830 = vpop.f32.mrb[0].mxu0
        %v831 = vadd.f32 %v757, %v830
        %v832 = vpop.f32.mrb[0].mxu0
        %833 = vmatprep.mubr.f32.mxu0 0.0
        %834 = vmatmul.mubr.f32.gmra.mrb[0].mxu0 %v588
        %v835 = vpop.f32.mrb[0].mxu0
        %v836 = vadd.f32 %v757, %v835
        %v837 = vpop.f32.mrb[0].mxu0
        %838 = vmatprep.mubr.f32.mxu0 0.0
        %839 = vmatmul.mubr.f32.gmra.mrb[0].mxu0 %v593
        %v840 = vpop.f32.mrb[0].mxu0
        %v841 = vadd.f32 %v757, %v840
        %v842 = vpop.f32.mrb[0].mxu0
        %843 = vmatprep.mubr.f32.mxu0 0.0
        %844 = vmatmul.mubr.f32.gmra.mrb[0].mxu0 %v598
        %v845 = vpop.f32.mrb[0].mxu0
        %v846 = vadd.f32 %v757, %v845
        %v847 = vpop.f32.mrb[0].mxu0
        %848 = vmatprep.mubr.f32.mxu0 0.0
        %849 = vmatmul.mubr.f32.gmra.mrb[0].mxu0 %v603
        %v850 = vpop.f32.mrb[0].mxu0
        %v851 = vadd.f32 %v757, %v850
        %v852 = vpop.f32.mrb[0].mxu0
        %853 = vmatprep.mubr.f32.mxu0 0.0
        %854 = vmatmul.mubr.f32.gmra.mrb[0].mxu0 %v608
        %v855 = vpop.f32.mrb[0].mxu0
        %v856 = vadd.f32 %v757, %v855
        %v857 = vpop.f32.mrb[0].mxu0
        %858 = vmatprep.mubr.f32.mxu0 0.0
        %859 = vmatmul.mubr.f32.gmra.mrb[0].mxu0 %v613
        %v860 = vpop.f32.mrb[0].mxu0
        %v861 = vadd.f32 %v757, %v860
        %v862 = vpop.f32.mrb[0].mxu0
        %863 = vmatprep.mubr.f32.mxu0 0.0
        %864 = vmatmul.mubr.f32.gmra.mrb[0].mxu0 %v618
        %v865 = vpop.f32.mrb[0].mxu0
        %v866 = vadd.f32 %v757, %v865
        %v867 = vpop.f32.mrb[0].mxu0
        %868 = vmatprep.mubr.f32.mxu0 0.0
        %869 = vmatmul.mubr.f32.gmra.mrb[0].mxu0 %v623
        %v870 = vpop.f32.mrb[0].mxu0
        %v871 = vadd.f32 %v757, %v870
        %v872 = vpop.f32.mrb[0].mxu0
        %873 = vmatprep.mubr.f32.mxu0 0.0
        %874 = vmatmul.mubr.f32.gmra.mrb[0].mxu0 %v628
        %v875 = vpop.f32.mrb[0].mxu0
        %v876 = vadd.f32 %v757, %v875
        %v877 = vpop.f32.mrb[0].mxu0
        %878 = vmatprep.mubr.f32.mxu0 0.0
        %879 = vmatmul.mubr.f32.gmra.mrb[0].mxu0 %v633
        %v880 = vpop.f32.mrb[0].mxu0
        %v881 = vadd.f32 %v757, %v880
        %v882 = vpop.f32.mrb[0].mxu0
        %883 = vmatprep.mubr.f32.mxu0 0.0
        %884 = vmatmul.mubr.f32.gmra.mrb[0].mxu0 %v638
        %v885 = vpop.f32.mrb[0].mxu0
        %v886 = vadd.f32 %v757, %v885
        %v887 = vpop.f32.mrb[0].mxu0
        %888 = vmatprep.mubr.f32.mxu0 0.0
        %889 = vmatmul.mubr.f32.gmra.mrb[0].mxu0 %v643
        %v890 = vpop.f32.mrb[0].mxu0
        %v891 = vadd.f32 %v757, %v890
        %v892 = vpop.f32.mrb[0].mxu0
        %893 = vmatprep.mubr.f32.mxu0 0.0
        %894 = vmatmul.mubr.f32.gmra.mrb[0].mxu0 %v648
        %v895 = vpop.f32.mrb[0].mxu0
        %v896 = vadd.f32 %v757, %v895
        %v897 = vpop.f32.mrb[0].mxu0
        %898 = vmatprep.mubr.f32.mxu0 0.0
        %899 = vmatmul.mubr.f32.gmra.mrb[0].mxu0 %v653
        %v900 = vpop.f32.mrb[0].mxu0
        %v901 = vadd.f32 %v757, %v900
        %v902 = vpop.f32.mrb[0].mxu0
        %903 = vmatprep.mubr.f32.mxu0 0.0
        %904 = vmatmul.mubr.f32.gmra.mrb[0].mxu0 %v658
        %v905 = vpop.f32.mrb[0].mxu0
        %v906 = vadd.f32 %v757, %v905
        %v907 = vpop.f32.mrb[0].mxu0
        %908 = vmatprep.mubr.f32.mxu0 0.0
        %909 = vmatmul.mubr.f32.gmra.mrb[0].mxu0 %v663
        %v910 = vpop.f32.mrb[0].mxu0
        %v911 = vadd.f32 %v757, %v910
        %v912 = vpop.f32.mrb[0].mxu0
        %913 = vmatprep.mubr.f32.mxu0 0.0
        %914 = vmatmul.mubr.f32.gmra.mrb[0].mxu0 %v668
        %v915 = vpop.f32.mrb[0].mxu0
        %v916 = vadd.f32 %v757, %v915
        %v917 = vpop.f32.mrb[0].mxu0
        %918 = vmatprep.mubr.f32.mxu0 0.0
        %919 = vmatmul.mubr.f32.gmra.mrb[0].mxu0 %v673
        %v920 = vpop.f32.mrb[0].mxu0
        %v921 = vadd.f32 %v757, %v920
        %v922 = vpop.f32.mrb[0].mxu0
        %923 = vmatprep.mubr.f32.mxu0 0.0
        %924 = vmatmul.mubr.f32.gmra.mrb[0].mxu0 %v678
        %v925 = vpop.f32.mrb[0].mxu0
        %v926 = vadd.f32 %v757, %v925
        %v927 = vpop.f32.mrb[0].mxu0
        %928 = vmatprep.mubr.f32.mxu0 0.0
        %929 = vmatmul.mubr.f32.gmra.mrb[0].mxu0 %v683
        %v930 = vpop.f32.mrb[0].mxu0
        %v931 = vadd.f32 %v757, %v930
        %v932 = vpop.f32.mrb[0].mxu0
        %933 = vmatprep.mubr.f32.mxu0 0.0
        %934 = vmatmul.mubr.f32.gmra.mrb[0].mxu0 %v688
        %v935 = vpop.f32.mrb[0].mxu0
        %v936 = vadd.f32 %v757, %v935
        %v937 = vpop.f32.mrb[0].mxu0
        %938 = vmatprep.mubr.f32.mxu0 0.0
        %939 = vmatmul.mubr.f32.gmra.mrb[0].mxu0 %v693
        %v940 = vpop.f32.mrb[0].mxu0
        %v941 = vadd.f32 %v757, %v940
        %v942 = vpop.f32.mrb[0].mxu0
        %943 = vmatprep.mubr.f32.mxu0 0.0
        %944 = vmatmul.mubr.f32.gmra.mrb[0].mxu0 %v698
        %v945 = vpop.f32.mrb[0].mxu0
        %v946 = vadd.f32 %v757, %v945
        %v947 = vpop.f32.mrb[0].mxu0
        %948 = vmatprep.mubr.f32.mxu0 0.0
        %949 = vmatmul.mubr.f32.gmra.mrb[0].mxu0 %v703
        %v950 = vpop.f32.mrb[0].mxu0
        %v951 = vadd.f32 %v757, %v950
        %v952 = vpop.f32.mrb[0].mxu0
        %953 = vmatprep.mubr.f32.mxu0 0.0
        %954 = vmatmul.mubr.f32.gmra.mrb[0].mxu0 %v708
        %v955 = vpop.f32.mrb[0].mxu0
        %v956 = vadd.f32 %v757, %v955
        %v957 = vpop.f32.mrb[0].mxu0
        %958 = vmatprep.mubr.f32.mxu0 0.0
        %959 = vmatmul.mubr.f32.gmra.mrb[0].mxu0 %v713
        %v960 = vpop.f32.mrb[0].mxu0
        %v961 = vadd.f32 %v757, %v960
        %v962 = vpop.f32.mrb[0].mxu0
        %963 = vmatprep.mubr.f32.mxu0 0.0
        %964 = vmatmul.mubr.f32.gmra.mrb[0].mxu0 %v718
        %v965 = vpop.f32.mrb[0].mxu0
        %v966 = vadd.f32 %v757, %v965
        %v967 = vpop.f32.mrb[0].mxu0
        %968 = vmatprep.mubr.f32.mxu0 0.0
        %969 = vmatmul.mubr.f32.gmra.mrb[0].mxu0 %v723
        %v970 = vpop.f32.mrb[0].mxu0
        %v971 = vadd.f32 %v757, %v970
        %v972 = vpop.f32.mrb[0].mxu0
        %973 = vmatprep.mubr.f32.mxu0 0.0
        %974 = vmatmul.mubr.f32.gmra.mrb[0].mxu0 %v728
        %v975 = vpop.f32.mrb[0].mxu0
        %v976 = vadd.f32 %v757, %v975
        %v977 = vpop.f32.mrb[0].mxu0
        %978 = vmatprep.mubr.f32.mxu0 0.0
        %979 = vmatmul.mubr.f32.gmra.mrb[0].mxu0 %v733
        %v980 = vpop.f32.mrb[0].mxu0
        %v981 = vadd.f32 %v757, %v980
        %v982 = vpop.f32.mrb[0].mxu0
        %983 = vdwg.mxu0
        %984 = vmin.xlane.f32.xlu0 %v826
        %v985 = vpop.xlane.xlu0 %984
        %986 = vmin.xlane.f32.xlu0 %v831
        %v987 = vpop.xlane.xlu0 %986
        %988 = vmin.xlane.f32.xlu0 %v836
        %v989 = vpop.xlane.xlu0 %988
        %990 = vmin.xlane.f32.xlu0 %v841
        %v991 = vpop.xlane.xlu0 %990
        %992 = vmin.xlane.f32.xlu0 %v846
        %v993 = vpop.xlane.xlu0 %992
        %994 = vmin.xlane.f32.xlu0 %v851
        %v995 = vpop.xlane.xlu0 %994
        %996 = vmin.xlane.f32.xlu0 %v856
        %v997 = vpop.xlane.xlu0 %996
        %998 = vmin.xlane.f32.xlu0 %v861
        %v999 = vpop.xlane.xlu0 %998
        %1000 = vmin.xlane.f32.xlu0 %v866
        %v1001 = vpop.xlane.xlu0 %1000
        %1002 = vmin.xlane.f32.xlu0 %v871
        %v1003 = vpop.xlane.xlu0 %1002
        %1004 = vmin.xlane.f32.xlu0 %v876
        %v1005 = vpop.xlane.xlu0 %1004
        %1006 = vmin.xlane.f32.xlu0 %v881
        %v1007 = vpop.xlane.xlu0 %1006
        %1008 = vmin.xlane.f32.xlu0 %v886
        %v1009 = vpop.xlane.xlu0 %1008
        %1010 = vmin.xlane.f32.xlu0 %v891
        %v1011 = vpop.xlane.xlu0 %1010
        %1012 = vmin.xlane.f32.xlu0 %v896
        %v1013 = vpop.xlane.xlu0 %1012
        %1014 = vmin.xlane.f32.xlu0 %v901
        %v1015 = vpop.xlane.xlu0 %1014
        %1016 = vmin.xlane.f32.xlu0 %v906
        %v1017 = vpop.xlane.xlu0 %1016
        %1018 = vmin.xlane.f32.xlu0 %v911
        %v1019 = vpop.xlane.xlu0 %1018
        %1020 = vmin.xlane.f32.xlu0 %v916
        %v1021 = vpop.xlane.xlu0 %1020
        %1022 = vmin.xlane.f32.xlu0 %v921
        %v1023 = vpop.xlane.xlu0 %1022
        %1024 = vmin.xlane.f32.xlu0 %v926
        %v1025 = vpop.xlane.xlu0 %1024
        %1026 = vmin.xlane.f32.xlu0 %v931
        %v1027 = vpop.xlane.xlu0 %1026
        %1028 = vmin.xlane.f32.xlu0 %v936
        %v1029 = vpop.xlane.xlu0 %1028
        %1030 = vmin.xlane.f32.xlu0 %v941
        %v1031 = vpop.xlane.xlu0 %1030
        %1032 = vmin.xlane.f32.xlu0 %v946
        %v1033 = vpop.xlane.xlu0 %1032
        %1034 = vmin.xlane.f32.xlu0 %v951
        %v1035 = vpop.xlane.xlu0 %1034
        %1036 = vmin.xlane.f32.xlu0 %v956
        %v1037 = vpop.xlane.xlu0 %1036
        %1038 = vmin.xlane.f32.xlu0 %v961
        %v1039 = vpop.xlane.xlu0 %1038
        %1040 = vmin.xlane.f32.xlu0 %v966
        %v1041 = vpop.xlane.xlu0 %1040
        %1042 = vmin.xlane.f32.xlu0 %v971
        %v1043 = vpop.xlane.xlu0 %1042
        %1044 = vmin.xlane.f32.xlu0 %v976
        %v1045 = vpop.xlane.xlu0 %1044
        %1046 = vmin.xlane.f32.xlu0 %v981
        %v1047 = vpop.xlane.xlu0 %1046
        %v1048 = vld [vmem:[%s5] sm:$0x1]
        %vm1049 = vcmp.le.f32.partialorder %v826, %v985
        %vm1050 = vcmp.le.f32.partialorder %v831, %v987
        %vm1051 = vcmp.le.f32.partialorder %v836, %v989
        %vm1052 = vcmp.le.f32.partialorder %v841, %v991
        %vm1053 = vcmp.le.f32.partialorder %v846, %v993
        %vm1054 = vcmp.le.f32.partialorder %v851, %v995
        %vm1055 = vcmp.le.f32.partialorder %v856, %v997
        %vm1056 = vcmp.le.f32.partialorder %v861, %v999
        %vm1057 = vcmp.le.f32.partialorder %v866, %v1001
        %vm1058 = vcmp.le.f32.partialorder %v871, %v1003
        %vm1059 = vcmp.le.f32.partialorder %v876, %v1005
        %vm1060 = vcmp.le.f32.partialorder %v881, %v1007
        %vm1061 = vcmp.le.f32.partialorder %v886, %v1009
        %vm1062 = vcmp.le.f32.partialorder %v891, %v1011
        %vm1063 = vcmp.le.f32.partialorder %v896, %v1013
        %vm1064 = vcmp.le.f32.partialorder %v901, %v1015
        %vm1065 = vcmp.le.f32.partialorder %v906, %v1017
        %vm1066 = vcmp.le.f32.partialorder %v911, %v1019
        %vm1067 = vcmp.le.f32.partialorder %v916, %v1021
        %vm1068 = vcmp.le.f32.partialorder %v921, %v1023
        %vm1069 = vcmp.le.f32.partialorder %v926, %v1025
        %vm1070 = vcmp.le.f32.partialorder %v931, %v1027
        %vm1071 = vcmp.le.f32.partialorder %v936, %v1029
        %vm1072 = vcmp.le.f32.partialorder %v941, %v1031
        %vm1073 = vcmp.le.f32.partialorder %v946, %v1033
        %vm1074 = vcmp.le.f32.partialorder %v951, %v1035
        %vm1075 = vcmp.le.f32.partialorder %v956, %v1037
        %vm1076 = vcmp.le.f32.partialorder %v961, %v1039
        %vm1077 = vcmp.le.f32.partialorder %v966, %v1041
        %vm1078 = vcmp.le.f32.partialorder %v971, %v1043
        %vm1079 = vcmp.le.f32.partialorder %v976, %v1045
        %vm1080 = vcmp.le.f32.partialorder %v981, %v1047
        %v1082 = vlaneseq
        %v1083 = vshrl.u32 %v1082, 7
        %v1084 = vsub.s32 0, %v1083
        %v1085 = vrot.slane %v1048, %v1084
        %v1087 = vsel %vm1049, %v1085, 128.0
        %v1088 = vsel %vm1050, %v1085, 128.0
        %v1089 = vsel %vm1051, %v1085, 128.0
        %v1090 = vsel %vm1052, %v1085, 128.0
        %v1091 = vsel %vm1053, %v1085, 128.0
        %v1092 = vsel %vm1054, %v1085, 128.0
        %v1093 = vsel %vm1055, %v1085, 128.0
        %v1094 = vsel %vm1056, %v1085, 128.0
        %v1095 = vsel %vm1057, %v1085, 128.0
        %v1096 = vsel %vm1058, %v1085, 128.0
        %v1097 = vsel %vm1059, %v1085, 128.0
        %v1098 = vsel %vm1060, %v1085, 128.0
        %v1099 = vsel %vm1061, %v1085, 128.0
        %v1100 = vsel %vm1062, %v1085, 128.0
        %v1101 = vsel %vm1063, %v1085, 128.0
        %v1102 = vsel %vm1064, %v1085, 128.0
        %v1103 = vsel %vm1065, %v1085, 128.0
        %v1104 = vsel %vm1066, %v1085, 128.0
        %v1105 = vsel %vm1067, %v1085, 128.0
        %v1106 = vsel %vm1068, %v1085, 128.0
        %v1107 = vsel %vm1069, %v1085, 128.0
        %v1108 = vsel %vm1070, %v1085, 128.0
        %v1109 = vsel %vm1071, %v1085, 128.0
        %v1110 = vsel %vm1072, %v1085, 128.0
        %v1111 = vsel %vm1073, %v1085, 128.0
        %v1112 = vsel %vm1074, %v1085, 128.0
        %v1113 = vsel %vm1075, %v1085, 128.0
        %v1114 = vsel %vm1076, %v1085, 128.0
        %v1115 = vsel %vm1077, %v1085, 128.0
        %v1116 = vsel %vm1078, %v1085, 128.0
        %v1117 = vsel %vm1079, %v1085, 128.0
        %v1118 = vsel %vm1080, %v1085, 128.0
        %1119 = vmin.xlane.f32.xlu0 %v1087
        %v1120 = vpop.xlane.xlu0 %1119
        %1121 = vmin.xlane.f32.xlu0 %v1088
        %v1122 = vpop.xlane.xlu0 %1121
        %1123 = vmin.xlane.f32.xlu0 %v1089
        %v1124 = vpop.xlane.xlu0 %1123
        %1125 = vmin.xlane.f32.xlu0 %v1090
        %v1126 = vpop.xlane.xlu0 %1125
        %1127 = vmin.xlane.f32.xlu0 %v1091
        %v1128 = vpop.xlane.xlu0 %1127
        %1129 = vmin.xlane.f32.xlu0 %v1092
        %v1130 = vpop.xlane.xlu0 %1129
        %1131 = vmin.xlane.f32.xlu0 %v1093
        %v1132 = vpop.xlane.xlu0 %1131
        %1133 = vmin.xlane.f32.xlu0 %v1094
        %v1134 = vpop.xlane.xlu0 %1133
        %1135 = vmin.xlane.f32.xlu0 %v1095
        %v1136 = vpop.xlane.xlu0 %1135
        %1137 = vmin.xlane.f32.xlu0 %v1096
        %v1138 = vpop.xlane.xlu0 %1137
        %1139 = vmin.xlane.f32.xlu0 %v1097
        %v1140 = vpop.xlane.xlu0 %1139
        %1141 = vmin.xlane.f32.xlu0 %v1098
        %v1142 = vpop.xlane.xlu0 %1141
        %1143 = vmin.xlane.f32.xlu0 %v1099
        %v1144 = vpop.xlane.xlu0 %1143
        %1145 = vmin.xlane.f32.xlu0 %v1100
        %v1146 = vpop.xlane.xlu0 %1145
        %1147 = vmin.xlane.f32.xlu0 %v1101
        %v1148 = vpop.xlane.xlu0 %1147
        %1149 = vmin.xlane.f32.xlu0 %v1102
        %v1150 = vpop.xlane.xlu0 %1149
        %1151 = vmin.xlane.f32.xlu0 %v1103
        %v1152 = vpop.xlane.xlu0 %1151
        %1153 = vmin.xlane.f32.xlu0 %v1104
        %v1154 = vpop.xlane.xlu0 %1153
        %1155 = vmin.xlane.f32.xlu0 %v1105
        %v1156 = vpop.xlane.xlu0 %1155
        %1157 = vmin.xlane.f32.xlu0 %v1106
        %v1158 = vpop.xlane.xlu0 %1157
        %1159 = vmin.xlane.f32.xlu0 %v1107
        %v1160 = vpop.xlane.xlu0 %1159
        %1161 = vmin.xlane.f32.xlu0 %v1108
        %v1162 = vpop.xlane.xlu0 %1161
        %1163 = vmin.xlane.f32.xlu0 %v1109
        %v1164 = vpop.xlane.xlu0 %1163
        %1165 = vmin.xlane.f32.xlu0 %v1110
        %v1166 = vpop.xlane.xlu0 %1165
        %1167 = vmin.xlane.f32.xlu0 %v1111
        %v1168 = vpop.xlane.xlu0 %1167
        %1169 = vmin.xlane.f32.xlu0 %v1112
        %v1170 = vpop.xlane.xlu0 %1169
        %1171 = vmin.xlane.f32.xlu0 %v1113
        %v1172 = vpop.xlane.xlu0 %1171
        %1173 = vmin.xlane.f32.xlu0 %v1114
        %v1174 = vpop.xlane.xlu0 %1173
        %1175 = vmin.xlane.f32.xlu0 %v1115
        %v1176 = vpop.xlane.xlu0 %1175
        %1177 = vmin.xlane.f32.xlu0 %v1116
        %v1178 = vpop.xlane.xlu0 %1177
        %1179 = vmin.xlane.f32.xlu0 %v1117
        %v1180 = vpop.xlane.xlu0 %1179
        %1181 = vmin.xlane.f32.xlu0 %v1118
        %v1182 = vpop.xlane.xlu0 %1181
        %v1183 = vmul.f32 %v578, %v578
        %v1184 = vmul.f32 %v583, %v583
        %v1185 = vmul.f32 %v588, %v588
        %v1186 = vmul.f32 %v593, %v593
        %v1187 = vmul.f32 %v598, %v598
        %v1188 = vmul.f32 %v603, %v603
        %v1189 = vmul.f32 %v608, %v608
        %v1190 = vmul.f32 %v613, %v613
        %v1191 = vmul.f32 %v618, %v618
        %v1192 = vmul.f32 %v623, %v623
        %v1193 = vmul.f32 %v628, %v628
        %v1194 = vmul.f32 %v633, %v633
        %v1195 = vmul.f32 %v638, %v638
        %v1196 = vmul.f32 %v643, %v643
        %v1197 = vmul.f32 %v648, %v648
        %v1198 = vmul.f32 %v653, %v653
        %v1199 = vmul.f32 %v658, %v658
        %v1200 = vmul.f32 %v663, %v663
        %v1201 = vmul.f32 %v668, %v668
        %v1202 = vmul.f32 %v673, %v673
        %v1203 = vmul.f32 %v678, %v678
        %v1204 = vmul.f32 %v683, %v683
        %v1205 = vmul.f32 %v688, %v688
        %v1206 = vmul.f32 %v693, %v693
        %v1207 = vmul.f32 %v698, %v698
        %v1208 = vmul.f32 %v703, %v703
        %v1209 = vmul.f32 %v708, %v708
        %v1210 = vmul.f32 %v713, %v713
        %v1211 = vmul.f32 %v718, %v718
        %v1212 = vmul.f32 %v723, %v723
        %v1213 = vmul.f32 %v728, %v728
        %v1214 = vmul.f32 %v733, %v733
        %1215 = vadd.xlane.f32.xlu0 %v1183
        %v1216 = vpop.xlane.xlu0 %1215
        %1217 = vadd.xlane.f32.xlu0 %v1184
        %v1218 = vpop.xlane.xlu0 %1217
        %1219 = vadd.xlane.f32.xlu0 %v1185
        %v1220 = vpop.xlane.xlu0 %1219
        %1221 = vadd.xlane.f32.xlu0 %v1186
        %v1222 = vpop.xlane.xlu0 %1221
        %1223 = vadd.xlane.f32.xlu0 %v1187
        %v1224 = vpop.xlane.xlu0 %1223
        %1225 = vadd.xlane.f32.xlu0 %v1188
        %v1226 = vpop.xlane.xlu0 %1225
        %1227 = vadd.xlane.f32.xlu0 %v1189
        %v1228 = vpop.xlane.xlu0 %1227
        %1229 = vadd.xlane.f32.xlu0 %v1190
        %v1230 = vpop.xlane.xlu0 %1229
        %1231 = vadd.xlane.f32.xlu0 %v1191
        %v1232 = vpop.xlane.xlu0 %1231
        %1233 = vadd.xlane.f32.xlu0 %v1192
        %v1234 = vpop.xlane.xlu0 %1233
        %1235 = vadd.xlane.f32.xlu0 %v1193
        %v1236 = vpop.xlane.xlu0 %1235
        %1237 = vadd.xlane.f32.xlu0 %v1194
        %v1238 = vpop.xlane.xlu0 %1237
        %1239 = vadd.xlane.f32.xlu0 %v1195
        %v1240 = vpop.xlane.xlu0 %1239
        %1241 = vadd.xlane.f32.xlu0 %v1196
        %v1242 = vpop.xlane.xlu0 %1241
        %1243 = vadd.xlane.f32.xlu0 %v1197
        %v1244 = vpop.xlane.xlu0 %1243
        %1245 = vadd.xlane.f32.xlu0 %v1198
        %v1246 = vpop.xlane.xlu0 %1245
        %1247 = vadd.xlane.f32.xlu0 %v1199
        %v1248 = vpop.xlane.xlu0 %1247
        %1249 = vadd.xlane.f32.xlu0 %v1200
        %v1250 = vpop.xlane.xlu0 %1249
        %1251 = vadd.xlane.f32.xlu0 %v1201
        %v1252 = vpop.xlane.xlu0 %1251
        %1253 = vadd.xlane.f32.xlu0 %v1202
        %v1254 = vpop.xlane.xlu0 %1253
        %1255 = vadd.xlane.f32.xlu0 %v1203
        %v1256 = vpop.xlane.xlu0 %1255
        %1257 = vadd.xlane.f32.xlu0 %v1204
        %v1258 = vpop.xlane.xlu0 %1257
        %1259 = vadd.xlane.f32.xlu0 %v1205
        %v1260 = vpop.xlane.xlu0 %1259
        %1261 = vadd.xlane.f32.xlu0 %v1206
        %v1262 = vpop.xlane.xlu0 %1261
        %1263 = vadd.xlane.f32.xlu0 %v1207
        %v1264 = vpop.xlane.xlu0 %1263
        %1265 = vadd.xlane.f32.xlu0 %v1208
        %v1266 = vpop.xlane.xlu0 %1265
        %1267 = vadd.xlane.f32.xlu0 %v1209
        %v1268 = vpop.xlane.xlu0 %1267
        %1269 = vadd.xlane.f32.xlu0 %v1210
        %v1270 = vpop.xlane.xlu0 %1269
        %1271 = vadd.xlane.f32.xlu0 %v1211
        %v1272 = vpop.xlane.xlu0 %1271
        %1273 = vadd.xlane.f32.xlu0 %v1212
        %v1274 = vpop.xlane.xlu0 %1273
        %1275 = vadd.xlane.f32.xlu0 %v1213
        %v1276 = vpop.xlane.xlu0 %1275
        %1277 = vadd.xlane.f32.xlu0 %v1214
        %v1278 = vpop.xlane.xlu0 %1277
        %v1279 = vadd.f32 %v1216, %v985
        %v1280 = vadd.f32 %v1218, %v987
        %v1281 = vadd.f32 %v1220, %v989
        %v1282 = vadd.f32 %v1222, %v991
        %v1283 = vadd.f32 %v1224, %v993
        %v1284 = vadd.f32 %v1226, %v995
        %v1285 = vadd.f32 %v1228, %v997
        %v1286 = vadd.f32 %v1230, %v999
        %v1287 = vadd.f32 %v1232, %v1001
        %v1288 = vadd.f32 %v1234, %v1003
        %v1289 = vadd.f32 %v1236, %v1005
        %v1290 = vadd.f32 %v1238, %v1007
        %v1291 = vadd.f32 %v1240, %v1009
        %v1292 = vadd.f32 %v1242, %v1011
        %v1293 = vadd.f32 %v1244, %v1013
        %v1294 = vadd.f32 %v1246, %v1015
        %v1295 = vadd.f32 %v1248, %v1017
        %v1296 = vadd.f32 %v1250, %v1019
        %v1297 = vadd.f32 %v1252, %v1021
        %v1298 = vadd.f32 %v1254, %v1023
        %v1299 = vadd.f32 %v1256, %v1025
        %v1300 = vadd.f32 %v1258, %v1027
        %v1301 = vadd.f32 %v1260, %v1029
        %v1302 = vadd.f32 %v1262, %v1031
        %v1303 = vadd.f32 %v1264, %v1033
        %v1304 = vadd.f32 %v1266, %v1035
        %v1305 = vadd.f32 %v1268, %v1037
        %v1306 = vadd.f32 %v1270, %v1039
        %v1307 = vadd.f32 %v1272, %v1041
        %v1308 = vadd.f32 %v1274, %v1043
        %v1309 = vadd.f32 %v1276, %v1045
        %v1310 = vadd.f32 %v1278, %v1047
        %v1311 = vmax.f32 %v1279, 0.0
        %v1312 = vmax.f32 %v1280, 0.0
        %v1313 = vmax.f32 %v1281, 0.0
        %v1314 = vmax.f32 %v1282, 0.0
        %v1315 = vmax.f32 %v1283, 0.0
        %v1316 = vmax.f32 %v1284, 0.0
        %v1317 = vmax.f32 %v1285, 0.0
        %v1318 = vmax.f32 %v1286, 0.0
        %v1319 = vmax.f32 %v1287, 0.0
        %v1320 = vmax.f32 %v1288, 0.0
        %v1321 = vmax.f32 %v1289, 0.0
        %v1322 = vmax.f32 %v1290, 0.0
        %v1323 = vmax.f32 %v1291, 0.0
        %v1324 = vmax.f32 %v1292, 0.0
        %v1325 = vmax.f32 %v1293, 0.0
        %v1326 = vmax.f32 %v1294, 0.0
        %v1327 = vmax.f32 %v1295, 0.0
        %v1328 = vmax.f32 %v1296, 0.0
        %v1329 = vmax.f32 %v1297, 0.0
        %v1330 = vmax.f32 %v1298, 0.0
        %v1331 = vmax.f32 %v1299, 0.0
        %v1332 = vmax.f32 %v1300, 0.0
        %v1333 = vmax.f32 %v1301, 0.0
        %v1334 = vmax.f32 %v1302, 0.0
        %v1335 = vmax.f32 %v1303, 0.0
        %v1336 = vmax.f32 %v1304, 0.0
        %v1337 = vmax.f32 %v1305, 0.0
        %v1338 = vmax.f32 %v1306, 0.0
        %v1339 = vmax.f32 %v1307, 0.0
        %v1340 = vmax.f32 %v1308, 0.0
        %v1341 = vmax.f32 %v1309, 0.0
        %v1342 = vmax.f32 %v1310, 0.0
        %s1343 = smul.u32 %s33, 256
        %v1344 = vlaneseq
        %v1345 = vshrl.u32 %v1344, 7
        %v1346 = vadd.s32 %v1345, 8
        %v1347 = vadd.s32 %v1345, 16
        %v1348 = vadd.s32 %v1345, 24
        %v1349 = vadd.s32 %v1345, 32
        %v1350 = vadd.s32 %v1345, 40
        %v1351 = vadd.s32 %v1345, 48
        %v1352 = vadd.s32 %v1345, 56
        %v1353 = vadd.s32 %v1345, 64
        %v1354 = vadd.s32 %v1345, 72
        %v1355 = vadd.s32 %v1345, 80
        %v1356 = vadd.s32 %v1345, 88
        %v1357 = vadd.s32 %v1345, 96
        %v1358 = vadd.s32 %v1345, 104
        %v1359 = vadd.s32 %v1345, 112
        %v1360 = vadd.s32 %v1345, 120
        %v1361 = vadd.s32 %v1345, 128
        %v1362 = vadd.s32 %v1345, 136
        %v1363 = vadd.s32 %v1345, 144
        %v1364 = vadd.s32 %v1345, 152
        %v1365 = vadd.s32 %v1345, 160
        %v1366 = vadd.s32 %v1345, 168
        %v1367 = vadd.s32 %v1345, 176
        %v1368 = vadd.s32 %v1345, 184
        %v1369 = vadd.s32 %v1345, 192
        %v1370 = vadd.s32 %v1345, 200
        %v1371 = vadd.s32 %v1345, 208
        %v1372 = vadd.s32 %v1345, 216
        %v1373 = vadd.s32 %v1345, 224
        %v1374 = vadd.s32 %v1345, 232
        %v1375 = vadd.s32 %v1345, 240
        %v1376 = vadd.s32 %v1345, 248
        %v1377 = vstv %s1343
        %v1378 = vadd.s32 %v1377, %v1345
        %v1379 = vadd.s32 %v1377, %v1346
        %v1380 = vadd.s32 %v1377, %v1347
        %v1381 = vadd.s32 %v1377, %v1348
        %v1382 = vadd.s32 %v1377, %v1349
        %v1383 = vadd.s32 %v1377, %v1350
        %v1384 = vadd.s32 %v1377, %v1351
        %v1385 = vadd.s32 %v1377, %v1352
        %v1386 = vadd.s32 %v1377, %v1353
        %v1387 = vadd.s32 %v1377, %v1354
        %v1388 = vadd.s32 %v1377, %v1355
        %v1389 = vadd.s32 %v1377, %v1356
        %v1390 = vadd.s32 %v1377, %v1357
        %v1391 = vadd.s32 %v1377, %v1358
        %v1392 = vadd.s32 %v1377, %v1359
        %v1393 = vadd.s32 %v1377, %v1360
        %v1394 = vadd.s32 %v1377, %v1361
        %v1395 = vadd.s32 %v1377, %v1362
        %v1396 = vadd.s32 %v1377, %v1363
        %v1397 = vadd.s32 %v1377, %v1364
        %v1398 = vadd.s32 %v1377, %v1365
        %v1399 = vadd.s32 %v1377, %v1366
        %v1400 = vadd.s32 %v1377, %v1367
        %v1401 = vadd.s32 %v1377, %v1368
        %v1402 = vadd.s32 %v1377, %v1369
        %v1403 = vadd.s32 %v1377, %v1370
        %v1404 = vadd.s32 %v1377, %v1371
        %v1405 = vadd.s32 %v1377, %v1372
        %v1406 = vadd.s32 %v1377, %v1373
        %v1407 = vadd.s32 %v1377, %v1374
        %v1408 = vadd.s32 %v1377, %v1375
        %v1409 = vadd.s32 %v1377, %v1376
        %vm1410 = vcmp.lt.s32.totalorder %v1378, 400
        %vm1411 = vcmp.lt.s32.totalorder %v1379, 400
        %vm1412 = vcmp.lt.s32.totalorder %v1380, 400
        %vm1413 = vcmp.lt.s32.totalorder %v1381, 400
        %vm1414 = vcmp.lt.s32.totalorder %v1382, 400
        %vm1415 = vcmp.lt.s32.totalorder %v1383, 400
        %vm1416 = vcmp.lt.s32.totalorder %v1384, 400
        %vm1417 = vcmp.lt.s32.totalorder %v1385, 400
        %vm1418 = vcmp.lt.s32.totalorder %v1386, 400
        %vm1419 = vcmp.lt.s32.totalorder %v1387, 400
        %vm1420 = vcmp.lt.s32.totalorder %v1388, 400
        %vm1421 = vcmp.lt.s32.totalorder %v1389, 400
        %vm1422 = vcmp.lt.s32.totalorder %v1390, 400
        %vm1423 = vcmp.lt.s32.totalorder %v1391, 400
        %vm1424 = vcmp.lt.s32.totalorder %v1392, 400
        %vm1425 = vcmp.lt.s32.totalorder %v1393, 400
        %vm1426 = vcmp.lt.s32.totalorder %v1394, 400
        %vm1427 = vcmp.lt.s32.totalorder %v1395, 400
        %vm1428 = vcmp.lt.s32.totalorder %v1396, 400
        %vm1429 = vcmp.lt.s32.totalorder %v1397, 400
        %vm1430 = vcmp.lt.s32.totalorder %v1398, 400
        %vm1431 = vcmp.lt.s32.totalorder %v1399, 400
        %vm1432 = vcmp.lt.s32.totalorder %v1400, 400
        %vm1433 = vcmp.lt.s32.totalorder %v1401, 400
        %vm1434 = vcmp.lt.s32.totalorder %v1402, 400
        %vm1435 = vcmp.lt.s32.totalorder %v1403, 400
        %vm1436 = vcmp.lt.s32.totalorder %v1404, 400
        %vm1437 = vcmp.lt.s32.totalorder %v1405, 400
        %vm1438 = vcmp.lt.s32.totalorder %v1406, 400
        %vm1439 = vcmp.lt.s32.totalorder %v1407, 400
        %vm1440 = vcmp.lt.s32.totalorder %v1408, 400
        %vm1441 = vcmp.lt.s32.totalorder %v1409, 400
        %v1442 = vsel %vm1410, %v1311, 0.0
        %v1443 = vsel %vm1411, %v1312, 0.0
        %v1444 = vsel %vm1412, %v1313, 0.0
        %v1445 = vsel %vm1413, %v1314, 0.0
        %v1446 = vsel %vm1414, %v1315, 0.0
        %v1447 = vsel %vm1415, %v1316, 0.0
        %v1448 = vsel %vm1416, %v1317, 0.0
        %v1449 = vsel %vm1417, %v1318, 0.0
        %v1450 = vsel %vm1418, %v1319, 0.0
        %v1451 = vsel %vm1419, %v1320, 0.0
        %v1452 = vsel %vm1420, %v1321, 0.0
        %v1453 = vsel %vm1421, %v1322, 0.0
        %v1454 = vsel %vm1422, %v1323, 0.0
        %v1455 = vsel %vm1423, %v1324, 0.0
        %v1456 = vsel %vm1424, %v1325, 0.0
        %v1457 = vsel %vm1425, %v1326, 0.0
        %v1458 = vsel %vm1426, %v1327, 0.0
        %v1459 = vsel %vm1427, %v1328, 0.0
        %v1460 = vsel %vm1428, %v1329, 0.0
        %v1461 = vsel %vm1429, %v1330, 0.0
        %v1462 = vsel %vm1430, %v1331, 0.0
        %v1463 = vsel %vm1431, %v1332, 0.0
        %v1464 = vsel %vm1432, %v1333, 0.0
        %v1465 = vsel %vm1433, %v1334, 0.0
        %v1466 = vsel %vm1434, %v1335, 0.0
        %v1467 = vsel %vm1435, %v1336, 0.0
        %v1468 = vsel %vm1436, %v1337, 0.0
        %v1469 = vsel %vm1437, %v1338, 0.0
        %v1470 = vsel %vm1438, %v1339, 0.0
        %v1471 = vsel %vm1439, %v1340, 0.0
        %v1472 = vsel %vm1440, %v1341, 0.0
        %v1473 = vsel %vm1441, %v1342, 0.0
        %vm1474 = vcmp.eq.f32.partialorder %v1085, %v1120
        %vm1475 = vcmp.eq.f32.partialorder %v1085, %v1122
        %vm1476 = vcmp.eq.f32.partialorder %v1085, %v1124
        %vm1477 = vcmp.eq.f32.partialorder %v1085, %v1126
        %vm1478 = vcmp.eq.f32.partialorder %v1085, %v1128
        %vm1479 = vcmp.eq.f32.partialorder %v1085, %v1130
        %vm1480 = vcmp.eq.f32.partialorder %v1085, %v1132
        %vm1481 = vcmp.eq.f32.partialorder %v1085, %v1134
        %vm1482 = vcmp.eq.f32.partialorder %v1085, %v1136
        %vm1483 = vcmp.eq.f32.partialorder %v1085, %v1138
        %vm1484 = vcmp.eq.f32.partialorder %v1085, %v1140
        %vm1485 = vcmp.eq.f32.partialorder %v1085, %v1142
        %vm1486 = vcmp.eq.f32.partialorder %v1085, %v1144
        %vm1487 = vcmp.eq.f32.partialorder %v1085, %v1146
        %vm1488 = vcmp.eq.f32.partialorder %v1085, %v1148
        %vm1489 = vcmp.eq.f32.partialorder %v1085, %v1150
        %vm1490 = vcmp.eq.f32.partialorder %v1085, %v1152
        %vm1491 = vcmp.eq.f32.partialorder %v1085, %v1154
        %vm1492 = vcmp.eq.f32.partialorder %v1085, %v1156
        %vm1493 = vcmp.eq.f32.partialorder %v1085, %v1158
        %vm1494 = vcmp.eq.f32.partialorder %v1085, %v1160
        %vm1495 = vcmp.eq.f32.partialorder %v1085, %v1162
        %vm1496 = vcmp.eq.f32.partialorder %v1085, %v1164
        %vm1497 = vcmp.eq.f32.partialorder %v1085, %v1166
        %vm1498 = vcmp.eq.f32.partialorder %v1085, %v1168
        %vm1499 = vcmp.eq.f32.partialorder %v1085, %v1170
        %vm1500 = vcmp.eq.f32.partialorder %v1085, %v1172
        %vm1501 = vcmp.eq.f32.partialorder %v1085, %v1174
        %vm1502 = vcmp.eq.f32.partialorder %v1085, %v1176
        %vm1503 = vcmp.eq.f32.partialorder %v1085, %v1178
        %vm1504 = vcmp.eq.f32.partialorder %v1085, %v1180
        %vm1505 = vcmp.eq.f32.partialorder %v1085, %v1182
        %v1506 = vsel %vm1474, 1, 0
        %v1507 = vsel %vm1475, 1, 0
        %v1508 = vsel %vm1476, 1, 0
        %v1509 = vsel %vm1477, 1, 0
        %v1510 = vsel %vm1478, 1, 0
        %v1511 = vsel %vm1479, 1, 0
        %v1512 = vsel %vm1480, 1, 0
        %v1513 = vsel %vm1481, 1, 0
        %v1514 = vsel %vm1482, 1, 0
        %v1515 = vsel %vm1483, 1, 0
        %v1516 = vsel %vm1484, 1, 0
        %v1517 = vsel %vm1485, 1, 0
        %v1518 = vsel %vm1486, 1, 0
        %v1519 = vsel %vm1487, 1, 0
        %v1520 = vsel %vm1488, 1, 0
        %v1521 = vsel %vm1489, 1, 0
        %v1522 = vsel %vm1490, 1, 0
        %v1523 = vsel %vm1491, 1, 0
        %v1524 = vsel %vm1492, 1, 0
        %v1525 = vsel %vm1493, 1, 0
        %v1526 = vsel %vm1494, 1, 0
        %v1527 = vsel %vm1495, 1, 0
        %v1528 = vsel %vm1496, 1, 0
        %v1529 = vsel %vm1497, 1, 0
        %v1530 = vsel %vm1498, 1, 0
        %v1531 = vsel %vm1499, 1, 0
        %v1532 = vsel %vm1500, 1, 0
        %v1533 = vsel %vm1501, 1, 0
        %v1534 = vsel %vm1502, 1, 0
        %v1535 = vsel %vm1503, 1, 0
        %v1536 = vsel %vm1504, 1, 0
        %v1537 = vsel %vm1505, 1, 0
        %v1538 = vcvt.s32.f32 %v1506
        %v1539 = vcvt.s32.f32 %v1507
        %v1540 = vcvt.s32.f32 %v1508
        %v1541 = vcvt.s32.f32 %v1509
        %v1542 = vcvt.s32.f32 %v1510
        %v1543 = vcvt.s32.f32 %v1511
        %v1544 = vcvt.s32.f32 %v1512
        %v1545 = vcvt.s32.f32 %v1513
        %v1546 = vcvt.s32.f32 %v1514
        %v1547 = vcvt.s32.f32 %v1515
        %v1548 = vcvt.s32.f32 %v1516
        %v1549 = vcvt.s32.f32 %v1517
        %v1550 = vcvt.s32.f32 %v1518
        %v1551 = vcvt.s32.f32 %v1519
        %v1552 = vcvt.s32.f32 %v1520
        %v1553 = vcvt.s32.f32 %v1521
        %v1554 = vcvt.s32.f32 %v1522
        %v1555 = vcvt.s32.f32 %v1523
        %v1556 = vcvt.s32.f32 %v1524
        %v1557 = vcvt.s32.f32 %v1525
        %v1558 = vcvt.s32.f32 %v1526
        %v1559 = vcvt.s32.f32 %v1527
        %v1560 = vcvt.s32.f32 %v1528
        %v1561 = vcvt.s32.f32 %v1529
        %v1562 = vcvt.s32.f32 %v1530
        %v1563 = vcvt.s32.f32 %v1531
        %v1564 = vcvt.s32.f32 %v1532
        %v1565 = vcvt.s32.f32 %v1533
        %v1566 = vcvt.s32.f32 %v1534
        %v1567 = vcvt.s32.f32 %v1535
        %v1568 = vcvt.s32.f32 %v1536
        %v1569 = vcvt.s32.f32 %v1537
        %v1570 = vld [vmem:[#allocation8] sm:$0xff]
        %v1571 = vld [vmem:[#allocation8 + $0x8] sm:$0xff]
        %v1572 = vld [vmem:[#allocation8 + $0x10] sm:$0xff]
        %v1573 = vld [vmem:[#allocation8 + $0x18] sm:$0xff]
        %v1574 = vld [vmem:[#allocation8 + $0x20] sm:$0xff]
        %v1575 = vld [vmem:[#allocation8 + $0x28] sm:$0xff]
        %v1576 = vld [vmem:[#allocation8 + $0x30] sm:$0xff]
        %v1577 = vld [vmem:[#allocation8 + $0x38] sm:$0xff]
        %v1578 = vld [vmem:[#allocation8 + $0x40] sm:$0xff]
        %v1579 = vld [vmem:[#allocation8 + $0x48] sm:$0xff]
        %v1580 = vld [vmem:[#allocation8 + $0x50] sm:$0xff]
        %v1581 = vld [vmem:[#allocation8 + $0x58] sm:$0xff]
        %v1582 = vld [vmem:[#allocation8 + $0x60] sm:$0xff]
        %v1583 = vld [vmem:[#allocation8 + $0x68] sm:$0xff]
        %v1584 = vld [vmem:[#allocation8 + $0x70] sm:$0xff]
        %v1585 = vld [vmem:[#allocation8 + $0x78] sm:$0xff]
        %v1586 = vld [vmem:[%s7] sm:$0x1]
        %v1588 = vlaneseq
        %v1589 = vshrl.u32 %v1588, 7
        %v1590 = vsub.s32 0, %v1589
        %v1591 = vrot.slane %v1586, %v1590
        %1593 = vmatprep.subr.mxu0 0.0
        %1594 = vmatpush1.msra.mxu0 %v1570
        %1595 = vmatprep.subr.mxu0 0.0
        %1596 = vmatpush1.msra.mxu0 %v1571
        %1597 = vmatprep.subr.mxu0 0.0
        %1598 = vmatpush1.msra.mxu0 %v1572
        %1599 = vmatprep.subr.mxu0 0.0
        %1600 = vmatpush1.msra.mxu0 %v1573
        %1601 = vmatprep.subr.mxu0 0.0
        %1602 = vmatpush1.msra.mxu0 %v1574
        %1603 = vmatprep.subr.mxu0 0.0
        %1604 = vmatpush1.msra.mxu0 %v1575
        %1605 = vmatprep.subr.mxu0 0.0
        %1606 = vmatpush1.msra.mxu0 %v1576
        %1607 = vmatprep.subr.mxu0 0.0
        %1608 = vmatpush1.msra.mxu0 %v1577
        %1609 = vmatprep.subr.mxu0 0.0
        %1610 = vmatpush1.msra.mxu0 %v1578
        %1611 = vmatprep.subr.mxu0 0.0
        %1612 = vmatpush1.msra.mxu0 %v1579
        %1613 = vmatprep.subr.mxu0 0.0
        %1614 = vmatpush1.msra.mxu0 %v1580
        %1615 = vmatprep.subr.mxu0 0.0
        %1616 = vmatpush1.msra.mxu0 %v1581
        %1617 = vmatprep.subr.mxu0 0.0
        %1618 = vmatpush1.msra.mxu0 %v1582
        %1619 = vmatprep.subr.mxu0 0.0
        %1620 = vmatpush1.msra.mxu0 %v1583
        %1621 = vmatprep.subr.mxu0 0.0
        %1622 = vmatpush1.msra.mxu0 %v1584
        %1623 = vmatprep.subr.mxu0 0.0
        %1624 = vmatpush1.msra.mxu0 %v1585
        %1625 = vmatprep.subr.mxu0 0.0
        %1626 = vmatpush1.msra.mxu0 0.0
        %1627 = vmatprep.subr.mxu0 0.0
        %1628 = vmatpush1.msra.mxu0 0.0
        %1629 = vmatprep.subr.mxu0 0.0
        %1630 = vmatpush1.msra.mxu0 0.0
        %1631 = vmatprep.subr.mxu0 0.0
        %1632 = vmatpush1.msra.mxu0 0.0
        %1633 = vmatprep.subr.mxu0 0.0
        %1634 = vmatpush1.msra.mxu0 0.0
        %1635 = vmatprep.subr.mxu0 0.0
        %1636 = vmatpush1.msra.mxu0 0.0
        %1637 = vmatprep.subr.mxu0 0.0
        %1638 = vmatpush1.msra.mxu0 0.0
        %1639 = vmatprep.subr.mxu0 0.0
        %1640 = vmatpush1.msra.mxu0 0.0
        %1641 = vmatprep.subr.mxu0 0.0
        %1642 = vmatpush1.msra.mxu0 0.0
        %1643 = vmatprep.subr.mxu0 0.0
        %1644 = vmatpush1.msra.mxu0 0.0
        %1645 = vmatprep.subr.mxu0 0.0
        %1646 = vmatpush1.msra.mxu0 0.0
        %1647 = vmatprep.subr.mxu0 0.0
        %1648 = vmatpush1.msra.mxu0 0.0
        %1649 = vmatprep.subr.mxu0 0.0
        %1650 = vmatpush1.msra.mxu0 0.0
        %1651 = vmatprep.subr.mxu0 0.0
        %1652 = vmatpush1.msra.mxu0 0.0
        %1653 = vmatprep.subr.mxu0 0.0
        %1654 = vmatpush1.msra.mxu0 0.0
        %1655 = vmatprep.subr.mxu0 0.0
        %1656 = vmatpush1.msra.mxu0 0.0
        %1657 = vmatprep.mubr.f32.mxu0 0.0
        %1658 = vmatmul.mubr.f32.gmra.mrb[0].mxu0 %v1538
        %v1659 = vpop.f32.mrb[0].mxu0
        %v1660 = vadd.f32 %v1591, %v1659
        %v1661 = vpop.f32.mrb[0].mxu0
        %1662 = vmatprep.mubr.f32.mxu0 0.0
        %1663 = vmatmul.mubr.f32.gmra.mrb[0].mxu0 %v1539
        %v1664 = vpop.f32.mrb[0].mxu0
        %v1665 = vadd.f32 %v1591, %v1664
        %v1666 = vpop.f32.mrb[0].mxu0
        %1667 = vmatprep.mubr.f32.mxu0 0.0
        %1668 = vmatmul.mubr.f32.gmra.mrb[0].mxu0 %v1540
        %v1669 = vpop.f32.mrb[0].mxu0
        %v1670 = vadd.f32 %v1591, %v1669
        %v1671 = vpop.f32.mrb[0].mxu0
        %1672 = vmatprep.mubr.f32.mxu0 0.0
        %1673 = vmatmul.mubr.f32.gmra.mrb[0].mxu0 %v1541
        %v1674 = vpop.f32.mrb[0].mxu0
        %v1675 = vadd.f32 %v1591, %v1674
        %v1676 = vpop.f32.mrb[0].mxu0
        %1677 = vmatprep.mubr.f32.mxu0 0.0
        %1678 = vmatmul.mubr.f32.gmra.mrb[0].mxu0 %v1542
        %v1679 = vpop.f32.mrb[0].mxu0
        %v1680 = vadd.f32 %v1591, %v1679
        %v1681 = vpop.f32.mrb[0].mxu0
        %1682 = vmatprep.mubr.f32.mxu0 0.0
        %1683 = vmatmul.mubr.f32.gmra.mrb[0].mxu0 %v1543
        %v1684 = vpop.f32.mrb[0].mxu0
        %v1685 = vadd.f32 %v1591, %v1684
        %v1686 = vpop.f32.mrb[0].mxu0
        %1687 = vmatprep.mubr.f32.mxu0 0.0
        %1688 = vmatmul.mubr.f32.gmra.mrb[0].mxu0 %v1544
        %v1689 = vpop.f32.mrb[0].mxu0
        %v1690 = vadd.f32 %v1591, %v1689
        %v1691 = vpop.f32.mrb[0].mxu0
        %1692 = vmatprep.mubr.f32.mxu0 0.0
        %1693 = vmatmul.mubr.f32.gmra.mrb[0].mxu0 %v1545
        %v1694 = vpop.f32.mrb[0].mxu0
        %v1695 = vadd.f32 %v1591, %v1694
        %v1696 = vpop.f32.mrb[0].mxu0
        %1697 = vmatprep.mubr.f32.mxu0 0.0
        %1698 = vmatmul.mubr.f32.gmra.mrb[0].mxu0 %v1546
        %v1699 = vpop.f32.mrb[0].mxu0
        %v1700 = vadd.f32 %v1591, %v1699
        %v1701 = vpop.f32.mrb[0].mxu0
        %1702 = vmatprep.mubr.f32.mxu0 0.0
        %1703 = vmatmul.mubr.f32.gmra.mrb[0].mxu0 %v1547
        %v1704 = vpop.f32.mrb[0].mxu0
        %v1705 = vadd.f32 %v1591, %v1704
        %v1706 = vpop.f32.mrb[0].mxu0
        %1707 = vmatprep.mubr.f32.mxu0 0.0
        %1708 = vmatmul.mubr.f32.gmra.mrb[0].mxu0 %v1548
        %v1709 = vpop.f32.mrb[0].mxu0
        %v1710 = vadd.f32 %v1591, %v1709
        %v1711 = vpop.f32.mrb[0].mxu0
        %1712 = vmatprep.mubr.f32.mxu0 0.0
        %1713 = vmatmul.mubr.f32.gmra.mrb[0].mxu0 %v1549
        %v1714 = vpop.f32.mrb[0].mxu0
        %v1715 = vadd.f32 %v1591, %v1714
        %v1716 = vpop.f32.mrb[0].mxu0
        %1717 = vmatprep.mubr.f32.mxu0 0.0
        %1718 = vmatmul.mubr.f32.gmra.mrb[0].mxu0 %v1550
        %v1719 = vpop.f32.mrb[0].mxu0
        %v1720 = vadd.f32 %v1591, %v1719
        %v1721 = vpop.f32.mrb[0].mxu0
        %1722 = vmatprep.mubr.f32.mxu0 0.0
        %1723 = vmatmul.mubr.f32.gmra.mrb[0].mxu0 %v1551
        %v1724 = vpop.f32.mrb[0].mxu0
        %v1725 = vadd.f32 %v1591, %v1724
        %v1726 = vpop.f32.mrb[0].mxu0
        %1727 = vmatprep.mubr.f32.mxu0 0.0
        %1728 = vmatmul.mubr.f32.gmra.mrb[0].mxu0 %v1552
        %v1729 = vpop.f32.mrb[0].mxu0
        %v1730 = vadd.f32 %v1591, %v1729
        %v1731 = vpop.f32.mrb[0].mxu0
        %1732 = vmatprep.mubr.f32.mxu0 0.0
        %1733 = vmatmul.mubr.f32.gmra.mrb[0].mxu0 %v1553
        %v1734 = vpop.f32.mrb[0].mxu0
        %v1735 = vadd.f32 %v1591, %v1734
        %v1736 = vpop.f32.mrb[0].mxu0
        %1737 = vmatprep.mubr.f32.mxu0 0.0
        %1738 = vmatmul.mubr.f32.gmra.mrb[0].mxu0 %v1554
        %v1739 = vpop.f32.mrb[0].mxu0
        %v1740 = vadd.f32 %v1591, %v1739
        %v1741 = vpop.f32.mrb[0].mxu0
        %1742 = vmatprep.mubr.f32.mxu0 0.0
        %1743 = vmatmul.mubr.f32.gmra.mrb[0].mxu0 %v1555
        %v1744 = vpop.f32.mrb[0].mxu0
        %v1745 = vadd.f32 %v1591, %v1744
        %v1746 = vpop.f32.mrb[0].mxu0
        %1747 = vmatprep.mubr.f32.mxu0 0.0
        %1748 = vmatmul.mubr.f32.gmra.mrb[0].mxu0 %v1556
        %v1749 = vpop.f32.mrb[0].mxu0
        %v1750 = vadd.f32 %v1591, %v1749
        %v1751 = vpop.f32.mrb[0].mxu0
        %1752 = vmatprep.mubr.f32.mxu0 0.0
        %1753 = vmatmul.mubr.f32.gmra.mrb[0].mxu0 %v1557
        %v1754 = vpop.f32.mrb[0].mxu0
        %v1755 = vadd.f32 %v1591, %v1754
        %v1756 = vpop.f32.mrb[0].mxu0
        %1757 = vmatprep.mubr.f32.mxu0 0.0
        %1758 = vmatmul.mubr.f32.gmra.mrb[0].mxu0 %v1558
        %v1759 = vpop.f32.mrb[0].mxu0
        %v1760 = vadd.f32 %v1591, %v1759
        %v1761 = vpop.f32.mrb[0].mxu0
        %1762 = vmatprep.mubr.f32.mxu0 0.0
        %1763 = vmatmul.mubr.f32.gmra.mrb[0].mxu0 %v1559
        %v1764 = vpop.f32.mrb[0].mxu0
        %v1765 = vadd.f32 %v1591, %v1764
        %v1766 = vpop.f32.mrb[0].mxu0
        %1767 = vmatprep.mubr.f32.mxu0 0.0
        %1768 = vmatmul.mubr.f32.gmra.mrb[0].mxu0 %v1560
        %v1769 = vpop.f32.mrb[0].mxu0
        %v1770 = vadd.f32 %v1591, %v1769
        %v1771 = vpop.f32.mrb[0].mxu0
        %1772 = vmatprep.mubr.f32.mxu0 0.0
        %1773 = vmatmul.mubr.f32.gmra.mrb[0].mxu0 %v1561
        %v1774 = vpop.f32.mrb[0].mxu0
        %v1775 = vadd.f32 %v1591, %v1774
        %v1776 = vpop.f32.mrb[0].mxu0
        %1777 = vmatprep.mubr.f32.mxu0 0.0
        %1778 = vmatmul.mubr.f32.gmra.mrb[0].mxu0 %v1562
        %v1779 = vpop.f32.mrb[0].mxu0
        %v1780 = vadd.f32 %v1591, %v1779
        %v1781 = vpop.f32.mrb[0].mxu0
        %1782 = vmatprep.mubr.f32.mxu0 0.0
        %1783 = vmatmul.mubr.f32.gmra.mrb[0].mxu0 %v1563
        %v1784 = vpop.f32.mrb[0].mxu0
        %v1785 = vadd.f32 %v1591, %v1784
        %v1786 = vpop.f32.mrb[0].mxu0
        %1787 = vmatprep.mubr.f32.mxu0 0.0
        %1788 = vmatmul.mubr.f32.gmra.mrb[0].mxu0 %v1564
        %v1789 = vpop.f32.mrb[0].mxu0
        %v1790 = vadd.f32 %v1591, %v1789
        %v1791 = vpop.f32.mrb[0].mxu0
        %1792 = vmatprep.mubr.f32.mxu0 0.0
        %1793 = vmatmul.mubr.f32.gmra.mrb[0].mxu0 %v1565
        %v1794 = vpop.f32.mrb[0].mxu0
        %v1795 = vadd.f32 %v1591, %v1794
        %v1796 = vpop.f32.mrb[0].mxu0
        %1797 = vmatprep.mubr.f32.mxu0 0.0
        %1798 = vmatmul.mubr.f32.gmra.mrb[0].mxu0 %v1566
        %v1799 = vpop.f32.mrb[0].mxu0
        %v1800 = vadd.f32 %v1591, %v1799
        %v1801 = vpop.f32.mrb[0].mxu0
        %1802 = vmatprep.mubr.f32.mxu0 0.0
        %1803 = vmatmul.mubr.f32.gmra.mrb[0].mxu0 %v1567
        %v1804 = vpop.f32.mrb[0].mxu0
        %v1805 = vadd.f32 %v1591, %v1804
        %v1806 = vpop.f32.mrb[0].mxu0
        %1807 = vmatprep.mubr.f32.mxu0 0.0
        %1808 = vmatmul.mubr.f32.gmra.mrb[0].mxu0 %v1568
        %v1809 = vpop.f32.mrb[0].mxu0
        %v1810 = vadd.f32 %v1591, %v1809
        %v1811 = vpop.f32.mrb[0].mxu0
        %1812 = vmatprep.mubr.f32.mxu0 0.0
        %1813 = vmatmul.mubr.f32.gmra.mrb[0].mxu0 %v1569
        %v1814 = vpop.f32.mrb[0].mxu0
        %v1815 = vadd.f32 %v1591, %v1814
        %v1816 = vpop.f32.mrb[0].mxu0
        %1817 = vdwg.mxu0
        %1818 = vst [vmem:[%s431] sm:$0xff] %v1660
        %1819 = vst [vmem:[%s431 + $0x8] sm:$0xff] %v1665
        %1820 = vst [vmem:[%s431 + $0x10] sm:$0xff] %v1670
        %1821 = vst [vmem:[%s431 + $0x18] sm:$0xff] %v1675
        %1822 = vst [vmem:[%s431 + $0x20] sm:$0xff] %v1680
        %1823 = vst [vmem:[%s431 + $0x28] sm:$0xff] %v1685
        %1824 = vst [vmem:[%s431 + $0x30] sm:$0xff] %v1690
        %1825 = vst [vmem:[%s431 + $0x38] sm:$0xff] %v1695
        %1826 = vst [vmem:[%s431 + $0x40] sm:$0xff] %v1700
        %1827 = vst [vmem:[%s431 + $0x48] sm:$0xff] %v1705
        %1828 = vst [vmem:[%s431 + $0x50] sm:$0xff] %v1710
        %1829 = vst [vmem:[%s431 + $0x58] sm:$0xff] %v1715
        %1830 = vst [vmem:[%s431 + $0x60] sm:$0xff] %v1720
        %1831 = vst [vmem:[%s431 + $0x68] sm:$0xff] %v1725
        %1832 = vst [vmem:[%s431 + $0x70] sm:$0xff] %v1730
        %1833 = vst [vmem:[%s431 + $0x78] sm:$0xff] %v1735
        %1834 = vst [vmem:[%s431 + $0x80] sm:$0xff] %v1740
        %1835 = vst [vmem:[%s431 + $0x88] sm:$0xff] %v1745
        %1836 = vst [vmem:[%s431 + $0x90] sm:$0xff] %v1750
        %1837 = vst [vmem:[%s431 + $0x98] sm:$0xff] %v1755
        %1838 = vst [vmem:[%s431 + $0xa0] sm:$0xff] %v1760
        %1839 = vst [vmem:[%s431 + $0xa8] sm:$0xff] %v1765
        %1840 = vst [vmem:[%s431 + $0xb0] sm:$0xff] %v1770
        %1841 = vst [vmem:[%s431 + $0xb8] sm:$0xff] %v1775
        %1842 = vst [vmem:[%s431 + $0xc0] sm:$0xff] %v1780
        %1843 = vst [vmem:[%s431 + $0xc8] sm:$0xff] %v1785
        %1844 = vst [vmem:[%s431 + $0xd0] sm:$0xff] %v1790
        %1845 = vst [vmem:[%s431 + $0xd8] sm:$0xff] %v1795
        %1846 = vst [vmem:[%s431 + $0xe0] sm:$0xff] %v1800
        %1847 = vst [vmem:[%s431 + $0xe8] sm:$0xff] %v1805
        %1848 = vst [vmem:[%s431 + $0xf0] sm:$0xff] %v1810
        %1849 = vst [vmem:[%s431 + $0xf8] sm:$0xff] %v1815
        %v1850 = vcvt.f32.s32.to.zero.pseudo %v1120
        %v1851 = vcvt.f32.s32.to.zero.pseudo %v1122
        %v1852 = vcvt.f32.s32.to.zero.pseudo %v1124
        %v1853 = vcvt.f32.s32.to.zero.pseudo %v1126
        %v1854 = vcvt.f32.s32.to.zero.pseudo %v1128
        %v1855 = vcvt.f32.s32.to.zero.pseudo %v1130
        %v1856 = vcvt.f32.s32.to.zero.pseudo %v1132
        %v1857 = vcvt.f32.s32.to.zero.pseudo %v1134
        %v1858 = vcvt.f32.s32.to.zero.pseudo %v1136
        %v1859 = vcvt.f32.s32.to.zero.pseudo %v1138
        %v1860 = vcvt.f32.s32.to.zero.pseudo %v1140
        %v1861 = vcvt.f32.s32.to.zero.pseudo %v1142
        %v1862 = vcvt.f32.s32.to.zero.pseudo %v1144
        %v1863 = vcvt.f32.s32.to.zero.pseudo %v1146
        %v1864 = vcvt.f32.s32.to.zero.pseudo %v1148
        %v1865 = vcvt.f32.s32.to.zero.pseudo %v1150
        %v1866 = vcvt.f32.s32.to.zero.pseudo %v1152
        %v1867 = vcvt.f32.s32.to.zero.pseudo %v1154
        %v1868 = vcvt.f32.s32.to.zero.pseudo %v1156
        %v1869 = vcvt.f32.s32.to.zero.pseudo %v1158
        %v1870 = vcvt.f32.s32.to.zero.pseudo %v1160
        %v1871 = vcvt.f32.s32.to.zero.pseudo %v1162
        %v1872 = vcvt.f32.s32.to.zero.pseudo %v1164
        %v1873 = vcvt.f32.s32.to.zero.pseudo %v1166
        %v1874 = vcvt.f32.s32.to.zero.pseudo %v1168
        %v1875 = vcvt.f32.s32.to.zero.pseudo %v1170
        %v1876 = vcvt.f32.s32.to.zero.pseudo %v1172
        %v1877 = vcvt.f32.s32.to.zero.pseudo %v1174
        %v1878 = vcvt.f32.s32.to.zero.pseudo %v1176
        %v1879 = vcvt.f32.s32.to.zero.pseudo %v1178
        %v1880 = vcvt.f32.s32.to.zero.pseudo %v1180
        %v1881 = vcvt.f32.s32.to.zero.pseudo %v1182
        %v1882 = vlaneseq
        %v1883 = vand.u32 %v1882, 127
        %v1884 = vlaneseq
        %v1885 = vshrl.u32 %v1884, 7
        %v1886 = vsub.s32 %v1883, %v1885
        %v1887 = vrot.slane %v1850, %v1886
        %v1888 = vadd.s32 %v1883, 4294967288
        %v1889 = vlaneseq
        %v1890 = vshrl.u32 %v1889, 7
        %v1891 = vsub.s32 %v1888, %v1890
        %v1892 = vrot.slane %v1851, %v1891
        %vm1893 = vcmask 130112
        %v1894 = vsel %vm1893, %v1892, %v1887
        %v1895 = vadd.s32 %v1883, 4294967280
        %v1896 = vlaneseq
        %v1897 = vshrl.u32 %v1896, 7
        %v1898 = vsub.s32 %v1895, %v1897
        %v1899 = vrot.slane %v1852, %v1898
        %vm1900 = vcmask 195712
        %v1901 = vsel %vm1900, %v1899, %v1894
        %v1902 = vadd.s32 %v1883, 4294967272
        %v1903 = vlaneseq
        %v1904 = vshrl.u32 %v1903, 7
        %v1905 = vsub.s32 %v1902, %v1904
        %v1906 = vrot.slane %v1853, %v1905
        %vm1907 = vcmask 261312
        %v1908 = vsel %vm1907, %v1906, %v1901
        %v1909 = vadd.s32 %v1883, 4294967264
        %v1910 = vlaneseq
        %v1911 = vshrl.u32 %v1910, 7
        %v1912 = vsub.s32 %v1909, %v1911
        %v1913 = vrot.slane %v1854, %v1912
        %vm1914 = vcmask 326912
        %v1915 = vsel %vm1914, %v1913, %v1908
        %v1916 = vadd.s32 %v1883, 4294967256
        %v1917 = vlaneseq
        %v1918 = vshrl.u32 %v1917, 7
        %v1919 = vsub.s32 %v1916, %v1918
        %v1920 = vrot.slane %v1855, %v1919
        %vm1921 = vcmask 392512
        %v1922 = vsel %vm1921, %v1920, %v1915
        %v1923 = vadd.s32 %v1883, 4294967248
        %v1924 = vlaneseq
        %v1925 = vshrl.u32 %v1924, 7
        %v1926 = vsub.s32 %v1923, %v1925
        %v1927 = vrot.slane %v1856, %v1926
        %vm1928 = vcmask 458112
        %v1929 = vsel %vm1928, %v1927, %v1922
        %v1930 = vadd.s32 %v1883, 4294967240
        %v1931 = vlaneseq
        %v1932 = vshrl.u32 %v1931, 7
        %v1933 = vsub.s32 %v1930, %v1932
        %v1934 = vrot.slane %v1857, %v1933
        %vm1935 = vcmask 523712
        %v1936 = vsel %vm1935, %v1934, %v1929
        %v1937 = vadd.s32 %v1883, 4294967232
        %v1938 = vlaneseq
        %v1939 = vshrl.u32 %v1938, 7
        %v1940 = vsub.s32 %v1937, %v1939
        %v1941 = vrot.slane %v1858, %v1940
        %vm1942 = vcmask 589312
        %v1943 = vsel %vm1942, %v1941, %v1936
        %v1944 = vadd.s32 %v1883, 4294967224
        %v1945 = vlaneseq
        %v1946 = vshrl.u32 %v1945, 7
        %v1947 = vsub.s32 %v1944, %v1946
        %v1948 = vrot.slane %v1859, %v1947
        %vm1949 = vcmask 654912
        %v1950 = vsel %vm1949, %v1948, %v1943
        %v1951 = vadd.s32 %v1883, 4294967216
        %v1952 = vlaneseq
        %v1953 = vshrl.u32 %v1952, 7
        %v1954 = vsub.s32 %v1951, %v1953
        %v1955 = vrot.slane %v1860, %v1954
        %vm1956 = vcmask 720512
        %v1957 = vsel %vm1956, %v1955, %v1950
        %v1958 = vadd.s32 %v1883, 4294967208
        %v1959 = vlaneseq
        %v1960 = vshrl.u32 %v1959, 7
        %v1961 = vsub.s32 %v1958, %v1960
        %v1962 = vrot.slane %v1861, %v1961
        %vm1963 = vcmask 786112
        %v1964 = vsel %vm1963, %v1962, %v1957
        %v1965 = vadd.s32 %v1883, 4294967200
        %v1966 = vlaneseq
        %v1967 = vshrl.u32 %v1966, 7
        %v1968 = vsub.s32 %v1965, %v1967
        %v1969 = vrot.slane %v1862, %v1968
        %vm1970 = vcmask 851712
        %v1971 = vsel %vm1970, %v1969, %v1964
        %v1972 = vadd.s32 %v1883, 4294967192
        %v1973 = vlaneseq
        %v1974 = vshrl.u32 %v1973, 7
        %v1975 = vsub.s32 %v1972, %v1974
        %v1976 = vrot.slane %v1863, %v1975
        %vm1977 = vcmask 917312
        %v1978 = vsel %vm1977, %v1976, %v1971
        %v1979 = vadd.s32 %v1883, 4294967184
        %v1980 = vlaneseq
        %v1981 = vshrl.u32 %v1980, 7
        %v1982 = vsub.s32 %v1979, %v1981
        %v1983 = vrot.slane %v1864, %v1982
        %vm1984 = vcmask 982912
        %v1985 = vsel %vm1984, %v1983, %v1978
        %v1986 = vadd.s32 %v1883, 4294967176
        %v1987 = vlaneseq
        %v1988 = vshrl.u32 %v1987, 7
        %v1989 = vsub.s32 %v1986, %v1988
        %v1990 = vrot.slane %v1865, %v1989
        %vm1991 = vcmask 1048512
        %v1992 = vsel %vm1991, %v1990, %v1985
        %v1993 = vlaneseq
        %v1994 = vshrl.u32 %v1993, 7
        %v1995 = vsub.s32 %v1883, %v1994
        %v1996 = vrot.slane %v1866, %v1995
        %v1997 = vlaneseq
        %v1998 = vshrl.u32 %v1997, 7
        %v1999 = vsub.s32 %v1888, %v1998
        %v2000 = vrot.slane %v1867, %v1999
        %v2001 = vsel %vm1893, %v2000, %v1996
        %v2002 = vlaneseq
        %v2003 = vshrl.u32 %v2002, 7
        %v2004 = vsub.s32 %v1895, %v2003
        %v2005 = vrot.slane %v1868, %v2004
        %v2006 = vsel %vm1900, %v2005, %v2001
        %v2007 = vlaneseq
        %v2008 = vshrl.u32 %v2007, 7
        %v2009 = vsub.s32 %v1902, %v2008
        %v2010 = vrot.slane %v1869, %v2009
        %v2011 = vsel %vm1907, %v2010, %v2006
        %v2012 = vlaneseq
        %v2013 = vshrl.u32 %v2012, 7
        %v2014 = vsub.s32 %v1909, %v2013
        %v2015 = vrot.slane %v1870, %v2014
        %v2016 = vsel %vm1914, %v2015, %v2011
        %v2017 = vlaneseq
        %v2018 = vshrl.u32 %v2017, 7
        %v2019 = vsub.s32 %v1916, %v2018
        %v2020 = vrot.slane %v1871, %v2019
        %v2021 = vsel %vm1921, %v2020, %v2016
        %v2022 = vlaneseq
        %v2023 = vshrl.u32 %v2022, 7
        %v2024 = vsub.s32 %v1923, %v2023
        %v2025 = vrot.slane %v1872, %v2024
        %v2026 = vsel %vm1928, %v2025, %v2021
        %v2027 = vlaneseq
        %v2028 = vshrl.u32 %v2027, 7
        %v2029 = vsub.s32 %v1930, %v2028
        %v2030 = vrot.slane %v1873, %v2029
        %v2031 = vsel %vm1935, %v2030, %v2026
        %v2032 = vlaneseq
        %v2033 = vshrl.u32 %v2032, 7
        %v2034 = vsub.s32 %v1937, %v2033
        %v2035 = vrot.slane %v1874, %v2034
        %v2036 = vsel %vm1942, %v2035, %v2031
        %v2037 = vlaneseq
        %v2038 = vshrl.u32 %v2037, 7
        %v2039 = vsub.s32 %v1944, %v2038
        %v2040 = vrot.slane %v1875, %v2039
        %v2041 = vsel %vm1949, %v2040, %v2036
        %v2042 = vlaneseq
        %v2043 = vshrl.u32 %v2042, 7
        %v2044 = vsub.s32 %v1951, %v2043
        %v2045 = vrot.slane %v1876, %v2044
        %v2046 = vsel %vm1956, %v2045, %v2041
        %v2047 = vlaneseq
        %v2048 = vshrl.u32 %v2047, 7
        %v2049 = vsub.s32 %v1958, %v2048
        %v2050 = vrot.slane %v1877, %v2049
        %v2051 = vsel %vm1963, %v2050, %v2046
        %v2052 = vlaneseq
        %v2053 = vshrl.u32 %v2052, 7
        %v2054 = vsub.s32 %v1965, %v2053
        %v2055 = vrot.slane %v1878, %v2054
        %v2056 = vsel %vm1970, %v2055, %v2051
        %v2057 = vlaneseq
        %v2058 = vshrl.u32 %v2057, 7
        %v2059 = vsub.s32 %v1972, %v2058
        %v2060 = vrot.slane %v1879, %v2059
        %v2061 = vsel %vm1977, %v2060, %v2056
        %v2062 = vlaneseq
        %v2063 = vshrl.u32 %v2062, 7
        %v2064 = vsub.s32 %v1979, %v2063
        %v2065 = vrot.slane %v1880, %v2064
        %v2066 = vsel %vm1984, %v2065, %v2061
        %v2067 = vlaneseq
        %v2068 = vshrl.u32 %v2067, 7
        %v2069 = vsub.s32 %v1986, %v2068
        %v2070 = vrot.slane %v1881, %v2069
        %v2071 = vsel %vm1991, %v2070, %v2066
        %vm2072 = vcmask 1041409
        %v2073 = vsel %vm2072, %v2071, %v1992
        %2074 = vst [vmem:[%s438] sm:$0x3] %v2073
        %v2107 = vlaneseq
        %v2108 = vshrl.u32 %v2107, 7
        %v2109 = vsub.s32 %v1883, %v2108
        %v2110 = vrot.slane %v1442, %v2109
        %v2111 = vlaneseq
        %v2112 = vshrl.u32 %v2111, 7
        %v2113 = vsub.s32 %v1888, %v2112
        %v2114 = vrot.slane %v1443, %v2113
        %v2115 = vsel %vm1893, %v2114, %v2110
        %v2116 = vlaneseq
        %v2117 = vshrl.u32 %v2116, 7
        %v2118 = vsub.s32 %v1895, %v2117
        %v2119 = vrot.slane %v1444, %v2118
        %v2120 = vsel %vm1900, %v2119, %v2115
        %v2121 = vlaneseq
        %v2122 = vshrl.u32 %v2121, 7
        %v2123 = vsub.s32 %v1902, %v2122
        %v2124 = vrot.slane %v1445, %v2123
        %v2125 = vsel %vm1907, %v2124, %v2120
        %v2126 = vlaneseq
        %v2127 = vshrl.u32 %v2126, 7
        %v2128 = vsub.s32 %v1909, %v2127
        %v2129 = vrot.slane %v1446, %v2128
        %v2130 = vsel %vm1914, %v2129, %v2125
        %v2131 = vlaneseq
        %v2132 = vshrl.u32 %v2131, 7
        %v2133 = vsub.s32 %v1916, %v2132
        %v2134 = vrot.slane %v1447, %v2133
        %v2135 = vsel %vm1921, %v2134, %v2130
        %v2136 = vlaneseq
        %v2137 = vshrl.u32 %v2136, 7
        %v2138 = vsub.s32 %v1923, %v2137
        %v2139 = vrot.slane %v1448, %v2138
        %v2140 = vsel %vm1928, %v2139, %v2135
        %v2141 = vlaneseq
        %v2142 = vshrl.u32 %v2141, 7
        %v2143 = vsub.s32 %v1930, %v2142
        %v2144 = vrot.slane %v1449, %v2143
        %v2145 = vsel %vm1935, %v2144, %v2140
        %v2146 = vlaneseq
        %v2147 = vshrl.u32 %v2146, 7
        %v2148 = vsub.s32 %v1937, %v2147
        %v2149 = vrot.slane %v1450, %v2148
        %v2150 = vsel %vm1942, %v2149, %v2145
        %v2151 = vlaneseq
        %v2152 = vshrl.u32 %v2151, 7
        %v2153 = vsub.s32 %v1944, %v2152
        %v2154 = vrot.slane %v1451, %v2153
        %v2155 = vsel %vm1949, %v2154, %v2150
        %v2156 = vlaneseq
        %v2157 = vshrl.u32 %v2156, 7
        %v2158 = vsub.s32 %v1951, %v2157
        %v2159 = vrot.slane %v1452, %v2158
        %v2160 = vsel %vm1956, %v2159, %v2155
        %v2161 = vlaneseq
        %v2162 = vshrl.u32 %v2161, 7
        %v2163 = vsub.s32 %v1958, %v2162
        %v2164 = vrot.slane %v1453, %v2163
        %v2165 = vsel %vm1963, %v2164, %v2160
        %v2166 = vlaneseq
        %v2167 = vshrl.u32 %v2166, 7
        %v2168 = vsub.s32 %v1965, %v2167
        %v2169 = vrot.slane %v1454, %v2168
        %v2170 = vsel %vm1970, %v2169, %v2165
        %v2171 = vlaneseq
        %v2172 = vshrl.u32 %v2171, 7
        %v2173 = vsub.s32 %v1972, %v2172
        %v2174 = vrot.slane %v1455, %v2173
        %v2175 = vsel %vm1977, %v2174, %v2170
        %v2176 = vlaneseq
        %v2177 = vshrl.u32 %v2176, 7
        %v2178 = vsub.s32 %v1979, %v2177
        %v2179 = vrot.slane %v1456, %v2178
        %v2180 = vsel %vm1984, %v2179, %v2175
        %v2181 = vlaneseq
        %v2182 = vshrl.u32 %v2181, 7
        %v2183 = vsub.s32 %v1986, %v2182
        %v2184 = vrot.slane %v1457, %v2183
        %v2185 = vsel %vm1991, %v2184, %v2180
        %v2186 = vlaneseq
        %v2187 = vshrl.u32 %v2186, 7
        %v2188 = vsub.s32 %v1883, %v2187
        %v2189 = vrot.slane %v1458, %v2188
        %v2190 = vlaneseq
        %v2191 = vshrl.u32 %v2190, 7
        %v2192 = vsub.s32 %v1888, %v2191
        %v2193 = vrot.slane %v1459, %v2192
        %v2194 = vsel %vm1893, %v2193, %v2189
        %v2195 = vlaneseq
        %v2196 = vshrl.u32 %v2195, 7
        %v2197 = vsub.s32 %v1895, %v2196
        %v2198 = vrot.slane %v1460, %v2197
        %v2199 = vsel %vm1900, %v2198, %v2194
        %v2200 = vlaneseq
        %v2201 = vshrl.u32 %v2200, 7
        %v2202 = vsub.s32 %v1902, %v2201
        %v2203 = vrot.slane %v1461, %v2202
        %v2204 = vsel %vm1907, %v2203, %v2199
        %v2205 = vlaneseq
        %v2206 = vshrl.u32 %v2205, 7
        %v2207 = vsub.s32 %v1909, %v2206
        %v2208 = vrot.slane %v1462, %v2207
        %v2209 = vsel %vm1914, %v2208, %v2204
        %v2210 = vlaneseq
        %v2211 = vshrl.u32 %v2210, 7
        %v2212 = vsub.s32 %v1916, %v2211
        %v2213 = vrot.slane %v1463, %v2212
        %v2214 = vsel %vm1921, %v2213, %v2209
        %v2215 = vlaneseq
        %v2216 = vshrl.u32 %v2215, 7
        %v2217 = vsub.s32 %v1923, %v2216
        %v2218 = vrot.slane %v1464, %v2217
        %v2219 = vsel %vm1928, %v2218, %v2214
        %v2220 = vlaneseq
        %v2221 = vshrl.u32 %v2220, 7
        %v2222 = vsub.s32 %v1930, %v2221
        %v2223 = vrot.slane %v1465, %v2222
        %v2224 = vsel %vm1935, %v2223, %v2219
        %v2225 = vlaneseq
        %v2226 = vshrl.u32 %v2225, 7
        %v2227 = vsub.s32 %v1937, %v2226
        %v2228 = vrot.slane %v1466, %v2227
        %v2229 = vsel %vm1942, %v2228, %v2224
        %v2230 = vlaneseq
        %v2231 = vshrl.u32 %v2230, 7
        %v2232 = vsub.s32 %v1944, %v2231
        %v2233 = vrot.slane %v1467, %v2232
        %v2234 = vsel %vm1949, %v2233, %v2229
        %v2235 = vlaneseq
        %v2236 = vshrl.u32 %v2235, 7
        %v2237 = vsub.s32 %v1951, %v2236
        %v2238 = vrot.slane %v1468, %v2237
        %v2239 = vsel %vm1956, %v2238, %v2234
        %v2240 = vlaneseq
        %v2241 = vshrl.u32 %v2240, 7
        %v2242 = vsub.s32 %v1958, %v2241
        %v2243 = vrot.slane %v1469, %v2242
        %v2244 = vsel %vm1963, %v2243, %v2239
        %v2245 = vlaneseq
        %v2246 = vshrl.u32 %v2245, 7
        %v2247 = vsub.s32 %v1965, %v2246
        %v2248 = vrot.slane %v1470, %v2247
        %v2249 = vsel %vm1970, %v2248, %v2244
        %v2250 = vlaneseq
        %v2251 = vshrl.u32 %v2250, 7
        %v2252 = vsub.s32 %v1972, %v2251
        %v2253 = vrot.slane %v1471, %v2252
        %v2254 = vsel %vm1977, %v2253, %v2249
        %v2255 = vlaneseq
        %v2256 = vshrl.u32 %v2255, 7
        %v2257 = vsub.s32 %v1979, %v2256
        %v2258 = vrot.slane %v1472, %v2257
        %v2259 = vsel %vm1984, %v2258, %v2254
        %v2260 = vlaneseq
        %v2261 = vshrl.u32 %v2260, 7
        %v2262 = vsub.s32 %v1986, %v2261
        %v2263 = vrot.slane %v1473, %v2262
        %v2264 = vsel %vm1991, %v2263, %v2259
        %v2265 = vsel %vm2072, %v2264, %v2185
        %2267 = vst [vmem:[%s445] sm:$0x3] %v2265
        %s2268 = sand.u32 %s214, 1
        %s2269 = scalar_lea.sflag [#allocation4], %s2268
        %s2270 = sand.u32 %s214, 1
        %s2271 = smul.addr %s2270, 256
        %s2272 = scalar_lea.vmem [#allocation10], %s2271
        %s2273 = sand.u32 %s33, 1
        %s2274 = scalar_lea.sflag [#allocation12], %s2273
        %s2275 = sand.u32 %s240, 1
        %s2276 = smul.addr %s2275, 2
        %s2277 = scalar_lea.vmem [#allocation11], %s2276
        %s2278 = sand.u32 %s33, 1
        %s2279 = scalar_lea.sflag [#allocation12], %s2278
        %s2280 = sand.u32 %s266, 1
        %s2281 = smul.addr %s2280, 2
        %s2282 = scalar_lea.vmem [#allocation13], %s2281
        // Predicated region
        $region69: #{tpu_custom_call.1} parent=51 // pred_check
          %p2283 = pneg %p224
        $region70: #{tpu_custom_call.1} parent=51 // pred_check_branch
          %2285 = sbr.rel (%p2283) target = $region72
        $region71: #{tpu_custom_call.1} parent=51 // pred_region
          %s2286 = smul.u32 32, %s33
          %s2287 = ssub.s32 50, %s2286
          %p2288 = scmp.lt.s32.totalorder %s2287, 32
          %s2289 = scalar_select %p2288, %s2287, 32
          %s2290 = smul.u32 128, %s2289
          %s2292 = ssub.s32 4096, %s2290
          %2293 = vsyncadd %s2269, %s2292
          %p2294 = scmp.ne.s32.totalorder 0, %s2290
          %s2295 = smul.addr %s2286, 128
          %s2296 = scalar_lea.hbm %s8, %s2295
          %s2297 = smul.u32 8, %s2289
          %s2298 = sshll.u32 %s2272, 4
          %s2299 = int_to_ptr.vmem [resolvable:$true] %s2298
          %s2300 = sshll.u32 %s2297, 4
          %2304 = dma.vmem_to_hbm [thread:$0]  (%p2294), %s2299, %s2300, %s2296, %s2269, 128, 128, 8
        $region72: #{tpu_custom_call.1} parent=51 // pred_fallthru
          _
        // Predicated region
        $region73: #{tpu_custom_call.1} parent=51 // pred_check
          %p2305 = pneg %p250
        $region74: #{tpu_custom_call.1} parent=51 // pred_check_branch
          %2307 = sbr.rel (%p2305) target = $region76
        $region75: #{tpu_custom_call.1} parent=51 // pred_region
          %s2309 = ssub.s32 32, 32
          %2310 = vsyncadd %s2274, %s2309
          %s2311 = smul.addr %s33, 32
          %s2312 = scalar_lea.hbm %s9, %s2311
          %s2314 = sshll.u32 %s2277, 4
          %s2315 = int_to_ptr.vmem [resolvable:$true] %s2314
          %2317 = dma.vmem_to_hbm [thread:$0]  %s2315, 32, %s2312, %s2274
        $region76: #{tpu_custom_call.1} parent=51 // pred_fallthru
          _
        // Predicated region
        $region77: #{tpu_custom_call.1} parent=51 // pred_check
          %p2318 = pneg %p276
        $region78: #{tpu_custom_call.1} parent=51 // pred_check_branch
          %2320 = sbr.rel (%p2318) target = $region80
        $region79: #{tpu_custom_call.1} parent=51 // pred_region
          %s2322 = ssub.s32 32, 32
          %2323 = vsyncadd %s2279, %s2322
          %s2324 = smul.addr %s33, 32
          %s2325 = scalar_lea.hbm %s10, %s2324
          %s2327 = sshll.u32 %s2282, 4
          %s2328 = int_to_ptr.vmem [resolvable:$true] %s2327
          %2330 = dma.vmem_to_hbm [thread:$0]  %s2328, 32, %s2325, %s2279
        $region80: #{tpu_custom_call.1} parent=51 // pred_fallthru
          _
      $region52: #{tpu_custom_call.1} parent=5 // pred_fallthru
        _
      %p2331 = scmp.le.s32.totalorder 2, %s28
      // Predicated region
      $region81: #{tpu_custom_call.1} parent=5 // pred_check
        %p2332 = pneg %p2331
      $region82: #{tpu_custom_call.1} parent=5 // pred_check_branch
        %2334 = sbr.rel (%p2332) target = $region84
      $region83: #{tpu_custom_call.1} parent=5 // pred_region
        %s2335 = ssub.s32 %s28, 2
        // Predicated region
        $region85: #{tpu_custom_call.1} parent=83 // pred_check
          %p2336 = pneg %p230
        $region86: #{tpu_custom_call.1} parent=83 // pred_check_branch
          %2338 = sbr.rel (%p2336) target = $region88
        $region87: #{tpu_custom_call.1} parent=83 // pred_region
          %s2339 = sand.u32 %s215, 1
          %s2340 = scalar_lea.sflag [#allocation4], %s2339
          %s2341 = sand.u32 %s215, 1
          %s2342 = smul.addr %s2341, 256
          %s2343 = scalar_lea.vmem [#allocation10], %s2342
          %2344 = dma.done %s2340, 4096
        $region88: #{tpu_custom_call.1} parent=83 // pred_fallthru
          _
        // Predicated region
        $region89: #{tpu_custom_call.1} parent=83 // pred_check
          %p2345 = pneg %p256
        $region90: #{tpu_custom_call.1} parent=83 // pred_check_branch
          %2347 = sbr.rel (%p2345) target = $region92
        $region91: #{tpu_custom_call.1} parent=83 // pred_region
          %s2348 = sand.u32 %s34, 1
          %s2349 = scalar_lea.sflag [#allocation12], %s2348
          %s2350 = sand.u32 %s241, 1
          %s2351 = smul.addr %s2350, 2
          %s2352 = scalar_lea.vmem [#allocation11], %s2351
          %2353 = dma.done %s2349, 32
        $region92: #{tpu_custom_call.1} parent=83 // pred_fallthru
          _
        // Predicated region
        $region93: #{tpu_custom_call.1} parent=83 // pred_check
          %p2354 = pneg %p282
        $region94: #{tpu_custom_call.1} parent=83 // pred_check_branch
          %2356 = sbr.rel (%p2354) target = $region96
        $region95: #{tpu_custom_call.1} parent=83 // pred_region
          %s2357 = sand.u32 %s34, 1
          %s2358 = scalar_lea.sflag [#allocation12], %s2357
          %s2359 = sand.u32 %s267, 1
          %s2360 = smul.addr %s2359, 2
          %s2361 = scalar_lea.vmem [#allocation13], %s2360
          %2362 = dma.done %s2358, 32
        $region96: #{tpu_custom_call.1} parent=83 // pred_fallthru
          _
      $region84: #{tpu_custom_call.1} parent=5 // pred_fallthru
        _
    $region6: #{tpu_custom_call.1} parent=1 // loop_footer
      %s32 = sadd.s32 1, %s28
    $region7: #{tpu_custom_call.1} parent=1 // loop_footer_branch
      %27 = sbr.rel target = $region3
    $region8: #{tpu_custom_call.1} parent=1 // loop_exit
      _
    %2363 = vsyncpa [#allocation3], 1
    %s2364 = scalar_lea.sflag [#allocation3], 1
    %2365 = vsyncpa %s2364, 1
    %2366 = vsyncpa [#allocation6], 1
    %2367 = vsyncpa [#allocation9], 1
    %2368 = vsyncpa [#allocation4], 1
    %s2369 = scalar_lea.sflag [#allocation4], 1
    %2370 = vsyncpa %s2369, 1
    %2371 = vsyncpa [#allocation12], 1
    %s2372 = scalar_lea.sflag [#allocation12], 1
    %2373 = vsyncpa %s2372, 1

</llo_original>
